<compile_context>
chip_gen: v7x
topology: tpu7x:2x2x1
jax: 0.10.0
libtpu: 0.0.40
codegen_flags: <defaults>
</compile_context>

<pallas_src>
import functools
import math

import jax
import jax.numpy as jnp
from jax.experimental import pallas as pl
from jax.experimental.pallas import tpu as pltpu


def _refinement_kernel(x_ref,
                       wqkv_e_ref, bqkv_e_ref, wo_e_ref, bo_e_ref,
                       wqkv_s_ref, bqkv_s_ref, wo_s_ref, bo_s_ref,
                       w1_ref, b1_ref, w2_ref, b2_ref,
                       ln_g_ref, ln_b_ref,
                       o_ref, *, num_heads, num_repeats, eps):
    f32, bf16 = jnp.float32, jnp.bfloat16
    x = x_ref[0].astype(f32)                       # (S, D), residual stream in f32
    S, D = x.shape
    hd = D // num_heads

    def layer_norm(v, idx):
        g = ln_g_ref[idx]                          # (1, D) f32
        b = ln_b_ref[idx]                          # (1, D) f32
        mean = jnp.mean(v, axis=-1, keepdims=True)
        c = v - mean
        var = jnp.mean(c * c, axis=-1, keepdims=True)
        return c * jax.lax.rsqrt(var + eps) * g + b

    def mha(v, wqkv_ref, bqkv_ref, wo_ref, bo_ref):
        vb = v.astype(bf16)
        # full-width projections (bf16 MXU operands, f32 accumulate);
        # 1/sqrt(hd) is already folded into wq / bq at pack time.
        q = jnp.dot(vb, wqkv_ref[0], preferred_element_type=f32) + bqkv_ref[0]
        k = jnp.dot(vb, wqkv_ref[1], preferred_element_type=f32) + bqkv_ref[1]
        w = jnp.dot(vb, wqkv_ref[2], preferred_element_type=f32) + bqkv_ref[2]

        out = jnp.zeros((S, D), f32)
        for h in range(num_heads):                 # static unroll over heads
            lo = h * hd
            qh = q[:, lo:lo + hd].astype(bf16)     # (S, hd) static lane slice
            kh = k[:, lo:lo + hd].astype(bf16)
            wh = w[:, lo:lo + hd].astype(bf16)
            # scores contract over hd only (ideal MXU flops, no masking over-work)
            s = jax.lax.dot_general(qh, kh, (((1,), (1,)), ((), ())),
                                    preferred_element_type=f32)     # (S, S)
            s = s - jnp.max(s, axis=-1, keepdims=True)
            p = jnp.exp(s)
            inv = pl.reciprocal(jnp.sum(p, axis=-1, keepdims=True), approx=True)
            # deferred softmax normalization: scale the (S, hd) output, not (S, S) P
            oh = jnp.dot(p.astype(bf16), wh, preferred_element_type=f32) * inv
            # per-head out-projection slice accumulated -> no concat needed
            out = out + jnp.dot(oh.astype(bf16), wo_ref[h],
                                preferred_element_type=f32)
        return out + bo_ref[...]

    # 1) EnhancedLocalSelfAttention:  x = LN_e(x + MHA_e(x))
    x = layer_norm(x + mha(x, wqkv_e_ref, bqkv_e_ref, wo_e_ref, bo_e_ref), 0)

    # 2) [AddNorm1(SelfAttentionLayer), AddNorm2(FFNLayer)] x num_repeats
    def repeat_block(xc):
        # AddNorm1: x = x + LN_s(y + MHA_s(y)),  y = LN_a1(x)
        y = layer_norm(xc, 1)
        y = layer_norm(y + mha(y, wqkv_s_ref, bqkv_s_ref, wo_s_ref, bo_s_ref), 2)
        xc = xc + y
        # AddNorm2: x = x + LN_f(y + FFN(y)),  y = LN_a2(x)
        y = layer_norm(xc, 3)
        h1 = jnp.maximum(
            jnp.dot(y.astype(bf16), w1_ref[...], preferred_element_type=f32)
            + b1_ref[...], 0.0)
        ff = jnp.dot(h1.astype(bf16), w2_ref[...],
                     preferred_element_type=f32) + b2_ref[...]
        y = layer_norm(y + ff, 4)
        return xc + y

    if num_repeats <= 2:
        for _ in range(num_repeats):               # short: static unroll
            x = repeat_block(x)
    else:                                          # long: keep code size flat
        x = jax.lax.fori_loop(0, num_repeats, lambda _, xc: repeat_block(xc), x)

    o_ref[0] = x.astype(o_ref.dtype)


def pack_params(P, num_heads):
    """One-time repack of torch-layout parameters into kernel operands.

    Weights -> bf16 (MXU operands); biases / LayerNorm params stay f32.
    The 1/sqrt(head_dim) attention scale is folded into Wq and bq here.
    """
    f32, bf16 = jnp.float32, jnp.bfloat16
    D = P['elsa_out_w'].shape[0]
    hd = D // num_heads
    scale = 1.0 / math.sqrt(hd)

    def qkv_pack(in_w, in_b):
        wq, wk, wv = in_w[:D], in_w[D:2 * D], in_w[2 * D:]
        bq, bk, bv = in_b[:D], in_b[D:2 * D], in_b[2 * D:]
        w = jnp.stack([wq.T * scale, wk.T, wv.T], axis=0).astype(bf16)   # (3, D, D)
        b = jnp.stack([bq * scale, bk, bv], axis=0).astype(f32).reshape(3, 1, D)
        return w, b

    def out_pack(out_w):
        # out = concat_h(o_h) @ out_w.T  ==  sum_h o_h @ out_w.T[h*hd:(h+1)*hd, :]
        return jnp.asarray(out_w, f32).T.reshape(num_heads, hd, D).astype(bf16)

    wqkv_e, bqkv_e = qkv_pack(P['elsa_in_w'], P['elsa_in_b'])
    wqkv_s, bqkv_s = qkv_pack(P['sa_in_w'], P['sa_in_b'])

    ln_g = jnp.stack([P['elsa_ln_g'], P['an1_ln_g'], P['sa_ln_g'],
                      P['an2_ln_g'], P['ffn_ln_g']], 0).astype(f32).reshape(5, 1, D)
    ln_b = jnp.stack([P['elsa_ln_b'], P['an1_ln_b'], P['sa_ln_b'],
                      P['an2_ln_b'], P['ffn_ln_b']], 0).astype(f32).reshape(5, 1, D)

    return dict(
        wqkv_e=wqkv_e, bqkv_e=bqkv_e,
        wo_e=out_pack(P['elsa_out_w']),
        bo_e=jnp.asarray(P['elsa_out_b'], f32)[None, :],
        wqkv_s=wqkv_s, bqkv_s=bqkv_s,
        wo_s=out_pack(P['sa_out_w']),
        bo_s=jnp.asarray(P['sa_out_b'], f32)[None, :],
        w1=jnp.asarray(P['ffn_w1'], f32).T.astype(bf16),
        b1=jnp.asarray(P['ffn_b1'], f32)[None, :],
        w2=jnp.asarray(P['ffn_w2'], f32).T.astype(bf16),
        b2=jnp.asarray(P['ffn_b2'], f32)[None, :],
        ln_g=ln_g, ln_b=ln_b)


def refinement_compensator(x_sbd, packed, *, num_heads, num_repeats=1, eps=1e-5):
    """x_sbd: (S, B, D) seq-first, like the PyTorch module."""
    S, B, D = x_sbd.shape
    assert D % num_heads == 0
    hd = D // num_heads
    F = packed['w1'].shape[1]
    # TODO(synk): if the caller can supply batch-major (B,S,D) activations this
    # transpose (one extra HBM pass) disappears entirely; input dtype is passed
    # through untouched and upcast inside the kernel.
    x_bsd = jnp.transpose(x_sbd, (1, 0, 2))

    kernel = functools.partial(_refinement_kernel, num_heads=num_heads,
                               num_repeats=num_repeats, eps=eps)

    def const_spec(shape):
        nd = len(shape)
        # Constant index_map => fetched once for the whole batch grid; single
        # buffering halves the resident weight VMEM.
        return pl.BlockSpec(shape, lambda b, _n=nd: (0,) * _n,
                            pipeline_mode=pl.Buffered(1))

    # advisory cost estimate for XLA's scheduler
    mha_flops = 8 * S * D * D + 4 * S * S * D
    ffn_flops = 4 * S * D * F
    flops = B * (mha_flops + num_repeats * (mha_flops + ffn_flops))
    transcendentals = B * num_heads * S * S * (1 + num_repeats)
    weight_bytes = (2 * (2 * 3 * D * D + 2 * D * D + 2 * D * F)      # bf16 weights
                    + 4 * (2 * 3 * D + 2 * D + F + D + 10 * D))      # f32 biases/LN
    bytes_accessed = x_bsd.dtype.itemsize * B * S * D + 4 * B * S * D + weight_bytes

    out = pl.pallas_call(
        kernel,
        out_shape=jax.ShapeDtypeStruct((B, S, D), jnp.float32),
        grid_spec=pltpu.PrefetchScalarGridSpec(
            num_scalar_prefetch=0,
            grid=(B,),
            in_specs=[
                pl.BlockSpec((1, S, D), lambda b: (b, 0, 0)),           # x (per batch)
                const_spec((3, D, D)), const_spec((3, 1, D)),           # ELSA q/k/v proj
                const_spec((num_heads, hd, D)), const_spec((1, D)),     # ELSA out proj
                const_spec((3, D, D)), const_spec((3, 1, D)),           # SA q/k/v proj
                const_spec((num_heads, hd, D)), const_spec((1, D)),     # SA out proj
                const_spec((D, F)), const_spec((1, F)),                 # FFN linear1
                const_spec((F, D)), const_spec((1, D)),                 # FFN linear2
                const_spec((5, 1, D)), const_spec((5, 1, D)),           # 5x LN gamma/beta
            ],
            out_specs=pl.BlockSpec((1, S, D), lambda b: (b, 0, 0)),
        ),
        compiler_params=pltpu.CompilerParams(
            dimension_semantics=("parallel",),
            # v5e's scoped default is only 16 MiB; re-derive per generation
            # (v7x physical VMEM is 64 MiB).
            vmem_limit_bytes=64 * 1024 * 1024),
        cost_estimate=pl.CostEstimate(flops=int(flops),
                                      transcendentals=int(transcendentals),
                                      bytes_accessed=int(bytes_accessed)),
    )(x_bsd,
      packed['wqkv_e'], packed['bqkv_e'], packed['wo_e'], packed['bo_e'],
      packed['wqkv_s'], packed['bqkv_s'], packed['wo_s'], packed['bo_s'],
      packed['w1'], packed['b1'], packed['w2'], packed['b2'],
      packed['ln_g'], packed['ln_b'])

    return jnp.transpose(out, (1, 0, 2))           # back to (S, B, D)


def _reference(x_sbd, P, *, num_heads, num_repeats=1, eps=1e-5):
    """Pure-JAX f32 reference mirroring the PyTorch forward (eval mode)."""
    hp = jax.lax.Precision.HIGHEST

    def ln(v, g, b):
        m = jnp.mean(v, axis=-1, keepdims=True)
        c = v - m
        var = jnp.mean(c * c, axis=-1, keepdims=True)
        return c * jax.lax.rsqrt(var + eps) * g + b

    def mha(v, in_w, in_b, out_w, out_b):
        B, S, D = v.shape
        hd = D // num_heads
        qkv = jnp.einsum('bsd,ed->bse', v, in_w, precision=hp) + in_b
        q, k, w = qkv[..., :D], qkv[..., D:2 * D], qkv[..., 2 * D:]

        def split(t):
            return t.reshape(B, S, num_heads, hd).transpose(0, 2, 1, 3)

        q, k, w = split(q) / math.sqrt(hd), split(k), split(w)
        s = jnp.einsum('bhqd,bhkd->bhqk', q, k, precision=hp)
        p = jax.nn.softmax(s, axis=-1)
        o = jnp.einsum('bhqk,bhkd->bhqd', p, w, precision=hp)
        o = o.transpose(0, 2, 1, 3).reshape(B, S, D)
        return jnp.einsum('bsd,ed->bse', o, out_w, precision=hp) + out_b

    x = jnp.transpose(x_sbd, (1, 0, 2)).astype(jnp.float32)
    x = ln(x + mha(x, P['elsa_in_w'], P['elsa_in_b'], P['elsa_out_w'], P['elsa_out_b']),
           P['elsa_ln_g'], P['elsa_ln_b'])
    for _ in range(num_repeats):
        y = ln(x, P['an1_ln_g'], P['an1_ln_b'])
        y = ln(y + mha(y, P['sa_in_w'], P['sa_in_b'], P['sa_out_w'], P['sa_out_b']),
               P['sa_ln_g'], P['sa_ln_b'])
        x = x + y
        y = ln(x, P['an2_ln_g'], P['an2_ln_b'])
        h = jax.nn.relu(jnp.einsum('bsd,fd->bsf', y, P['ffn_w1'], precision=hp)
                        + P['ffn_b1'])
        f = jnp.einsum('bsf,df->bsd', h, P['ffn_w2'], precision=hp) + P['ffn_b2']
        y = ln(y + f, P['ffn_ln_g'], P['ffn_ln_b'])
        x = x + y
    return jnp.transpose(x, (1, 0, 2))


if __name__ == "__main__":
    S, B, D, H, F = 8, 2, 32, 4, 64
    NUM_REPEATS = 1

    key = jax.random.PRNGKey(0)
    ks = list(jax.random.split(key, 24))

    def u(k, shape, bound):
        return jax.random.uniform(k, shape, jnp.float32, -bound, bound)

    bd = 1.0 / math.sqrt(D)
    bf = 1.0 / math.sqrt(F)

    x = jax.random.normal(ks[0], (S, B, D), dtype=jnp.float32)

    P = {
        'elsa_in_w': u(ks[1], (3 * D, D), bd), 'elsa_in_b': u(ks[2], (3 * D,), bd),
        'elsa_out_w': u(ks[3], (D, D), bd),    'elsa_out_b': u(ks[4], (D,), bd),
        'elsa_ln_g': 1.0 + 0.05 * jax.random.normal(ks[5], (D,), jnp.float32),
        'elsa_ln_b': 0.05 * jax.random.normal(ks[6], (D,), jnp.float32),
        'an1_ln_g': 1.0 + 0.05 * jax.random.normal(ks[7], (D,), jnp.float32),
        'an1_ln_b': 0.05 * jax.random.normal(ks[8], (D,), jnp.float32),
        'sa_in_w': u(ks[9], (3 * D, D), bd),   'sa_in_b': u(ks[10], (3 * D,), bd),
        'sa_out_w': u(ks[11], (D, D), bd),     'sa_out_b': u(ks[12], (D,), bd),
        'sa_ln_g': 1.0 + 0.05 * jax.random.normal(ks[13], (D,), jnp.float32),
        'sa_ln_b': 0.05 * jax.random.normal(ks[14], (D,), jnp.float32),
        'an2_ln_g': 1.0 + 0.05 * jax.random.normal(ks[15], (D,), jnp.float32),
        'an2_ln_b': 0.05 * jax.random.normal(ks[16], (D,), jnp.float32),
        'ffn_w1': u(ks[17], (F, D), bd), 'ffn_b1': u(ks[18], (F,), bd),
        'ffn_w2': u(ks[19], (D, F), bf), 'ffn_b2': u(ks[20], (D,), bf),
        'ffn_ln_g': 1.0 + 0.05 * jax.random.normal(ks[21], (D,), jnp.float32),
        'ffn_ln_b': 0.05 * jax.random.normal(ks[22], (D,), jnp.float32),
    }

    packed = pack_params(P, num_heads=H)   # one-time repack (bf16 weights, scale folded)

    out = refinement_compensator(x, packed, num_heads=H, num_repeats=NUM_REPEATS)
    out = jax.block_until_ready(out)

    ref = _reference(x, P, num_heads=H, num_repeats=NUM_REPEATS)
    assert out.shape == (S, B, D)
    err = float(jnp.max(jnp.abs(out - ref)))
    # bf16 MXU operands (f32 accumulation, f32 LayerNorm/residuals) vs. an f32
    # HIGHEST-precision reference -> tolerance loosened accordingly.
    assert jnp.allclose(out, ref, atol=3e-2, rtol=3e-2), f"max abs err {err}"

    print("KERNEL_OK")
</pallas_src>

<mosaic_0001>
module attributes {stable_mosaic.version = 11 : i64} {
  func.func @_refinement_kernel(%arg0: i32, %arg1: memref<1x8x32xf32, #tpu.memory_space<vmem>>, %arg2: memref<3x32x32xbf16, #tpu.memory_space<vmem>>, %arg3: memref<3x1x32xf32, #tpu.memory_space<vmem>>, %arg4: memref<4x8x32xbf16, #tpu.memory_space<vmem>>, %arg5: memref<1x32xf32, #tpu.memory_space<vmem>>, %arg6: memref<3x32x32xbf16, #tpu.memory_space<vmem>>, %arg7: memref<3x1x32xf32, #tpu.memory_space<vmem>>, %arg8: memref<4x8x32xbf16, #tpu.memory_space<vmem>>, %arg9: memref<1x32xf32, #tpu.memory_space<vmem>>, %arg10: memref<32x64xbf16, #tpu.memory_space<vmem>>, %arg11: memref<1x64xf32, #tpu.memory_space<vmem>>, %arg12: memref<64x32xbf16, #tpu.memory_space<vmem>>, %arg13: memref<1x32xf32, #tpu.memory_space<vmem>>, %arg14: memref<5x1x32xf32, #tpu.memory_space<vmem>>, %arg15: memref<5x1x32xf32, #tpu.memory_space<vmem>>, %arg16: memref<1x8x32xf32, #tpu.memory_space<vmem>>) attributes {dimension_semantics = [#tpu.dimension_semantics<parallel>], iteration_bounds = array<i64: 2>, scalar_prefetch = 0 : i64, scratch_operands = 0 : i64, tpu.core_type = #tpu.core_type<tc>, window_params = [{transform_indices = @transform_0, window_bounds = array<i64: 1, 8, 32>}, {pipeline_mode = #tpu.pipeline_mode<synchronous>, transform_indices = @transform_1, window_bounds = array<i64: 3, 32, 32>}, {pipeline_mode = #tpu.pipeline_mode<synchronous>, transform_indices = @transform_2, window_bounds = array<i64: 3, 1, 32>}, {pipeline_mode = #tpu.pipeline_mode<synchronous>, transform_indices = @transform_3, window_bounds = array<i64: 4, 8, 32>}, {pipeline_mode = #tpu.pipeline_mode<synchronous>, transform_indices = @transform_4, window_bounds = array<i64: 1, 32>}, {pipeline_mode = #tpu.pipeline_mode<synchronous>, transform_indices = @transform_5, window_bounds = array<i64: 3, 32, 32>}, {pipeline_mode = #tpu.pipeline_mode<synchronous>, transform_indices = @transform_6, window_bounds = array<i64: 3, 1, 32>}, {pipeline_mode = #tpu.pipeline_mode<synchronous>, transform_indices = @transform_7, window_bounds = array<i64: 4, 8, 32>}, {pipeline_mode = #tpu.pipeline_mode<synchronous>, transform_indices = @transform_8, window_bounds = array<i64: 1, 32>}, {pipeline_mode = #tpu.pipeline_mode<synchronous>, transform_indices = @transform_9, window_bounds = array<i64: 32, 64>}, {pipeline_mode = #tpu.pipeline_mode<synchronous>, transform_indices = @transform_10, window_bounds = array<i64: 1, 64>}, {pipeline_mode = #tpu.pipeline_mode<synchronous>, transform_indices = @transform_11, window_bounds = array<i64: 64, 32>}, {pipeline_mode = #tpu.pipeline_mode<synchronous>, transform_indices = @transform_12, window_bounds = array<i64: 1, 32>}, {pipeline_mode = #tpu.pipeline_mode<synchronous>, transform_indices = @transform_13, window_bounds = array<i64: 5, 1, 32>}, {pipeline_mode = #tpu.pipeline_mode<synchronous>, transform_indices = @transform_14, window_bounds = array<i64: 5, 1, 32>}, {transform_indices = @transform_15, window_bounds = array<i64: 1, 8, 32>}]} {
    %c0 = arith.constant 0 : index
    %c0_0 = arith.constant 0 : index
    %c0_1 = arith.constant 0 : index
    %0 = vector.load %arg1[%c0, %c0_0, %c0_1] : memref<1x8x32xf32, #tpu.memory_space<vmem>>, vector<1x8x32xf32>
    %1 = vector.shape_cast %0 : vector<1x8x32xf32> to vector<8x32xf32>
    %2 = arith.truncf %1 : vector<8x32xf32> to vector<8x32xbf16>
    %c0_2 = arith.constant 0 : index
    %c0_3 = arith.constant 0 : index
    %c0_4 = arith.constant 0 : index
    %3 = vector.load %arg2[%c0_2, %c0_3, %c0_4] : memref<3x32x32xbf16, #tpu.memory_space<vmem>>, vector<1x32x32xbf16>
    %4 = vector.shape_cast %3 : vector<1x32x32xbf16> to vector<32x32xbf16>
    %cst = arith.constant dense<0.000000e+00> : vector<8x32xf32>
    %5 = tpu.matmul %2, %4, %cst {dimension_numbers = #tpu.dot_dimension_numbers<[1], [0], [0], [1], [0, 0, 1, 1], [], []>} : vector<8x32xbf16>, vector<32x32xbf16>, vector<8x32xf32> -> vector<8x32xf32>
    %c0_5 = arith.constant 0 : index
    %c0_6 = arith.constant 0 : index
    %c0_7 = arith.constant 0 : index
    %6 = vector.load %arg3[%c0_5, %c0_6, %c0_7] : memref<3x1x32xf32, #tpu.memory_space<vmem>>, vector<1x1x32xf32>
    %7 = vector.shape_cast %6 : vector<1x1x32xf32> to vector<1x32xf32>
    %8 = vector.broadcast %7 : vector<1x32xf32> to vector<8x32xf32>
    %9 = arith.addf %5, %8 : vector<8x32xf32>
    %c1 = arith.constant 1 : index
    %c0_8 = arith.constant 0 : index
    %c0_9 = arith.constant 0 : index
    %10 = vector.load %arg2[%c1, %c0_8, %c0_9] : memref<3x32x32xbf16, #tpu.memory_space<vmem>>, vector<1x32x32xbf16>
    %11 = vector.shape_cast %10 : vector<1x32x32xbf16> to vector<32x32xbf16>
    %cst_10 = arith.constant dense<0.000000e+00> : vector<8x32xf32>
    %12 = tpu.matmul %2, %11, %cst_10 {dimension_numbers = #tpu.dot_dimension_numbers<[1], [0], [0], [1], [0, 0, 1, 1], [], []>} : vector<8x32xbf16>, vector<32x32xbf16>, vector<8x32xf32> -> vector<8x32xf32>
    %c1_11 = arith.constant 1 : index
    %c0_12 = arith.constant 0 : index
    %c0_13 = arith.constant 0 : index
    %13 = vector.load %arg3[%c1_11, %c0_12, %c0_13] : memref<3x1x32xf32, #tpu.memory_space<vmem>>, vector<1x1x32xf32>
    %14 = vector.shape_cast %13 : vector<1x1x32xf32> to vector<1x32xf32>
    %15 = vector.broadcast %14 : vector<1x32xf32> to vector<8x32xf32>
    %16 = arith.addf %12, %15 : vector<8x32xf32>
    %c2 = arith.constant 2 : index
    %c0_14 = arith.constant 0 : index
    %c0_15 = arith.constant 0 : index
    %17 = vector.load %arg2[%c2, %c0_14, %c0_15] : memref<3x32x32xbf16, #tpu.memory_space<vmem>>, vector<1x32x32xbf16>
    %18 = vector.shape_cast %17 : vector<1x32x32xbf16> to vector<32x32xbf16>
    %cst_16 = arith.constant dense<0.000000e+00> : vector<8x32xf32>
    %19 = tpu.matmul %2, %18, %cst_16 {dimension_numbers = #tpu.dot_dimension_numbers<[1], [0], [0], [1], [0, 0, 1, 1], [], []>} : vector<8x32xbf16>, vector<32x32xbf16>, vector<8x32xf32> -> vector<8x32xf32>
    %c2_17 = arith.constant 2 : index
    %c0_18 = arith.constant 0 : index
    %c0_19 = arith.constant 0 : index
    %20 = vector.load %arg3[%c2_17, %c0_18, %c0_19] : memref<3x1x32xf32, #tpu.memory_space<vmem>>, vector<1x1x32xf32>
    %21 = vector.shape_cast %20 : vector<1x1x32xf32> to vector<1x32xf32>
    %22 = vector.broadcast %21 : vector<1x32xf32> to vector<8x32xf32>
    %23 = arith.addf %19, %22 : vector<8x32xf32>
    %cst_20 = arith.constant 0.000000e+00 : f32
    %24 = vector.broadcast %cst_20 : f32 to vector<8x32xf32>
    %25 = vector.extract_strided_slice %9 {offsets = [0, 0], sizes = [8, 8], strides = [1, 1]} : vector<8x32xf32> to vector<8x8xf32>
    %26 = arith.truncf %25 : vector<8x8xf32> to vector<8x8xbf16>
    %27 = vector.extract_strided_slice %16 {offsets = [0, 0], sizes = [8, 8], strides = [1, 1]} : vector<8x32xf32> to vector<8x8xf32>
    %28 = arith.truncf %27 : vector<8x8xf32> to vector<8x8xbf16>
    %29 = vector.extract_strided_slice %23 {offsets = [0, 0], sizes = [8, 8], strides = [1, 1]} : vector<8x32xf32> to vector<8x8xf32>
    %30 = arith.truncf %29 : vector<8x8xf32> to vector<8x8xbf16>
    %cst_21 = arith.constant dense<0.000000e+00> : vector<8x8xf32>
    %31 = tpu.matmul %26, %28, %cst_21 {dimension_numbers = #tpu.dot_dimension_numbers<[1], [1], [0], [0], [0, 0, 1, 0], [], []>} : vector<8x8xbf16>, vector<8x8xbf16>, vector<8x8xf32> -> vector<8x8xf32>
    %cst_22 = arith.constant dense<0xFF800000> : vector<8xf32>
    %32 = vector.multi_reduction <maximumf>, %31, %cst_22 [1] : vector<8x8xf32> to vector<8xf32>
    %33 = vector.shape_cast %32 : vector<8xf32> to vector<8x1xf32>
    %34 = vector.broadcast %33 : vector<8x1xf32> to vector<8x8xf32>
    %35 = arith.subf %31, %34 : vector<8x8xf32>
    %36 = math.exp %35 : vector<8x8xf32>
    %cst_23 = arith.constant dense<0.000000e+00> : vector<8xf32>
    %37 = vector.multi_reduction <add>, %36, %cst_23 [1] : vector<8x8xf32> to vector<8xf32>
    %38 = vector.shape_cast %37 : vector<8xf32> to vector<8x1xf32>
    %39 = tpu.reciprocal %38 {approx = true} : vector<8x1xf32> -> vector<8x1xf32>
    %40 = arith.truncf %36 : vector<8x8xf32> to vector<8x8xbf16>
    %cst_24 = arith.constant dense<0.000000e+00> : vector<8x8xf32>
    %41 = tpu.matmul %40, %30, %cst_24 {dimension_numbers = #tpu.dot_dimension_numbers<[1], [0], [0], [1], [0, 0, 1, 1], [], []>} : vector<8x8xbf16>, vector<8x8xbf16>, vector<8x8xf32> -> vector<8x8xf32>
    %42 = vector.broadcast %39 : vector<8x1xf32> to vector<8x8xf32>
    %43 = arith.mulf %41, %42 : vector<8x8xf32>
    %44 = arith.truncf %43 : vector<8x8xf32> to vector<8x8xbf16>
    %c0_25 = arith.constant 0 : index
    %c0_26 = arith.constant 0 : index
    %c0_27 = arith.constant 0 : index
    %45 = vector.load %arg4[%c0_25, %c0_26, %c0_27] : memref<4x8x32xbf16, #tpu.memory_space<vmem>>, vector<1x8x32xbf16>
    %46 = vector.shape_cast %45 : vector<1x8x32xbf16> to vector<8x32xbf16>
    %cst_28 = arith.constant dense<0.000000e+00> : vector<8x32xf32>
    %47 = tpu.matmul %44, %46, %cst_28 {dimension_numbers = #tpu.dot_dimension_numbers<[1], [0], [0], [1], [0, 0, 1, 1], [], []>} : vector<8x8xbf16>, vector<8x32xbf16>, vector<8x32xf32> -> vector<8x32xf32>
    %48 = arith.addf %24, %47 : vector<8x32xf32>
    %49 = vector.extract_strided_slice %9 {offsets = [0, 8], sizes = [8, 8], strides = [1, 1]} : vector<8x32xf32> to vector<8x8xf32>
    %50 = arith.truncf %49 : vector<8x8xf32> to vector<8x8xbf16>
    %51 = vector.extract_strided_slice %16 {offsets = [0, 8], sizes = [8, 8], strides = [1, 1]} : vector<8x32xf32> to vector<8x8xf32>
    %52 = arith.truncf %51 : vector<8x8xf32> to vector<8x8xbf16>
    %53 = vector.extract_strided_slice %23 {offsets = [0, 8], sizes = [8, 8], strides = [1, 1]} : vector<8x32xf32> to vector<8x8xf32>
    %54 = arith.truncf %53 : vector<8x8xf32> to vector<8x8xbf16>
    %cst_29 = arith.constant dense<0.000000e+00> : vector<8x8xf32>
    %55 = tpu.matmul %50, %52, %cst_29 {dimension_numbers = #tpu.dot_dimension_numbers<[1], [1], [0], [0], [0, 0, 1, 0], [], []>} : vector<8x8xbf16>, vector<8x8xbf16>, vector<8x8xf32> -> vector<8x8xf32>
    %cst_30 = arith.constant dense<0xFF800000> : vector<8xf32>
    %56 = vector.multi_reduction <maximumf>, %55, %cst_30 [1] : vector<8x8xf32> to vector<8xf32>
    %57 = vector.shape_cast %56 : vector<8xf32> to vector<8x1xf32>
    %58 = vector.broadcast %57 : vector<8x1xf32> to vector<8x8xf32>
    %59 = arith.subf %55, %58 : vector<8x8xf32>
    %60 = math.exp %59 : vector<8x8xf32>
    %cst_31 = arith.constant dense<0.000000e+00> : vector<8xf32>
    %61 = vector.multi_reduction <add>, %60, %cst_31 [1] : vector<8x8xf32> to vector<8xf32>
    %62 = vector.shape_cast %61 : vector<8xf32> to vector<8x1xf32>
    %63 = tpu.reciprocal %62 {approx = true} : vector<8x1xf32> -> vector<8x1xf32>
    %64 = arith.truncf %60 : vector<8x8xf32> to vector<8x8xbf16>
    %cst_32 = arith.constant dense<0.000000e+00> : vector<8x8xf32>
    %65 = tpu.matmul %64, %54, %cst_32 {dimension_numbers = #tpu.dot_dimension_numbers<[1], [0], [0], [1], [0, 0, 1, 1], [], []>} : vector<8x8xbf16>, vector<8x8xbf16>, vector<8x8xf32> -> vector<8x8xf32>
    %66 = vector.broadcast %63 : vector<8x1xf32> to vector<8x8xf32>
    %67 = arith.mulf %65, %66 : vector<8x8xf32>
    %68 = arith.truncf %67 : vector<8x8xf32> to vector<8x8xbf16>
    %c1_33 = arith.constant 1 : index
    %c0_34 = arith.constant 0 : index
    %c0_35 = arith.constant 0 : index
    %69 = vector.load %arg4[%c1_33, %c0_34, %c0_35] : memref<4x8x32xbf16, #tpu.memory_space<vmem>>, vector<1x8x32xbf16>
    %70 = vector.shape_cast %69 : vector<1x8x32xbf16> to vector<8x32xbf16>
    %cst_36 = arith.constant dense<0.000000e+00> : vector<8x32xf32>
    %71 = tpu.matmul %68, %70, %cst_36 {dimension_numbers = #tpu.dot_dimension_numbers<[1], [0], [0], [1], [0, 0, 1, 1], [], []>} : vector<8x8xbf16>, vector<8x32xbf16>, vector<8x32xf32> -> vector<8x32xf32>
    %72 = arith.addf %48, %71 : vector<8x32xf32>
    %73 = vector.extract_strided_slice %9 {offsets = [0, 16], sizes = [8, 8], strides = [1, 1]} : vector<8x32xf32> to vector<8x8xf32>
    %74 = arith.truncf %73 : vector<8x8xf32> to vector<8x8xbf16>
    %75 = vector.extract_strided_slice %16 {offsets = [0, 16], sizes = [8, 8], strides = [1, 1]} : vector<8x32xf32> to vector<8x8xf32>
    %76 = arith.truncf %75 : vector<8x8xf32> to vector<8x8xbf16>
    %77 = vector.extract_strided_slice %23 {offsets = [0, 16], sizes = [8, 8], strides = [1, 1]} : vector<8x32xf32> to vector<8x8xf32>
    %78 = arith.truncf %77 : vector<8x8xf32> to vector<8x8xbf16>
    %cst_37 = arith.constant dense<0.000000e+00> : vector<8x8xf32>
    %79 = tpu.matmul %74, %76, %cst_37 {dimension_numbers = #tpu.dot_dimension_numbers<[1], [1], [0], [0], [0, 0, 1, 0], [], []>} : vector<8x8xbf16>, vector<8x8xbf16>, vector<8x8xf32> -> vector<8x8xf32>
    %cst_38 = arith.constant dense<0xFF800000> : vector<8xf32>
    %80 = vector.multi_reduction <maximumf>, %79, %cst_38 [1] : vector<8x8xf32> to vector<8xf32>
    %81 = vector.shape_cast %80 : vector<8xf32> to vector<8x1xf32>
    %82 = vector.broadcast %81 : vector<8x1xf32> to vector<8x8xf32>
    %83 = arith.subf %79, %82 : vector<8x8xf32>
    %84 = math.exp %83 : vector<8x8xf32>
    %cst_39 = arith.constant dense<0.000000e+00> : vector<8xf32>
    %85 = vector.multi_reduction <add>, %84, %cst_39 [1] : vector<8x8xf32> to vector<8xf32>
    %86 = vector.shape_cast %85 : vector<8xf32> to vector<8x1xf32>
    %87 = tpu.reciprocal %86 {approx = true} : vector<8x1xf32> -> vector<8x1xf32>
    %88 = arith.truncf %84 : vector<8x8xf32> to vector<8x8xbf16>
    %cst_40 = arith.constant dense<0.000000e+00> : vector<8x8xf32>
    %89 = tpu.matmul %88, %78, %cst_40 {dimension_numbers = #tpu.dot_dimension_numbers<[1], [0], [0], [1], [0, 0, 1, 1], [], []>} : vector<8x8xbf16>, vector<8x8xbf16>, vector<8x8xf32> -> vector<8x8xf32>
    %90 = vector.broadcast %87 : vector<8x1xf32> to vector<8x8xf32>
    %91 = arith.mulf %89, %90 : vector<8x8xf32>
    %92 = arith.truncf %91 : vector<8x8xf32> to vector<8x8xbf16>
    %c2_41 = arith.constant 2 : index
    %c0_42 = arith.constant 0 : index
    %c0_43 = arith.constant 0 : index
    %93 = vector.load %arg4[%c2_41, %c0_42, %c0_43] : memref<4x8x32xbf16, #tpu.memory_space<vmem>>, vector<1x8x32xbf16>
    %94 = vector.shape_cast %93 : vector<1x8x32xbf16> to vector<8x32xbf16>
    %cst_44 = arith.constant dense<0.000000e+00> : vector<8x32xf32>
    %95 = tpu.matmul %92, %94, %cst_44 {dimension_numbers = #tpu.dot_dimension_numbers<[1], [0], [0], [1], [0, 0, 1, 1], [], []>} : vector<8x8xbf16>, vector<8x32xbf16>, vector<8x32xf32> -> vector<8x32xf32>
    %96 = arith.addf %72, %95 : vector<8x32xf32>
    %97 = vector.extract_strided_slice %9 {offsets = [0, 24], sizes = [8, 8], strides = [1, 1]} : vector<8x32xf32> to vector<8x8xf32>
    %98 = arith.truncf %97 : vector<8x8xf32> to vector<8x8xbf16>
    %99 = vector.extract_strided_slice %16 {offsets = [0, 24], sizes = [8, 8], strides = [1, 1]} : vector<8x32xf32> to vector<8x8xf32>
    %100 = arith.truncf %99 : vector<8x8xf32> to vector<8x8xbf16>
    %101 = vector.extract_strided_slice %23 {offsets = [0, 24], sizes = [8, 8], strides = [1, 1]} : vector<8x32xf32> to vector<8x8xf32>
    %102 = arith.truncf %101 : vector<8x8xf32> to vector<8x8xbf16>
    %cst_45 = arith.constant dense<0.000000e+00> : vector<8x8xf32>
    %103 = tpu.matmul %98, %100, %cst_45 {dimension_numbers = #tpu.dot_dimension_numbers<[1], [1], [0], [0], [0, 0, 1, 0], [], []>} : vector<8x8xbf16>, vector<8x8xbf16>, vector<8x8xf32> -> vector<8x8xf32>
    %cst_46 = arith.constant dense<0xFF800000> : vector<8xf32>
    %104 = vector.multi_reduction <maximumf>, %103, %cst_46 [1] : vector<8x8xf32> to vector<8xf32>
    %105 = vector.shape_cast %104 : vector<8xf32> to vector<8x1xf32>
    %106 = vector.broadcast %105 : vector<8x1xf32> to vector<8x8xf32>
    %107 = arith.subf %103, %106 : vector<8x8xf32>
    %108 = math.exp %107 : vector<8x8xf32>
    %cst_47 = arith.constant dense<0.000000e+00> : vector<8xf32>
    %109 = vector.multi_reduction <add>, %108, %cst_47 [1] : vector<8x8xf32> to vector<8xf32>
    %110 = vector.shape_cast %109 : vector<8xf32> to vector<8x1xf32>
    %111 = tpu.reciprocal %110 {approx = true} : vector<8x1xf32> -> vector<8x1xf32>
    %112 = arith.truncf %108 : vector<8x8xf32> to vector<8x8xbf16>
    %cst_48 = arith.constant dense<0.000000e+00> : vector<8x8xf32>
    %113 = tpu.matmul %112, %102, %cst_48 {dimension_numbers = #tpu.dot_dimension_numbers<[1], [0], [0], [1], [0, 0, 1, 1], [], []>} : vector<8x8xbf16>, vector<8x8xbf16>, vector<8x8xf32> -> vector<8x8xf32>
    %114 = vector.broadcast %111 : vector<8x1xf32> to vector<8x8xf32>
    %115 = arith.mulf %113, %114 : vector<8x8xf32>
    %116 = arith.truncf %115 : vector<8x8xf32> to vector<8x8xbf16>
    %c3 = arith.constant 3 : index
    %c0_49 = arith.constant 0 : index
    %c0_50 = arith.constant 0 : index
    %117 = vector.load %arg4[%c3, %c0_49, %c0_50] : memref<4x8x32xbf16, #tpu.memory_space<vmem>>, vector<1x8x32xbf16>
    %118 = vector.shape_cast %117 : vector<1x8x32xbf16> to vector<8x32xbf16>
    %cst_51 = arith.constant dense<0.000000e+00> : vector<8x32xf32>
    %119 = tpu.matmul %116, %118, %cst_51 {dimension_numbers = #tpu.dot_dimension_numbers<[1], [0], [0], [1], [0, 0, 1, 1], [], []>} : vector<8x8xbf16>, vector<8x32xbf16>, vector<8x32xf32> -> vector<8x32xf32>
    %120 = arith.addf %96, %119 : vector<8x32xf32>
    %c0_52 = arith.constant 0 : index
    %c0_53 = arith.constant 0 : index
    %121 = vector.load %arg5[%c0_52, %c0_53] : memref<1x32xf32, #tpu.memory_space<vmem>>, vector<1x32xf32>
    %122 = vector.broadcast %121 : vector<1x32xf32> to vector<8x32xf32>
    %123 = arith.addf %120, %122 : vector<8x32xf32>
    %124 = arith.addf %1, %123 : vector<8x32xf32>
    %c0_54 = arith.constant 0 : index
    %c0_55 = arith.constant 0 : index
    %c0_56 = arith.constant 0 : index
    %125 = vector.load %arg14[%c0_54, %c0_55, %c0_56] : memref<5x1x32xf32, #tpu.memory_space<vmem>>, vector<1x1x32xf32>
    %126 = vector.shape_cast %125 : vector<1x1x32xf32> to vector<1x32xf32>
    %c0_57 = arith.constant 0 : index
    %c0_58 = arith.constant 0 : index
    %c0_59 = arith.constant 0 : index
    %127 = vector.load %arg15[%c0_57, %c0_58, %c0_59] : memref<5x1x32xf32, #tpu.memory_space<vmem>>, vector<1x1x32xf32>
    %128 = vector.shape_cast %127 : vector<1x1x32xf32> to vector<1x32xf32>
    %cst_60 = arith.constant dense<0.000000e+00> : vector<8xf32>
    %129 = vector.multi_reduction <add>, %124, %cst_60 [1] : vector<8x32xf32> to vector<8xf32>
    %130 = vector.shape_cast %129 : vector<8xf32> to vector<8x1xf32>
    %cst_61 = arith.constant 3.200000e+01 : f32
    %131 = vector.broadcast %cst_61 : f32 to vector<8x1xf32>
    %132 = arith.divf %130, %131 : vector<8x1xf32>
    %133 = vector.broadcast %132 : vector<8x1xf32> to vector<8x32xf32>
    %134 = arith.subf %124, %133 : vector<8x32xf32>
    %135 = arith.mulf %134, %134 : vector<8x32xf32>
    %cst_62 = arith.constant dense<0.000000e+00> : vector<8xf32>
    %136 = vector.multi_reduction <add>, %135, %cst_62 [1] : vector<8x32xf32> to vector<8xf32>
    %137 = vector.shape_cast %136 : vector<8xf32> to vector<8x1xf32>
    %cst_63 = arith.constant 3.200000e+01 : f32
    %138 = vector.broadcast %cst_63 : f32 to vector<8x1xf32>
    %139 = arith.divf %137, %138 : vector<8x1xf32>
    %cst_64 = arith.constant 9.99999974E-6 : f32
    %140 = vector.broadcast %cst_64 : f32 to vector<8x1xf32>
    %141 = arith.addf %139, %140 : vector<8x1xf32>
    %142 = math.rsqrt %141 : vector<8x1xf32>
    %143 = vector.broadcast %142 : vector<8x1xf32> to vector<8x32xf32>
    %144 = arith.mulf %134, %143 : vector<8x32xf32>
    %145 = vector.broadcast %126 : vector<1x32xf32> to vector<8x32xf32>
    %146 = arith.mulf %144, %145 : vector<8x32xf32>
    %147 = vector.broadcast %128 : vector<1x32xf32> to vector<8x32xf32>
    %148 = arith.addf %146, %147 : vector<8x32xf32>
    %c1_65 = arith.constant 1 : index
    %c0_66 = arith.constant 0 : index
    %c0_67 = arith.constant 0 : index
    %149 = vector.load %arg14[%c1_65, %c0_66, %c0_67] : memref<5x1x32xf32, #tpu.memory_space<vmem>>, vector<1x1x32xf32>
    %150 = vector.shape_cast %149 : vector<1x1x32xf32> to vector<1x32xf32>
    %c1_68 = arith.constant 1 : index
    %c0_69 = arith.constant 0 : index
    %c0_70 = arith.constant 0 : index
    %151 = vector.load %arg15[%c1_68, %c0_69, %c0_70] : memref<5x1x32xf32, #tpu.memory_space<vmem>>, vector<1x1x32xf32>
    %152 = vector.shape_cast %151 : vector<1x1x32xf32> to vector<1x32xf32>
    %cst_71 = arith.constant dense<0.000000e+00> : vector<8xf32>
    %153 = vector.multi_reduction <add>, %148, %cst_71 [1] : vector<8x32xf32> to vector<8xf32>
    %154 = vector.shape_cast %153 : vector<8xf32> to vector<8x1xf32>
    %cst_72 = arith.constant 3.200000e+01 : f32
    %155 = vector.broadcast %cst_72 : f32 to vector<8x1xf32>
    %156 = arith.divf %154, %155 : vector<8x1xf32>
    %157 = vector.broadcast %156 : vector<8x1xf32> to vector<8x32xf32>
    %158 = arith.subf %148, %157 : vector<8x32xf32>
    %159 = arith.mulf %158, %158 : vector<8x32xf32>
    %cst_73 = arith.constant dense<0.000000e+00> : vector<8xf32>
    %160 = vector.multi_reduction <add>, %159, %cst_73 [1] : vector<8x32xf32> to vector<8xf32>
    %161 = vector.shape_cast %160 : vector<8xf32> to vector<8x1xf32>
    %cst_74 = arith.constant 3.200000e+01 : f32
    %162 = vector.broadcast %cst_74 : f32 to vector<8x1xf32>
    %163 = arith.divf %161, %162 : vector<8x1xf32>
    %cst_75 = arith.constant 9.99999974E-6 : f32
    %164 = vector.broadcast %cst_75 : f32 to vector<8x1xf32>
    %165 = arith.addf %163, %164 : vector<8x1xf32>
    %166 = math.rsqrt %165 : vector<8x1xf32>
    %167 = vector.broadcast %166 : vector<8x1xf32> to vector<8x32xf32>
    %168 = arith.mulf %158, %167 : vector<8x32xf32>
    %169 = vector.broadcast %150 : vector<1x32xf32> to vector<8x32xf32>
    %170 = arith.mulf %168, %169 : vector<8x32xf32>
    %171 = vector.broadcast %152 : vector<1x32xf32> to vector<8x32xf32>
    %172 = arith.addf %170, %171 : vector<8x32xf32>
    %173 = arith.truncf %172 : vector<8x32xf32> to vector<8x32xbf16>
    %c0_76 = arith.constant 0 : index
    %c0_77 = arith.constant 0 : index
    %c0_78 = arith.constant 0 : index
    %174 = vector.load %arg6[%c0_76, %c0_77, %c0_78] : memref<3x32x32xbf16, #tpu.memory_space<vmem>>, vector<1x32x32xbf16>
    %175 = vector.shape_cast %174 : vector<1x32x32xbf16> to vector<32x32xbf16>
    %cst_79 = arith.constant dense<0.000000e+00> : vector<8x32xf32>
    %176 = tpu.matmul %173, %175, %cst_79 {dimension_numbers = #tpu.dot_dimension_numbers<[1], [0], [0], [1], [0, 0, 1, 1], [], []>} : vector<8x32xbf16>, vector<32x32xbf16>, vector<8x32xf32> -> vector<8x32xf32>
    %c0_80 = arith.constant 0 : index
    %c0_81 = arith.constant 0 : index
    %c0_82 = arith.constant 0 : index
    %177 = vector.load %arg7[%c0_80, %c0_81, %c0_82] : memref<3x1x32xf32, #tpu.memory_space<vmem>>, vector<1x1x32xf32>
    %178 = vector.shape_cast %177 : vector<1x1x32xf32> to vector<1x32xf32>
    %179 = vector.broadcast %178 : vector<1x32xf32> to vector<8x32xf32>
    %180 = arith.addf %176, %179 : vector<8x32xf32>
    %c1_83 = arith.constant 1 : index
    %c0_84 = arith.constant 0 : index
    %c0_85 = arith.constant 0 : index
    %181 = vector.load %arg6[%c1_83, %c0_84, %c0_85] : memref<3x32x32xbf16, #tpu.memory_space<vmem>>, vector<1x32x32xbf16>
    %182 = vector.shape_cast %181 : vector<1x32x32xbf16> to vector<32x32xbf16>
    %cst_86 = arith.constant dense<0.000000e+00> : vector<8x32xf32>
    %183 = tpu.matmul %173, %182, %cst_86 {dimension_numbers = #tpu.dot_dimension_numbers<[1], [0], [0], [1], [0, 0, 1, 1], [], []>} : vector<8x32xbf16>, vector<32x32xbf16>, vector<8x32xf32> -> vector<8x32xf32>
    %c1_87 = arith.constant 1 : index
    %c0_88 = arith.constant 0 : index
    %c0_89 = arith.constant 0 : index
    %184 = vector.load %arg7[%c1_87, %c0_88, %c0_89] : memref<3x1x32xf32, #tpu.memory_space<vmem>>, vector<1x1x32xf32>
    %185 = vector.shape_cast %184 : vector<1x1x32xf32> to vector<1x32xf32>
    %186 = vector.broadcast %185 : vector<1x32xf32> to vector<8x32xf32>
    %187 = arith.addf %183, %186 : vector<8x32xf32>
    %c2_90 = arith.constant 2 : index
    %c0_91 = arith.constant 0 : index
    %c0_92 = arith.constant 0 : index
    %188 = vector.load %arg6[%c2_90, %c0_91, %c0_92] : memref<3x32x32xbf16, #tpu.memory_space<vmem>>, vector<1x32x32xbf16>
    %189 = vector.shape_cast %188 : vector<1x32x32xbf16> to vector<32x32xbf16>
    %cst_93 = arith.constant dense<0.000000e+00> : vector<8x32xf32>
    %190 = tpu.matmul %173, %189, %cst_93 {dimension_numbers = #tpu.dot_dimension_numbers<[1], [0], [0], [1], [0, 0, 1, 1], [], []>} : vector<8x32xbf16>, vector<32x32xbf16>, vector<8x32xf32> -> vector<8x32xf32>
    %c2_94 = arith.constant 2 : index
    %c0_95 = arith.constant 0 : index
    %c0_96 = arith.constant 0 : index
    %191 = vector.load %arg7[%c2_94, %c0_95, %c0_96] : memref<3x1x32xf32, #tpu.memory_space<vmem>>, vector<1x1x32xf32>
    %192 = vector.shape_cast %191 : vector<1x1x32xf32> to vector<1x32xf32>
    %193 = vector.broadcast %192 : vector<1x32xf32> to vector<8x32xf32>
    %194 = arith.addf %190, %193 : vector<8x32xf32>
    %cst_97 = arith.constant 0.000000e+00 : f32
    %195 = vector.broadcast %cst_97 : f32 to vector<8x32xf32>
    %196 = vector.extract_strided_slice %180 {offsets = [0, 0], sizes = [8, 8], strides = [1, 1]} : vector<8x32xf32> to vector<8x8xf32>
    %197 = arith.truncf %196 : vector<8x8xf32> to vector<8x8xbf16>
    %198 = vector.extract_strided_slice %187 {offsets = [0, 0], sizes = [8, 8], strides = [1, 1]} : vector<8x32xf32> to vector<8x8xf32>
    %199 = arith.truncf %198 : vector<8x8xf32> to vector<8x8xbf16>
    %200 = vector.extract_strided_slice %194 {offsets = [0, 0], sizes = [8, 8], strides = [1, 1]} : vector<8x32xf32> to vector<8x8xf32>
    %201 = arith.truncf %200 : vector<8x8xf32> to vector<8x8xbf16>
    %cst_98 = arith.constant dense<0.000000e+00> : vector<8x8xf32>
    %202 = tpu.matmul %197, %199, %cst_98 {dimension_numbers = #tpu.dot_dimension_numbers<[1], [1], [0], [0], [0, 0, 1, 0], [], []>} : vector<8x8xbf16>, vector<8x8xbf16>, vector<8x8xf32> -> vector<8x8xf32>
    %cst_99 = arith.constant dense<0xFF800000> : vector<8xf32>
    %203 = vector.multi_reduction <maximumf>, %202, %cst_99 [1] : vector<8x8xf32> to vector<8xf32>
    %204 = vector.shape_cast %203 : vector<8xf32> to vector<8x1xf32>
    %205 = vector.broadcast %204 : vector<8x1xf32> to vector<8x8xf32>
    %206 = arith.subf %202, %205 : vector<8x8xf32>
    %207 = math.exp %206 : vector<8x8xf32>
    %cst_100 = arith.constant dense<0.000000e+00> : vector<8xf32>
    %208 = vector.multi_reduction <add>, %207, %cst_100 [1] : vector<8x8xf32> to vector<8xf32>
    %209 = vector.shape_cast %208 : vector<8xf32> to vector<8x1xf32>
    %210 = tpu.reciprocal %209 {approx = true} : vector<8x1xf32> -> vector<8x1xf32>
    %211 = arith.truncf %207 : vector<8x8xf32> to vector<8x8xbf16>
    %cst_101 = arith.constant dense<0.000000e+00> : vector<8x8xf32>
    %212 = tpu.matmul %211, %201, %cst_101 {dimension_numbers = #tpu.dot_dimension_numbers<[1], [0], [0], [1], [0, 0, 1, 1], [], []>} : vector<8x8xbf16>, vector<8x8xbf16>, vector<8x8xf32> -> vector<8x8xf32>
    %213 = vector.broadcast %210 : vector<8x1xf32> to vector<8x8xf32>
    %214 = arith.mulf %212, %213 : vector<8x8xf32>
    %215 = arith.truncf %214 : vector<8x8xf32> to vector<8x8xbf16>
    %c0_102 = arith.constant 0 : index
    %c0_103 = arith.constant 0 : index
    %c0_104 = arith.constant 0 : index
    %216 = vector.load %arg8[%c0_102, %c0_103, %c0_104] : memref<4x8x32xbf16, #tpu.memory_space<vmem>>, vector<1x8x32xbf16>
    %217 = vector.shape_cast %216 : vector<1x8x32xbf16> to vector<8x32xbf16>
    %cst_105 = arith.constant dense<0.000000e+00> : vector<8x32xf32>
    %218 = tpu.matmul %215, %217, %cst_105 {dimension_numbers = #tpu.dot_dimension_numbers<[1], [0], [0], [1], [0, 0, 1, 1], [], []>} : vector<8x8xbf16>, vector<8x32xbf16>, vector<8x32xf32> -> vector<8x32xf32>
    %219 = arith.addf %195, %218 : vector<8x32xf32>
    %220 = vector.extract_strided_slice %180 {offsets = [0, 8], sizes = [8, 8], strides = [1, 1]} : vector<8x32xf32> to vector<8x8xf32>
    %221 = arith.truncf %220 : vector<8x8xf32> to vector<8x8xbf16>
    %222 = vector.extract_strided_slice %187 {offsets = [0, 8], sizes = [8, 8], strides = [1, 1]} : vector<8x32xf32> to vector<8x8xf32>
    %223 = arith.truncf %222 : vector<8x8xf32> to vector<8x8xbf16>
    %224 = vector.extract_strided_slice %194 {offsets = [0, 8], sizes = [8, 8], strides = [1, 1]} : vector<8x32xf32> to vector<8x8xf32>
    %225 = arith.truncf %224 : vector<8x8xf32> to vector<8x8xbf16>
    %cst_106 = arith.constant dense<0.000000e+00> : vector<8x8xf32>
    %226 = tpu.matmul %221, %223, %cst_106 {dimension_numbers = #tpu.dot_dimension_numbers<[1], [1], [0], [0], [0, 0, 1, 0], [], []>} : vector<8x8xbf16>, vector<8x8xbf16>, vector<8x8xf32> -> vector<8x8xf32>
    %cst_107 = arith.constant dense<0xFF800000> : vector<8xf32>
    %227 = vector.multi_reduction <maximumf>, %226, %cst_107 [1] : vector<8x8xf32> to vector<8xf32>
    %228 = vector.shape_cast %227 : vector<8xf32> to vector<8x1xf32>
    %229 = vector.broadcast %228 : vector<8x1xf32> to vector<8x8xf32>
    %230 = arith.subf %226, %229 : vector<8x8xf32>
    %231 = math.exp %230 : vector<8x8xf32>
    %cst_108 = arith.constant dense<0.000000e+00> : vector<8xf32>
    %232 = vector.multi_reduction <add>, %231, %cst_108 [1] : vector<8x8xf32> to vector<8xf32>
    %233 = vector.shape_cast %232 : vector<8xf32> to vector<8x1xf32>
    %234 = tpu.reciprocal %233 {approx = true} : vector<8x1xf32> -> vector<8x1xf32>
    %235 = arith.truncf %231 : vector<8x8xf32> to vector<8x8xbf16>
    %cst_109 = arith.constant dense<0.000000e+00> : vector<8x8xf32>
    %236 = tpu.matmul %235, %225, %cst_109 {dimension_numbers = #tpu.dot_dimension_numbers<[1], [0], [0], [1], [0, 0, 1, 1], [], []>} : vector<8x8xbf16>, vector<8x8xbf16>, vector<8x8xf32> -> vector<8x8xf32>
    %237 = vector.broadcast %234 : vector<8x1xf32> to vector<8x8xf32>
    %238 = arith.mulf %236, %237 : vector<8x8xf32>
    %239 = arith.truncf %238 : vector<8x8xf32> to vector<8x8xbf16>
    %c1_110 = arith.constant 1 : index
    %c0_111 = arith.constant 0 : index
    %c0_112 = arith.constant 0 : index
    %240 = vector.load %arg8[%c1_110, %c0_111, %c0_112] : memref<4x8x32xbf16, #tpu.memory_space<vmem>>, vector<1x8x32xbf16>
    %241 = vector.shape_cast %240 : vector<1x8x32xbf16> to vector<8x32xbf16>
    %cst_113 = arith.constant dense<0.000000e+00> : vector<8x32xf32>
    %242 = tpu.matmul %239, %241, %cst_113 {dimension_numbers = #tpu.dot_dimension_numbers<[1], [0], [0], [1], [0, 0, 1, 1], [], []>} : vector<8x8xbf16>, vector<8x32xbf16>, vector<8x32xf32> -> vector<8x32xf32>
    %243 = arith.addf %219, %242 : vector<8x32xf32>
    %244 = vector.extract_strided_slice %180 {offsets = [0, 16], sizes = [8, 8], strides = [1, 1]} : vector<8x32xf32> to vector<8x8xf32>
    %245 = arith.truncf %244 : vector<8x8xf32> to vector<8x8xbf16>
    %246 = vector.extract_strided_slice %187 {offsets = [0, 16], sizes = [8, 8], strides = [1, 1]} : vector<8x32xf32> to vector<8x8xf32>
    %247 = arith.truncf %246 : vector<8x8xf32> to vector<8x8xbf16>
    %248 = vector.extract_strided_slice %194 {offsets = [0, 16], sizes = [8, 8], strides = [1, 1]} : vector<8x32xf32> to vector<8x8xf32>
    %249 = arith.truncf %248 : vector<8x8xf32> to vector<8x8xbf16>
    %cst_114 = arith.constant dense<0.000000e+00> : vector<8x8xf32>
    %250 = tpu.matmul %245, %247, %cst_114 {dimension_numbers = #tpu.dot_dimension_numbers<[1], [1], [0], [0], [0, 0, 1, 0], [], []>} : vector<8x8xbf16>, vector<8x8xbf16>, vector<8x8xf32> -> vector<8x8xf32>
    %cst_115 = arith.constant dense<0xFF800000> : vector<8xf32>
    %251 = vector.multi_reduction <maximumf>, %250, %cst_115 [1] : vector<8x8xf32> to vector<8xf32>
    %252 = vector.shape_cast %251 : vector<8xf32> to vector<8x1xf32>
    %253 = vector.broadcast %252 : vector<8x1xf32> to vector<8x8xf32>
    %254 = arith.subf %250, %253 : vector<8x8xf32>
    %255 = math.exp %254 : vector<8x8xf32>
    %cst_116 = arith.constant dense<0.000000e+00> : vector<8xf32>
    %256 = vector.multi_reduction <add>, %255, %cst_116 [1] : vector<8x8xf32> to vector<8xf32>
    %257 = vector.shape_cast %256 : vector<8xf32> to vector<8x1xf32>
    %258 = tpu.reciprocal %257 {approx = true} : vector<8x1xf32> -> vector<8x1xf32>
    %259 = arith.truncf %255 : vector<8x8xf32> to vector<8x8xbf16>
    %cst_117 = arith.constant dense<0.000000e+00> : vector<8x8xf32>
    %260 = tpu.matmul %259, %249, %cst_117 {dimension_numbers = #tpu.dot_dimension_numbers<[1], [0], [0], [1], [0, 0, 1, 1], [], []>} : vector<8x8xbf16>, vector<8x8xbf16>, vector<8x8xf32> -> vector<8x8xf32>
    %261 = vector.broadcast %258 : vector<8x1xf32> to vector<8x8xf32>
    %262 = arith.mulf %260, %261 : vector<8x8xf32>
    %263 = arith.truncf %262 : vector<8x8xf32> to vector<8x8xbf16>
    %c2_118 = arith.constant 2 : index
    %c0_119 = arith.constant 0 : index
    %c0_120 = arith.constant 0 : index
    %264 = vector.load %arg8[%c2_118, %c0_119, %c0_120] : memref<4x8x32xbf16, #tpu.memory_space<vmem>>, vector<1x8x32xbf16>
    %265 = vector.shape_cast %264 : vector<1x8x32xbf16> to vector<8x32xbf16>
    %cst_121 = arith.constant dense<0.000000e+00> : vector<8x32xf32>
    %266 = tpu.matmul %263, %265, %cst_121 {dimension_numbers = #tpu.dot_dimension_numbers<[1], [0], [0], [1], [0, 0, 1, 1], [], []>} : vector<8x8xbf16>, vector<8x32xbf16>, vector<8x32xf32> -> vector<8x32xf32>
    %267 = arith.addf %243, %266 : vector<8x32xf32>
    %268 = vector.extract_strided_slice %180 {offsets = [0, 24], sizes = [8, 8], strides = [1, 1]} : vector<8x32xf32> to vector<8x8xf32>
    %269 = arith.truncf %268 : vector<8x8xf32> to vector<8x8xbf16>
    %270 = vector.extract_strided_slice %187 {offsets = [0, 24], sizes = [8, 8], strides = [1, 1]} : vector<8x32xf32> to vector<8x8xf32>
    %271 = arith.truncf %270 : vector<8x8xf32> to vector<8x8xbf16>
    %272 = vector.extract_strided_slice %194 {offsets = [0, 24], sizes = [8, 8], strides = [1, 1]} : vector<8x32xf32> to vector<8x8xf32>
    %273 = arith.truncf %272 : vector<8x8xf32> to vector<8x8xbf16>
    %cst_122 = arith.constant dense<0.000000e+00> : vector<8x8xf32>
    %274 = tpu.matmul %269, %271, %cst_122 {dimension_numbers = #tpu.dot_dimension_numbers<[1], [1], [0], [0], [0, 0, 1, 0], [], []>} : vector<8x8xbf16>, vector<8x8xbf16>, vector<8x8xf32> -> vector<8x8xf32>
    %cst_123 = arith.constant dense<0xFF800000> : vector<8xf32>
    %275 = vector.multi_reduction <maximumf>, %274, %cst_123 [1] : vector<8x8xf32> to vector<8xf32>
    %276 = vector.shape_cast %275 : vector<8xf32> to vector<8x1xf32>
    %277 = vector.broadcast %276 : vector<8x1xf32> to vector<8x8xf32>
    %278 = arith.subf %274, %277 : vector<8x8xf32>
    %279 = math.exp %278 : vector<8x8xf32>
    %cst_124 = arith.constant dense<0.000000e+00> : vector<8xf32>
    %280 = vector.multi_reduction <add>, %279, %cst_124 [1] : vector<8x8xf32> to vector<8xf32>
    %281 = vector.shape_cast %280 : vector<8xf32> to vector<8x1xf32>
    %282 = tpu.reciprocal %281 {approx = true} : vector<8x1xf32> -> vector<8x1xf32>
    %283 = arith.truncf %279 : vector<8x8xf32> to vector<8x8xbf16>
    %cst_125 = arith.constant dense<0.000000e+00> : vector<8x8xf32>
    %284 = tpu.matmul %283, %273, %cst_125 {dimension_numbers = #tpu.dot_dimension_numbers<[1], [0], [0], [1], [0, 0, 1, 1], [], []>} : vector<8x8xbf16>, vector<8x8xbf16>, vector<8x8xf32> -> vector<8x8xf32>
    %285 = vector.broadcast %282 : vector<8x1xf32> to vector<8x8xf32>
    %286 = arith.mulf %284, %285 : vector<8x8xf32>
    %287 = arith.truncf %286 : vector<8x8xf32> to vector<8x8xbf16>
    %c3_126 = arith.constant 3 : index
    %c0_127 = arith.constant 0 : index
    %c0_128 = arith.constant 0 : index
    %288 = vector.load %arg8[%c3_126, %c0_127, %c0_128] : memref<4x8x32xbf16, #tpu.memory_space<vmem>>, vector<1x8x32xbf16>
    %289 = vector.shape_cast %288 : vector<1x8x32xbf16> to vector<8x32xbf16>
    %cst_129 = arith.constant dense<0.000000e+00> : vector<8x32xf32>
    %290 = tpu.matmul %287, %289, %cst_129 {dimension_numbers = #tpu.dot_dimension_numbers<[1], [0], [0], [1], [0, 0, 1, 1], [], []>} : vector<8x8xbf16>, vector<8x32xbf16>, vector<8x32xf32> -> vector<8x32xf32>
    %291 = arith.addf %267, %290 : vector<8x32xf32>
    %c0_130 = arith.constant 0 : index
    %c0_131 = arith.constant 0 : index
    %292 = vector.load %arg9[%c0_130, %c0_131] : memref<1x32xf32, #tpu.memory_space<vmem>>, vector<1x32xf32>
    %293 = vector.broadcast %292 : vector<1x32xf32> to vector<8x32xf32>
    %294 = arith.addf %291, %293 : vector<8x32xf32>
    %295 = arith.addf %172, %294 : vector<8x32xf32>
    %c2_132 = arith.constant 2 : index
    %c0_133 = arith.constant 0 : index
    %c0_134 = arith.constant 0 : index
    %296 = vector.load %arg14[%c2_132, %c0_133, %c0_134] : memref<5x1x32xf32, #tpu.memory_space<vmem>>, vector<1x1x32xf32>
    %297 = vector.shape_cast %296 : vector<1x1x32xf32> to vector<1x32xf32>
    %c2_135 = arith.constant 2 : index
    %c0_136 = arith.constant 0 : index
    %c0_137 = arith.constant 0 : index
    %298 = vector.load %arg15[%c2_135, %c0_136, %c0_137] : memref<5x1x32xf32, #tpu.memory_space<vmem>>, vector<1x1x32xf32>
    %299 = vector.shape_cast %298 : vector<1x1x32xf32> to vector<1x32xf32>
    %cst_138 = arith.constant dense<0.000000e+00> : vector<8xf32>
    %300 = vector.multi_reduction <add>, %295, %cst_138 [1] : vector<8x32xf32> to vector<8xf32>
    %301 = vector.shape_cast %300 : vector<8xf32> to vector<8x1xf32>
    %cst_139 = arith.constant 3.200000e+01 : f32
    %302 = vector.broadcast %cst_139 : f32 to vector<8x1xf32>
    %303 = arith.divf %301, %302 : vector<8x1xf32>
    %304 = vector.broadcast %303 : vector<8x1xf32> to vector<8x32xf32>
    %305 = arith.subf %295, %304 : vector<8x32xf32>
    %306 = arith.mulf %305, %305 : vector<8x32xf32>
    %cst_140 = arith.constant dense<0.000000e+00> : vector<8xf32>
    %307 = vector.multi_reduction <add>, %306, %cst_140 [1] : vector<8x32xf32> to vector<8xf32>
    %308 = vector.shape_cast %307 : vector<8xf32> to vector<8x1xf32>
    %cst_141 = arith.constant 3.200000e+01 : f32
    %309 = vector.broadcast %cst_141 : f32 to vector<8x1xf32>
    %310 = arith.divf %308, %309 : vector<8x1xf32>
    %cst_142 = arith.constant 9.99999974E-6 : f32
    %311 = vector.broadcast %cst_142 : f32 to vector<8x1xf32>
    %312 = arith.addf %310, %311 : vector<8x1xf32>
    %313 = math.rsqrt %312 : vector<8x1xf32>
    %314 = vector.broadcast %313 : vector<8x1xf32> to vector<8x32xf32>
    %315 = arith.mulf %305, %314 : vector<8x32xf32>
    %316 = vector.broadcast %297 : vector<1x32xf32> to vector<8x32xf32>
    %317 = arith.mulf %315, %316 : vector<8x32xf32>
    %318 = vector.broadcast %299 : vector<1x32xf32> to vector<8x32xf32>
    %319 = arith.addf %317, %318 : vector<8x32xf32>
    %320 = arith.addf %148, %319 : vector<8x32xf32>
    %c3_143 = arith.constant 3 : index
    %c0_144 = arith.constant 0 : index
    %c0_145 = arith.constant 0 : index
    %321 = vector.load %arg14[%c3_143, %c0_144, %c0_145] : memref<5x1x32xf32, #tpu.memory_space<vmem>>, vector<1x1x32xf32>
    %322 = vector.shape_cast %321 : vector<1x1x32xf32> to vector<1x32xf32>
    %c3_146 = arith.constant 3 : index
    %c0_147 = arith.constant 0 : index
    %c0_148 = arith.constant 0 : index
    %323 = vector.load %arg15[%c3_146, %c0_147, %c0_148] : memref<5x1x32xf32, #tpu.memory_space<vmem>>, vector<1x1x32xf32>
    %324 = vector.shape_cast %323 : vector<1x1x32xf32> to vector<1x32xf32>
    %cst_149 = arith.constant dense<0.000000e+00> : vector<8xf32>
    %325 = vector.multi_reduction <add>, %320, %cst_149 [1] : vector<8x32xf32> to vector<8xf32>
    %326 = vector.shape_cast %325 : vector<8xf32> to vector<8x1xf32>
    %cst_150 = arith.constant 3.200000e+01 : f32
    %327 = vector.broadcast %cst_150 : f32 to vector<8x1xf32>
    %328 = arith.divf %326, %327 : vector<8x1xf32>
    %329 = vector.broadcast %328 : vector<8x1xf32> to vector<8x32xf32>
    %330 = arith.subf %320, %329 : vector<8x32xf32>
    %331 = arith.mulf %330, %330 : vector<8x32xf32>
    %cst_151 = arith.constant dense<0.000000e+00> : vector<8xf32>
    %332 = vector.multi_reduction <add>, %331, %cst_151 [1] : vector<8x32xf32> to vector<8xf32>
    %333 = vector.shape_cast %332 : vector<8xf32> to vector<8x1xf32>
    %cst_152 = arith.constant 3.200000e+01 : f32
    %334 = vector.broadcast %cst_152 : f32 to vector<8x1xf32>
    %335 = arith.divf %333, %334 : vector<8x1xf32>
    %cst_153 = arith.constant 9.99999974E-6 : f32
    %336 = vector.broadcast %cst_153 : f32 to vector<8x1xf32>
    %337 = arith.addf %335, %336 : vector<8x1xf32>
    %338 = math.rsqrt %337 : vector<8x1xf32>
    %339 = vector.broadcast %338 : vector<8x1xf32> to vector<8x32xf32>
    %340 = arith.mulf %330, %339 : vector<8x32xf32>
    %341 = vector.broadcast %322 : vector<1x32xf32> to vector<8x32xf32>
    %342 = arith.mulf %340, %341 : vector<8x32xf32>
    %343 = vector.broadcast %324 : vector<1x32xf32> to vector<8x32xf32>
    %344 = arith.addf %342, %343 : vector<8x32xf32>
    %345 = arith.truncf %344 : vector<8x32xf32> to vector<8x32xbf16>
    %c0_154 = arith.constant 0 : index
    %c0_155 = arith.constant 0 : index
    %346 = vector.load %arg10[%c0_154, %c0_155] : memref<32x64xbf16, #tpu.memory_space<vmem>>, vector<32x64xbf16>
    %cst_156 = arith.constant dense<0.000000e+00> : vector<8x64xf32>
    %347 = tpu.matmul %345, %346, %cst_156 {dimension_numbers = #tpu.dot_dimension_numbers<[1], [0], [0], [1], [0, 0, 1, 1], [], []>} : vector<8x32xbf16>, vector<32x64xbf16>, vector<8x64xf32> -> vector<8x64xf32>
    %c0_157 = arith.constant 0 : index
    %c0_158 = arith.constant 0 : index
    %348 = vector.load %arg11[%c0_157, %c0_158] : memref<1x64xf32, #tpu.memory_space<vmem>>, vector<1x64xf32>
    %349 = vector.broadcast %348 : vector<1x64xf32> to vector<8x64xf32>
    %350 = arith.addf %347, %349 : vector<8x64xf32>
    %cst_159 = arith.constant 0.000000e+00 : f32
    %351 = vector.broadcast %cst_159 : f32 to vector<8x64xf32>
    %352 = arith.maximumf %350, %351 : vector<8x64xf32>
    %353 = arith.truncf %352 : vector<8x64xf32> to vector<8x64xbf16>
    %c0_160 = arith.constant 0 : index
    %c0_161 = arith.constant 0 : index
    %354 = vector.load %arg12[%c0_160, %c0_161] : memref<64x32xbf16, #tpu.memory_space<vmem>>, vector<64x32xbf16>
    %cst_162 = arith.constant dense<0.000000e+00> : vector<8x32xf32>
    %355 = tpu.matmul %353, %354, %cst_162 {dimension_numbers = #tpu.dot_dimension_numbers<[1], [0], [0], [1], [0, 0, 1, 1], [], []>} : vector<8x64xbf16>, vector<64x32xbf16>, vector<8x32xf32> -> vector<8x32xf32>
    %c0_163 = arith.constant 0 : index
    %c0_164 = arith.constant 0 : index
    %356 = vector.load %arg13[%c0_163, %c0_164] : memref<1x32xf32, #tpu.memory_space<vmem>>, vector<1x32xf32>
    %357 = vector.broadcast %356 : vector<1x32xf32> to vector<8x32xf32>
    %358 = arith.addf %355, %357 : vector<8x32xf32>
    %359 = arith.addf %344, %358 : vector<8x32xf32>
    %c4 = arith.constant 4 : index
    %c0_165 = arith.constant 0 : index
    %c0_166 = arith.constant 0 : index
    %360 = vector.load %arg14[%c4, %c0_165, %c0_166] : memref<5x1x32xf32, #tpu.memory_space<vmem>>, vector<1x1x32xf32>
    %361 = vector.shape_cast %360 : vector<1x1x32xf32> to vector<1x32xf32>
    %c4_167 = arith.constant 4 : index
    %c0_168 = arith.constant 0 : index
    %c0_169 = arith.constant 0 : index
    %362 = vector.load %arg15[%c4_167, %c0_168, %c0_169] : memref<5x1x32xf32, #tpu.memory_space<vmem>>, vector<1x1x32xf32>
    %363 = vector.shape_cast %362 : vector<1x1x32xf32> to vector<1x32xf32>
    %cst_170 = arith.constant dense<0.000000e+00> : vector<8xf32>
    %364 = vector.multi_reduction <add>, %359, %cst_170 [1] : vector<8x32xf32> to vector<8xf32>
    %365 = vector.shape_cast %364 : vector<8xf32> to vector<8x1xf32>
    %cst_171 = arith.constant 3.200000e+01 : f32
    %366 = vector.broadcast %cst_171 : f32 to vector<8x1xf32>
    %367 = arith.divf %365, %366 : vector<8x1xf32>
    %368 = vector.broadcast %367 : vector<8x1xf32> to vector<8x32xf32>
    %369 = arith.subf %359, %368 : vector<8x32xf32>
    %370 = arith.mulf %369, %369 : vector<8x32xf32>
    %cst_172 = arith.constant dense<0.000000e+00> : vector<8xf32>
    %371 = vector.multi_reduction <add>, %370, %cst_172 [1] : vector<8x32xf32> to vector<8xf32>
    %372 = vector.shape_cast %371 : vector<8xf32> to vector<8x1xf32>
    %cst_173 = arith.constant 3.200000e+01 : f32
    %373 = vector.broadcast %cst_173 : f32 to vector<8x1xf32>
    %374 = arith.divf %372, %373 : vector<8x1xf32>
    %cst_174 = arith.constant 9.99999974E-6 : f32
    %375 = vector.broadcast %cst_174 : f32 to vector<8x1xf32>
    %376 = arith.addf %374, %375 : vector<8x1xf32>
    %377 = math.rsqrt %376 : vector<8x1xf32>
    %378 = vector.broadcast %377 : vector<8x1xf32> to vector<8x32xf32>
    %379 = arith.mulf %369, %378 : vector<8x32xf32>
    %380 = vector.broadcast %361 : vector<1x32xf32> to vector<8x32xf32>
    %381 = arith.mulf %379, %380 : vector<8x32xf32>
    %382 = vector.broadcast %363 : vector<1x32xf32> to vector<8x32xf32>
    %383 = arith.addf %381, %382 : vector<8x32xf32>
    %384 = arith.addf %320, %383 : vector<8x32xf32>
    %c0_175 = arith.constant 0 : index
    %c0_176 = arith.constant 0 : index
    %c0_177 = arith.constant 0 : index
    %385 = vector.load %arg16[%c0_175, %c0_176, %c0_177] : memref<1x8x32xf32, #tpu.memory_space<vmem>>, vector<1x8x32xf32>
    %386 = vector.shape_cast %385 : vector<1x8x32xf32> to vector<8x32xf32>
    %387 = vector.shape_cast %384 : vector<8x32xf32> to vector<1x8x32xf32>
    tpu.vector_store %arg16[%c0_175, %c0_176, %c0_177], %387 {strides = array<i32>} : memref<1x8x32xf32, #tpu.memory_space<vmem>>, vector<1x8x32xf32>,
    return
  }
  func.func @transform_0(%arg0: i32) -> (i32, i32, i32) {
    %c0_i32 = arith.constant 0 : i32
    %c0_i32_0 = arith.constant 0 : i32
    %c0_i32_1 = arith.constant 0 : i32
    return %arg0, %c0_i32, %c0_i32_0 : i32, i32, i32
  }
  func.func @transform_1(%arg0: i32) -> (i32, i32, i32) {
    %c0_i32 = arith.constant 0 : i32
    %c0_i32_0 = arith.constant 0 : i32
    %c0_i32_1 = arith.constant 0 : i32
    %c0_i32_2 = arith.constant 0 : i32
    return %c0_i32, %c0_i32_0, %c0_i32_1 : i32, i32, i32
  }
  func.func @transform_2(%arg0: i32) -> (i32, i32, i32) {
    %c0_i32 = arith.constant 0 : i32
    %c0_i32_0 = arith.constant 0 : i32
    %c0_i32_1 = arith.constant 0 : i32
    %c0_i32_2 = arith.constant 0 : i32
    return %c0_i32, %c0_i32_0, %c0_i32_1 : i32, i32, i32
  }
  func.func @transform_3(%arg0: i32) -> (i32, i32, i32) {
    %c0_i32 = arith.constant 0 : i32
    %c0_i32_0 = arith.constant 0 : i32
    %c0_i32_1 = arith.constant 0 : i32
    %c0_i32_2 = arith.constant 0 : i32
    return %c0_i32, %c0_i32_0, %c0_i32_1 : i32, i32, i32
  }
  func.func @transform_4(%arg0: i32) -> (i32, i32) {
    %c0_i32 = arith.constant 0 : i32
    %c0_i32_0 = arith.constant 0 : i32
    %c0_i32_1 = arith.constant 0 : i32
    return %c0_i32, %c0_i32_0 : i32, i32
  }
  func.func @transform_5(%arg0: i32) -> (i32, i32, i32) {
    %c0_i32 = arith.constant 0 : i32
    %c0_i32_0 = arith.constant 0 : i32
    %c0_i32_1 = arith.constant 0 : i32
    %c0_i32_2 = arith.constant 0 : i32
    return %c0_i32, %c0_i32_0, %c0_i32_1 : i32, i32, i32
  }
  func.func @transform_6(%arg0: i32) -> (i32, i32, i32) {
    %c0_i32 = arith.constant 0 : i32
    %c0_i32_0 = arith.constant 0 : i32
    %c0_i32_1 = arith.constant 0 : i32
    %c0_i32_2 = arith.constant 0 : i32
    return %c0_i32, %c0_i32_0, %c0_i32_1 : i32, i32, i32
  }
  func.func @transform_7(%arg0: i32) -> (i32, i32, i32) {
    %c0_i32 = arith.constant 0 : i32
    %c0_i32_0 = arith.constant 0 : i32
    %c0_i32_1 = arith.constant 0 : i32
    %c0_i32_2 = arith.constant 0 : i32
    return %c0_i32, %c0_i32_0, %c0_i32_1 : i32, i32, i32
  }
  func.func @transform_8(%arg0: i32) -> (i32, i32) {
    %c0_i32 = arith.constant 0 : i32
    %c0_i32_0 = arith.constant 0 : i32
    %c0_i32_1 = arith.constant 0 : i32
    return %c0_i32, %c0_i32_0 : i32, i32
  }
  func.func @transform_9(%arg0: i32) -> (i32, i32) {
    %c0_i32 = arith.constant 0 : i32
    %c0_i32_0 = arith.constant 0 : i32
    %c0_i32_1 = arith.constant 0 : i32
    return %c0_i32, %c0_i32_0 : i32, i32
  }
  func.func @transform_10(%arg0: i32) -> (i32, i32) {
    %c0_i32 = arith.constant 0 : i32
    %c0_i32_0 = arith.constant 0 : i32
    %c0_i32_1 = arith.constant 0 : i32
    return %c0_i32, %c0_i32_0 : i32, i32
  }
  func.func @transform_11(%arg0: i32) -> (i32, i32) {
    %c0_i32 = arith.constant 0 : i32
    %c0_i32_0 = arith.constant 0 : i32
    %c0_i32_1 = arith.constant 0 : i32
    return %c0_i32, %c0_i32_0 : i32, i32
  }
  func.func @transform_12(%arg0: i32) -> (i32, i32) {
    %c0_i32 = arith.constant 0 : i32
    %c0_i32_0 = arith.constant 0 : i32
    %c0_i32_1 = arith.constant 0 : i32
    return %c0_i32, %c0_i32_0 : i32, i32
  }
  func.func @transform_13(%arg0: i32) -> (i32, i32, i32) {
    %c0_i32 = arith.constant 0 : i32
    %c0_i32_0 = arith.constant 0 : i32
    %c0_i32_1 = arith.constant 0 : i32
    %c0_i32_2 = arith.constant 0 : i32
    return %c0_i32, %c0_i32_0, %c0_i32_1 : i32, i32, i32
  }
  func.func @transform_14(%arg0: i32) -> (i32, i32, i32) {
    %c0_i32 = arith.constant 0 : i32
    %c0_i32_0 = arith.constant 0 : i32
    %c0_i32_1 = arith.constant 0 : i32
    %c0_i32_2 = arith.constant 0 : i32
    return %c0_i32, %c0_i32_0, %c0_i32_1 : i32, i32, i32
  }
  func.func @transform_15(%arg0: i32) -> (i32, i32, i32) {
    %c0_i32 = arith.constant 0 : i32
    %c0_i32_0 = arith.constant 0 : i32
    %c0_i32_1 = arith.constant 0 : i32
    return %arg0, %c0_i32, %c0_i32_0 : i32, i32, i32
  }
}

</mosaic_0001>

<llo_original>
// kernel: tpu_custom_call.1
$region0: #{tpu_custom_call.1}
  #allocation0 [shape = 'u32[]', space=smem, size = 0x4, offset = 0x4, fixed_abs, tag = 'smem constant byte address 0x4 - core index']
  #allocation1 [shape = 'u32[144,128]{1,0:T(1,128)}', space=vmem, size = 0x12000, scoped, tag = 'internal scratch']
  %s0 = inlined_call_operand.hbm [shape: f32[2,8,32], index: 0, kind: input, shape index: {}]
  %s1 = inlined_call_operand.hbm [shape: bf16[3,32,32], index: 1, kind: input, shape index: {}]
  %s2 = inlined_call_operand.hbm [shape: f32[3,1,32], index: 2, kind: input, shape index: {}]
  %s3 = inlined_call_operand.hbm [shape: bf16[4,8,32], index: 3, kind: input, shape index: {}]
  %s4 = inlined_call_operand.hbm [shape: f32[1,32], index: 4, kind: input, shape index: {}]
  %s5 = inlined_call_operand.hbm [shape: bf16[3,32,32], index: 5, kind: input, shape index: {}]
  %s6 = inlined_call_operand.hbm [shape: f32[3,1,32], index: 6, kind: input, shape index: {}]
  %s7 = inlined_call_operand.hbm [shape: bf16[4,8,32], index: 7, kind: input, shape index: {}]
  %s8 = inlined_call_operand.hbm [shape: f32[1,32], index: 8, kind: input, shape index: {}]
  %s9 = inlined_call_operand.hbm [shape: bf16[32,64], index: 9, kind: input, shape index: {}]
  %s10 = inlined_call_operand.hbm [shape: f32[1,64], index: 10, kind: input, shape index: {}]
  %s11 = inlined_call_operand.hbm [shape: bf16[64,32], index: 11, kind: input, shape index: {}]
  %s12 = inlined_call_operand.hbm [shape: f32[1,32], index: 12, kind: input, shape index: {}]
  %s13 = inlined_call_operand.hbm [shape: f32[5,1,32], index: 13, kind: input, shape index: {}]
  %s14 = inlined_call_operand.hbm [shape: f32[5,1,32], index: 14, kind: input, shape index: {}]
  %s15 = inlined_call_operand.hbm [shape: f32[2,8,32], index: 15, kind: output, shape index: {}]
  %s16 = sld [smem:[#allocation0]]
  $region153: #{tpu_custom_call.1} parent=0
    _
  %s18 = ssub.s32 1, %s16
  %s19 = scalar_select 0, %s18, %s16
  $region1: #{tpu_custom_call.1} parent=0
    #allocation2 [shape = 'u8[8192]{0}', space=vmem, size = 0x2000, scoped, tag = 'input window, operand 0']
    #allocation3 [shape = 's32[2]{0}', space=sflag, size = 0x8, scoped, tag = 'scoped memory for tpu_custom_call.1']
    #allocation4 [shape = 's32[2]{0}', space=sflag, size = 0x8, scoped, tag = 'scoped memory for tpu_custom_call.1']
    #allocation5 [shape = 'u8[24576]{0}', space=vmem, size = 0x6000, scoped, tag = 'input window, operand 1, single buffered']
    #allocation6 [shape = 's32[1]{0}', space=sflag, size = 0x4, scoped, tag = 'scoped memory for tpu_custom_call.1']
    #allocation7 [shape = 'u8[1536]{0}', space=vmem, size = 0x800, scoped, tag = 'input window, operand 2, single buffered']
    #allocation8 [shape = 'u8[8192]{0}', space=vmem, size = 0x2000, scoped, tag = 'input window, operand 3, single buffered']
    #allocation9 [shape = 's32[1]{0}', space=sflag, size = 0x4, scoped, tag = 'scoped memory for tpu_custom_call.1']
    #allocation10 [shape = 'u8[512]{0}', space=vmem, size = 0x400, scoped, tag = 'input window, operand 4, single buffered']
    #allocation11 [shape = 'u8[24576]{0}', space=vmem, size = 0x6000, scoped, tag = 'input window, operand 5, single buffered']
    #allocation12 [shape = 's32[1]{0}', space=sflag, size = 0x4, scoped, tag = 'scoped memory for tpu_custom_call.1']
    #allocation13 [shape = 'u8[1536]{0}', space=vmem, size = 0x800, scoped, tag = 'input window, operand 6, single buffered']
    #allocation14 [shape = 'u8[8192]{0}', space=vmem, size = 0x2000, scoped, tag = 'input window, operand 7, single buffered']
    #allocation15 [shape = 's32[1]{0}', space=sflag, size = 0x4, scoped, tag = 'scoped memory for tpu_custom_call.1']
    #allocation16 [shape = 'u8[512]{0}', space=vmem, size = 0x400, scoped, tag = 'input window, operand 8, single buffered']
    #allocation17 [shape = 'u8[8192]{0}', space=vmem, size = 0x2000, scoped, tag = 'input window, operand 9, single buffered']
    #allocation18 [shape = 's32[1]{0}', space=sflag, size = 0x4, scoped, tag = 'scoped memory for tpu_custom_call.1']
    #allocation19 [shape = 'u8[512]{0}', space=vmem, size = 0x400, scoped, tag = 'input window, operand 10, single buffered']
    #allocation20 [shape = 'u8[16384]{0}', space=vmem, size = 0x4000, scoped, tag = 'input window, operand 11, single buffered']
    #allocation21 [shape = 's32[1]{0}', space=sflag, size = 0x4, scoped, tag = 'scoped memory for tpu_custom_call.1']
    #allocation22 [shape = 'u8[512]{0}', space=vmem, size = 0x400, scoped, tag = 'input window, operand 12, single buffered']
    #allocation23 [shape = 'u8[2560]{0}', space=vmem, size = 0xc00, scoped, tag = 'input window, operand 13, single buffered']
    #allocation24 [shape = 's32[1]{0}', space=sflag, size = 0x4, scoped, tag = 'scoped memory for tpu_custom_call.1']
    #allocation25 [shape = 'u8[2560]{0}', space=vmem, size = 0xc00, scoped, tag = 'input window, operand 14, single buffered']
    #allocation26 [shape = 'u8[8192]{0}', space=vmem, size = 0x2000, scoped, tag = 'output window, operand 0']
    %20 = vsyncpa [#allocation3], 0
    %s21 = scalar_lea.sflag [#allocation3], 1
    %22 = vsyncpa %s21, 0
    %23 = vsyncpa [#allocation6], 0
    %24 = vsyncpa [#allocation9], 0
    %25 = vsyncpa [#allocation12], 0
    %26 = vsyncpa [#allocation15], 0
    %27 = vsyncpa [#allocation18], 0
    %28 = vsyncpa [#allocation21], 0
    %29 = vsyncpa [#allocation24], 0
    %30 = vsyncpa [#allocation4], 0
    %s31 = scalar_lea.sflag [#allocation4], 1
    %32 = vsyncpa %s31, 0
    loop: start=0, step=1, limit=4
    $region2: #{tpu_custom_call.1} parent=1 // loop_pre_header
      _
    $region3: #{tpu_custom_call.1} parent=1 // loop_header
      %s34 = sphi 0, %s38
      %p35 = scmp.ge.s32.totalorder %s34, 4
      %s44 = sphi 0, %s46
      %s47 = sphi 0, %s44
      %s48 = sphi 0, %s47
      %s64 = sphi 0, %s48
      %s68 = sphi 0, %s68
      %s70 = sphi 0, %s68
      %s71 = sphi 0, %s70
      %s85 = sphi 0, %s71
      %s89 = sphi 0, %s89
      %s91 = sphi 0, %s89
      %s92 = sphi 0, %s91
      %s106 = sphi 0, %s92
      %s110 = sphi 0, %s110
      %s112 = sphi 0, %s110
      %s113 = sphi 0, %s112
      %s127 = sphi 0, %s113
      %s131 = sphi 0, %s131
      %s133 = sphi 0, %s131
      %s134 = sphi 0, %s133
      %s148 = sphi 0, %s134
      %s152 = sphi 0, %s152
      %s154 = sphi 0, %s152
      %s155 = sphi 0, %s154
      %s169 = sphi 0, %s155
      %s173 = sphi 0, %s173
      %s175 = sphi 0, %s173
      %s176 = sphi 0, %s175
      %s190 = sphi 0, %s176
      %s194 = sphi 0, %s194
      %s196 = sphi 0, %s194
      %s197 = sphi 0, %s196
      %s211 = sphi 0, %s197
      %s215 = sphi 0, %s215
      %s217 = sphi 0, %s215
      %s218 = sphi 0, %s217
      %s232 = sphi 0, %s218
      %s236 = sphi 0, %s236
      %s238 = sphi 0, %s236
      %s239 = sphi 0, %s238
      %s253 = sphi 0, %s239
      %s257 = sphi 0, %s257
      %s259 = sphi 0, %s257
      %s260 = sphi 0, %s259
      %s274 = sphi 0, %s260
      %s278 = sphi 0, %s278
      %s280 = sphi 0, %s278
      %s281 = sphi 0, %s280
      %s295 = sphi 0, %s281
      %s299 = sphi 0, %s299
      %s301 = sphi 0, %s299
      %s302 = sphi 0, %s301
      %s316 = sphi 0, %s302
      %s320 = sphi 0, %s320
      %s322 = sphi 0, %s320
      %s323 = sphi 0, %s322
      %s337 = sphi 0, %s323
      %s341 = sphi 0, %s341
      %s343 = sphi 0, %s341
      %s344 = sphi 0, %s343
      %s358 = sphi 0, %s344
      %s364 = sphi 0, %s366
      %s367 = sphi 0, %s364
      %s368 = sphi 0, %s367
      %s384 = sphi 0, %s368
    $region4: #{tpu_custom_call.1} parent=1 // loop_header_branch
      %37 = sbr.rel (%p35) target = $region8
    $region5: #{tpu_custom_call.1} parent=1 // loop_body
      %s39 = ssub.s32 %s34, 1
      %s40 = ssub.s32 %s34, 2
      %s41 = sadd.s32 %s34, 1
      %s42 = ssub.s32 %s34, %s41
      %p43 = scmp.eq.s32.totalorder %s42, 0
      %s45 = sadd.s32 %s44, 1
      %s46 = scalar_select %p43, %s44, %s45
      %p49 = pneg %p43
      %p50 = scmp.eq.s32.totalorder %s34, 1
      %p51 = por %p49, %p50
      %p52 = scmp.ne.s32.totalorder %s44, %s47
      %p53 = scmp.eq.s32.totalorder %s34, 0
      %p54 = por %p52, %p53
      %p55 = scmp.ne.s32.totalorder %s44, %s47
      %p56 = scmp.eq.s32.totalorder %s39, 1
      %p57 = por %p55, %p56
      %p58 = scmp.ne.s32.totalorder %s47, %s48
      %p59 = scmp.eq.s32.totalorder %s39, 0
      %p60 = por %p58, %p59
      %p61 = scmp.ne.s32.totalorder %s47, %s48
      %p62 = scmp.eq.s32.totalorder %s40, 1
      %p63 = por %p61, %p62
      %p65 = scmp.ne.s32.totalorder %s48, %s64
      %p66 = scmp.eq.s32.totalorder %s40, 0
      %p67 = por %p65, %p66
      %s69 = sadd.s32 %s68, 1
      %p72 = scmp.eq.s32.totalorder %s34, 1
      %p73 = scmp.ne.s32.totalorder %s68, %s70
      %p74 = scmp.eq.s32.totalorder %s34, 0
      %p75 = por %p73, %p74
      %p76 = scmp.ne.s32.totalorder %s68, %s70
      %p77 = scmp.eq.s32.totalorder %s39, 1
      %p78 = por %p76, %p77
      %p79 = scmp.ne.s32.totalorder %s70, %s71
      %p80 = scmp.eq.s32.totalorder %s39, 0
      %p81 = por %p79, %p80
      %p82 = scmp.ne.s32.totalorder %s70, %s71
      %p83 = scmp.eq.s32.totalorder %s40, 1
      %p84 = por %p82, %p83
      %p86 = scmp.ne.s32.totalorder %s71, %s85
      %p87 = scmp.eq.s32.totalorder %s40, 0
      %p88 = por %p86, %p87
      %s90 = sadd.s32 %s89, 1
      %p93 = scmp.eq.s32.totalorder %s34, 1
      %p94 = scmp.ne.s32.totalorder %s89, %s91
      %p95 = scmp.eq.s32.totalorder %s34, 0
      %p96 = por %p94, %p95
      %p97 = scmp.ne.s32.totalorder %s89, %s91
      %p98 = scmp.eq.s32.totalorder %s39, 1
      %p99 = por %p97, %p98
      %p100 = scmp.ne.s32.totalorder %s91, %s92
      %p101 = scmp.eq.s32.totalorder %s39, 0
      %p102 = por %p100, %p101
      %p103 = scmp.ne.s32.totalorder %s91, %s92
      %p104 = scmp.eq.s32.totalorder %s40, 1
      %p105 = por %p103, %p104
      %p107 = scmp.ne.s32.totalorder %s92, %s106
      %p108 = scmp.eq.s32.totalorder %s40, 0
      %p109 = por %p107, %p108
      %s111 = sadd.s32 %s110, 1
      %p114 = scmp.eq.s32.totalorder %s34, 1
      %p115 = scmp.ne.s32.totalorder %s110, %s112
      %p116 = scmp.eq.s32.totalorder %s34, 0
      %p117 = por %p115, %p116
      %p118 = scmp.ne.s32.totalorder %s110, %s112
      %p119 = scmp.eq.s32.totalorder %s39, 1
      %p120 = por %p118, %p119
      %p121 = scmp.ne.s32.totalorder %s112, %s113
      %p122 = scmp.eq.s32.totalorder %s39, 0
      %p123 = por %p121, %p122
      %p124 = scmp.ne.s32.totalorder %s112, %s113
      %p125 = scmp.eq.s32.totalorder %s40, 1
      %p126 = por %p124, %p125
      %p128 = scmp.ne.s32.totalorder %s113, %s127
      %p129 = scmp.eq.s32.totalorder %s40, 0
      %p130 = por %p128, %p129
      %s132 = sadd.s32 %s131, 1
      %p135 = scmp.eq.s32.totalorder %s34, 1
      %p136 = scmp.ne.s32.totalorder %s131, %s133
      %p137 = scmp.eq.s32.totalorder %s34, 0
      %p138 = por %p136, %p137
      %p139 = scmp.ne.s32.totalorder %s131, %s133
      %p140 = scmp.eq.s32.totalorder %s39, 1
      %p141 = por %p139, %p140
      %p142 = scmp.ne.s32.totalorder %s133, %s134
      %p143 = scmp.eq.s32.totalorder %s39, 0
      %p144 = por %p142, %p143
      %p145 = scmp.ne.s32.totalorder %s133, %s134
      %p146 = scmp.eq.s32.totalorder %s40, 1
      %p147 = por %p145, %p146
      %p149 = scmp.ne.s32.totalorder %s134, %s148
      %p150 = scmp.eq.s32.totalorder %s40, 0
      %p151 = por %p149, %p150
      %s153 = sadd.s32 %s152, 1
      %p156 = scmp.eq.s32.totalorder %s34, 1
      %p157 = scmp.ne.s32.totalorder %s152, %s154
      %p158 = scmp.eq.s32.totalorder %s34, 0
      %p159 = por %p157, %p158
      %p160 = scmp.ne.s32.totalorder %s152, %s154
      %p161 = scmp.eq.s32.totalorder %s39, 1
      %p162 = por %p160, %p161
      %p163 = scmp.ne.s32.totalorder %s154, %s155
      %p164 = scmp.eq.s32.totalorder %s39, 0
      %p165 = por %p163, %p164
      %p166 = scmp.ne.s32.totalorder %s154, %s155
      %p167 = scmp.eq.s32.totalorder %s40, 1
      %p168 = por %p166, %p167
      %p170 = scmp.ne.s32.totalorder %s155, %s169
      %p171 = scmp.eq.s32.totalorder %s40, 0
      %p172 = por %p170, %p171
      %s174 = sadd.s32 %s173, 1
      %p177 = scmp.eq.s32.totalorder %s34, 1
      %p178 = scmp.ne.s32.totalorder %s173, %s175
      %p179 = scmp.eq.s32.totalorder %s34, 0
      %p180 = por %p178, %p179
      %p181 = scmp.ne.s32.totalorder %s173, %s175
      %p182 = scmp.eq.s32.totalorder %s39, 1
      %p183 = por %p181, %p182
      %p184 = scmp.ne.s32.totalorder %s175, %s176
      %p185 = scmp.eq.s32.totalorder %s39, 0
      %p186 = por %p184, %p185
      %p187 = scmp.ne.s32.totalorder %s175, %s176
      %p188 = scmp.eq.s32.totalorder %s40, 1
      %p189 = por %p187, %p188
      %p191 = scmp.ne.s32.totalorder %s176, %s190
      %p192 = scmp.eq.s32.totalorder %s40, 0
      %p193 = por %p191, %p192
      %s195 = sadd.s32 %s194, 1
      %p198 = scmp.eq.s32.totalorder %s34, 1
      %p199 = scmp.ne.s32.totalorder %s194, %s196
      %p200 = scmp.eq.s32.totalorder %s34, 0
      %p201 = por %p199, %p200
      %p202 = scmp.ne.s32.totalorder %s194, %s196
      %p203 = scmp.eq.s32.totalorder %s39, 1
      %p204 = por %p202, %p203
      %p205 = scmp.ne.s32.totalorder %s196, %s197
      %p206 = scmp.eq.s32.totalorder %s39, 0
      %p207 = por %p205, %p206
      %p208 = scmp.ne.s32.totalorder %s196, %s197
      %p209 = scmp.eq.s32.totalorder %s40, 1
      %p210 = por %p208, %p209
      %p212 = scmp.ne.s32.totalorder %s197, %s211
      %p213 = scmp.eq.s32.totalorder %s40, 0
      %p214 = por %p212, %p213
      %s216 = sadd.s32 %s215, 1
      %p219 = scmp.eq.s32.totalorder %s34, 1
      %p220 = scmp.ne.s32.totalorder %s215, %s217
      %p221 = scmp.eq.s32.totalorder %s34, 0
      %p222 = por %p220, %p221
      %p223 = scmp.ne.s32.totalorder %s215, %s217
      %p224 = scmp.eq.s32.totalorder %s39, 1
      %p225 = por %p223, %p224
      %p226 = scmp.ne.s32.totalorder %s217, %s218
      %p227 = scmp.eq.s32.totalorder %s39, 0
      %p228 = por %p226, %p227
      %p229 = scmp.ne.s32.totalorder %s217, %s218
      %p230 = scmp.eq.s32.totalorder %s40, 1
      %p231 = por %p229, %p230
      %p233 = scmp.ne.s32.totalorder %s218, %s232
      %p234 = scmp.eq.s32.totalorder %s40, 0
      %p235 = por %p233, %p234
      %s237 = sadd.s32 %s236, 1
      %p240 = scmp.eq.s32.totalorder %s34, 1
      %p241 = scmp.ne.s32.totalorder %s236, %s238
      %p242 = scmp.eq.s32.totalorder %s34, 0
      %p243 = por %p241, %p242
      %p244 = scmp.ne.s32.totalorder %s236, %s238
      %p245 = scmp.eq.s32.totalorder %s39, 1
      %p246 = por %p244, %p245
      %p247 = scmp.ne.s32.totalorder %s238, %s239
      %p248 = scmp.eq.s32.totalorder %s39, 0
      %p249 = por %p247, %p248
      %p250 = scmp.ne.s32.totalorder %s238, %s239
      %p251 = scmp.eq.s32.totalorder %s40, 1
      %p252 = por %p250, %p251
      %p254 = scmp.ne.s32.totalorder %s239, %s253
      %p255 = scmp.eq.s32.totalorder %s40, 0
      %p256 = por %p254, %p255
      %s258 = sadd.s32 %s257, 1
      %p261 = scmp.eq.s32.totalorder %s34, 1
      %p262 = scmp.ne.s32.totalorder %s257, %s259
      %p263 = scmp.eq.s32.totalorder %s34, 0
      %p264 = por %p262, %p263
      %p265 = scmp.ne.s32.totalorder %s257, %s259
      %p266 = scmp.eq.s32.totalorder %s39, 1
      %p267 = por %p265, %p266
      %p268 = scmp.ne.s32.totalorder %s259, %s260
      %p269 = scmp.eq.s32.totalorder %s39, 0
      %p270 = por %p268, %p269
      %p271 = scmp.ne.s32.totalorder %s259, %s260
      %p272 = scmp.eq.s32.totalorder %s40, 1
      %p273 = por %p271, %p272
      %p275 = scmp.ne.s32.totalorder %s260, %s274
      %p276 = scmp.eq.s32.totalorder %s40, 0
      %p277 = por %p275, %p276
      %s279 = sadd.s32 %s278, 1
      %p282 = scmp.eq.s32.totalorder %s34, 1
      %p283 = scmp.ne.s32.totalorder %s278, %s280
      %p284 = scmp.eq.s32.totalorder %s34, 0
      %p285 = por %p283, %p284
      %p286 = scmp.ne.s32.totalorder %s278, %s280
      %p287 = scmp.eq.s32.totalorder %s39, 1
      %p288 = por %p286, %p287
      %p289 = scmp.ne.s32.totalorder %s280, %s281
      %p290 = scmp.eq.s32.totalorder %s39, 0
      %p291 = por %p289, %p290
      %p292 = scmp.ne.s32.totalorder %s280, %s281
      %p293 = scmp.eq.s32.totalorder %s40, 1
      %p294 = por %p292, %p293
      %p296 = scmp.ne.s32.totalorder %s281, %s295
      %p297 = scmp.eq.s32.totalorder %s40, 0
      %p298 = por %p296, %p297
      %s300 = sadd.s32 %s299, 1
      %p303 = scmp.eq.s32.totalorder %s34, 1
      %p304 = scmp.ne.s32.totalorder %s299, %s301
      %p305 = scmp.eq.s32.totalorder %s34, 0
      %p306 = por %p304, %p305
      %p307 = scmp.ne.s32.totalorder %s299, %s301
      %p308 = scmp.eq.s32.totalorder %s39, 1
      %p309 = por %p307, %p308
      %p310 = scmp.ne.s32.totalorder %s301, %s302
      %p311 = scmp.eq.s32.totalorder %s39, 0
      %p312 = por %p310, %p311
      %p313 = scmp.ne.s32.totalorder %s301, %s302
      %p314 = scmp.eq.s32.totalorder %s40, 1
      %p315 = por %p313, %p314
      %p317 = scmp.ne.s32.totalorder %s302, %s316
      %p318 = scmp.eq.s32.totalorder %s40, 0
      %p319 = por %p317, %p318
      %s321 = sadd.s32 %s320, 1
      %p324 = scmp.eq.s32.totalorder %s34, 1
      %p325 = scmp.ne.s32.totalorder %s320, %s322
      %p326 = scmp.eq.s32.totalorder %s34, 0
      %p327 = por %p325, %p326
      %p328 = scmp.ne.s32.totalorder %s320, %s322
      %p329 = scmp.eq.s32.totalorder %s39, 1
      %p330 = por %p328, %p329
      %p331 = scmp.ne.s32.totalorder %s322, %s323
      %p332 = scmp.eq.s32.totalorder %s39, 0
      %p333 = por %p331, %p332
      %p334 = scmp.ne.s32.totalorder %s322, %s323
      %p335 = scmp.eq.s32.totalorder %s40, 1
      %p336 = por %p334, %p335
      %p338 = scmp.ne.s32.totalorder %s323, %s337
      %p339 = scmp.eq.s32.totalorder %s40, 0
      %p340 = por %p338, %p339
      %s342 = sadd.s32 %s341, 1
      %p345 = scmp.eq.s32.totalorder %s34, 1
      %p346 = scmp.ne.s32.totalorder %s341, %s343
      %p347 = scmp.eq.s32.totalorder %s34, 0
      %p348 = por %p346, %p347
      %p349 = scmp.ne.s32.totalorder %s341, %s343
      %p350 = scmp.eq.s32.totalorder %s39, 1
      %p351 = por %p349, %p350
      %p352 = scmp.ne.s32.totalorder %s343, %s344
      %p353 = scmp.eq.s32.totalorder %s39, 0
      %p354 = por %p352, %p353
      %p355 = scmp.ne.s32.totalorder %s343, %s344
      %p356 = scmp.eq.s32.totalorder %s40, 1
      %p357 = por %p355, %p356
      %p359 = scmp.ne.s32.totalorder %s344, %s358
      %p360 = scmp.eq.s32.totalorder %s40, 0
      %p361 = por %p359, %p360
      %s362 = ssub.s32 %s34, %s41
      %p363 = scmp.eq.s32.totalorder %s362, 0
      %s365 = sadd.s32 %s364, 1
      %s366 = scalar_select %p363, %s364, %s365
      %p369 = pneg %p363
      %p370 = scmp.eq.s32.totalorder %s34, 1
      %p371 = por %p369, %p370
      %p372 = scmp.ne.s32.totalorder %s364, %s367
      %p373 = scmp.eq.s32.totalorder %s34, 0
      %p374 = por %p372, %p373
      %p375 = scmp.ne.s32.totalorder %s364, %s367
      %p376 = scmp.eq.s32.totalorder %s39, 1
      %p377 = por %p375, %p376
      %p378 = scmp.ne.s32.totalorder %s367, %s368
      %p379 = scmp.eq.s32.totalorder %s39, 0
      %p380 = por %p378, %p379
      %p381 = scmp.ne.s32.totalorder %s367, %s368
      %p382 = scmp.eq.s32.totalorder %s40, 1
      %p383 = por %p381, %p382
      %p385 = scmp.ne.s32.totalorder %s368, %s384
      %p386 = scmp.eq.s32.totalorder %s40, 0
      %p387 = por %p385, %p386
      %p388 = scmp.le.s32.totalorder 1, %s34
      %p389 = scmp.lt.s32.totalorder %s34, 3
      %p390 = pnand %p388, %p389
      %p391 = pneg %p390
      // Predicated region
      $region9: #{tpu_custom_call.1} parent=5 // pred_check
        _
      $region10: #{tpu_custom_call.1} parent=5 // pred_check_branch
        %393 = sbr.rel (%p390) target = $region12
      $region11: #{tpu_custom_call.1} parent=5 // pred_region
        %s394 = ssub.s32 %s34, 1
        // Predicated region
        $region13: #{tpu_custom_call.1} parent=11 // pred_check
          %p395 = pneg %p81
        $region14: #{tpu_custom_call.1} parent=11 // pred_check_branch
          %397 = sbr.rel (%p395) target = $region16
        $region15: #{tpu_custom_call.1} parent=11 // pred_region
          %s399 = ssub.s32 768, 768
          %400 = vsyncadd [#allocation6], %s399
          %s401 = sshll.u32 [#allocation5], 4
          %s402 = int_to_ptr.vmem [resolvable:$true] %s401
          %407 = dma.hbm_to_vmem [thread:$0]  %s1, 768, %s402, [#allocation6], 64, 64, 4
        $region16: #{tpu_custom_call.1} parent=11 // pred_fallthru
          _
        // Predicated region
        $region17: #{tpu_custom_call.1} parent=11 // pred_check
          %p408 = pneg %p102
        $region18: #{tpu_custom_call.1} parent=11 // pred_check_branch
          %410 = sbr.rel (%p408) target = $region20
        $region19: #{tpu_custom_call.1} parent=11 // pred_region
          %s412 = ssub.s32 48, 48
          %413 = vsyncadd [#allocation6], %s412
          %s414 = sshll.u32 [#allocation7], 4
          %s415 = int_to_ptr.vmem [resolvable:$true] %s414
          %420 = dma.hbm_to_vmem [thread:$0]  %s2, 48, %s415, [#allocation6], 16, 16, 1
        $region20: #{tpu_custom_call.1} parent=11 // pred_fallthru
          _
        // Predicated region
        $region21: #{tpu_custom_call.1} parent=11 // pred_check
          %p421 = pneg %p123
        $region22: #{tpu_custom_call.1} parent=11 // pred_check_branch
          %423 = sbr.rel (%p421) target = $region24
        $region23: #{tpu_custom_call.1} parent=11 // pred_region
          %s425 = ssub.s32 256, 256
          %426 = vsyncadd [#allocation9], %s425
          %s427 = sshll.u32 [#allocation8], 4
          %s428 = int_to_ptr.vmem [resolvable:$true] %s427
          %433 = dma.hbm_to_vmem [thread:$0]  %s3, 256, %s428, [#allocation9], 64, 64, 4
        $region24: #{tpu_custom_call.1} parent=11 // pred_fallthru
          _
        // Predicated region
        $region25: #{tpu_custom_call.1} parent=11 // pred_check
          %p434 = pneg %p144
        $region26: #{tpu_custom_call.1} parent=11 // pred_check_branch
          %436 = sbr.rel (%p434) target = $region28
        $region27: #{tpu_custom_call.1} parent=11 // pred_region
          %s438 = ssub.s32 16, 16
          %439 = vsyncadd [#allocation9], %s438
          %s441 = sshll.u32 [#allocation10], 4
          %s442 = int_to_ptr.vmem [resolvable:$true] %s441
          %444 = dma.hbm_to_vmem [thread:$0]  %s4, 16, %s442, [#allocation9]
        $region28: #{tpu_custom_call.1} parent=11 // pred_fallthru
          _
        // Predicated region
        $region29: #{tpu_custom_call.1} parent=11 // pred_check
          %p445 = pneg %p165
        $region30: #{tpu_custom_call.1} parent=11 // pred_check_branch
          %447 = sbr.rel (%p445) target = $region32
        $region31: #{tpu_custom_call.1} parent=11 // pred_region
          %s449 = ssub.s32 768, 768
          %450 = vsyncadd [#allocation12], %s449
          %s451 = sshll.u32 [#allocation11], 4
          %s452 = int_to_ptr.vmem [resolvable:$true] %s451
          %457 = dma.hbm_to_vmem [thread:$0]  %s5, 768, %s452, [#allocation12], 64, 64, 4
        $region32: #{tpu_custom_call.1} parent=11 // pred_fallthru
          _
        // Predicated region
        $region33: #{tpu_custom_call.1} parent=11 // pred_check
          %p458 = pneg %p186
        $region34: #{tpu_custom_call.1} parent=11 // pred_check_branch
          %460 = sbr.rel (%p458) target = $region36
        $region35: #{tpu_custom_call.1} parent=11 // pred_region
          %s462 = ssub.s32 48, 48
          %463 = vsyncadd [#allocation12], %s462
          %s464 = sshll.u32 [#allocation13], 4
          %s465 = int_to_ptr.vmem [resolvable:$true] %s464
          %470 = dma.hbm_to_vmem [thread:$0]  %s6, 48, %s465, [#allocation12], 16, 16, 1
        $region36: #{tpu_custom_call.1} parent=11 // pred_fallthru
          _
        // Predicated region
        $region37: #{tpu_custom_call.1} parent=11 // pred_check
          %p471 = pneg %p207
        $region38: #{tpu_custom_call.1} parent=11 // pred_check_branch
          %473 = sbr.rel (%p471) target = $region40
        $region39: #{tpu_custom_call.1} parent=11 // pred_region
          %s475 = ssub.s32 256, 256
          %476 = vsyncadd [#allocation15], %s475
          %s477 = sshll.u32 [#allocation14], 4
          %s478 = int_to_ptr.vmem [resolvable:$true] %s477
          %483 = dma.hbm_to_vmem [thread:$0]  %s7, 256, %s478, [#allocation15], 64, 64, 4
        $region40: #{tpu_custom_call.1} parent=11 // pred_fallthru
          _
        // Predicated region
        $region41: #{tpu_custom_call.1} parent=11 // pred_check
          %p484 = pneg %p228
        $region42: #{tpu_custom_call.1} parent=11 // pred_check_branch
          %486 = sbr.rel (%p484) target = $region44
        $region43: #{tpu_custom_call.1} parent=11 // pred_region
          %s488 = ssub.s32 16, 16
          %489 = vsyncadd [#allocation15], %s488
          %s491 = sshll.u32 [#allocation16], 4
          %s492 = int_to_ptr.vmem [resolvable:$true] %s491
          %494 = dma.hbm_to_vmem [thread:$0]  %s8, 16, %s492, [#allocation15]
        $region44: #{tpu_custom_call.1} parent=11 // pred_fallthru
          _
        // Predicated region
        $region45: #{tpu_custom_call.1} parent=11 // pred_check
          %p495 = pneg %p249
        $region46: #{tpu_custom_call.1} parent=11 // pred_check_branch
          %497 = sbr.rel (%p495) target = $region48
        $region47: #{tpu_custom_call.1} parent=11 // pred_region
          %s499 = ssub.s32 256, 256
          %500 = vsyncadd [#allocation18], %s499
          %s501 = sshll.u32 [#allocation17], 4
          %s502 = int_to_ptr.vmem [resolvable:$true] %s501
          %507 = dma.hbm_to_vmem [thread:$0]  %s9, 256, %s502, [#allocation18], 64, 64, 4
        $region48: #{tpu_custom_call.1} parent=11 // pred_fallthru
          _
        // Predicated region
        $region49: #{tpu_custom_call.1} parent=11 // pred_check
          %p508 = pneg %p270
        $region50: #{tpu_custom_call.1} parent=11 // pred_check_branch
          %510 = sbr.rel (%p508) target = $region52
        $region51: #{tpu_custom_call.1} parent=11 // pred_region
          %s512 = ssub.s32 16, 16
          %513 = vsyncadd [#allocation18], %s512
          %s515 = sshll.u32 [#allocation19], 4
          %s516 = int_to_ptr.vmem [resolvable:$true] %s515
          %518 = dma.hbm_to_vmem [thread:$0]  %s10, 16, %s516, [#allocation18]
        $region52: #{tpu_custom_call.1} parent=11 // pred_fallthru
          _
        // Predicated region
        $region53: #{tpu_custom_call.1} parent=11 // pred_check
          %p519 = pneg %p291
        $region54: #{tpu_custom_call.1} parent=11 // pred_check_branch
          %521 = sbr.rel (%p519) target = $region56
        $region55: #{tpu_custom_call.1} parent=11 // pred_region
          %s523 = ssub.s32 512, 512
          %524 = vsyncadd [#allocation21], %s523
          %s525 = sshll.u32 [#allocation20], 4
          %s526 = int_to_ptr.vmem [resolvable:$true] %s525
          %531 = dma.hbm_to_vmem [thread:$0]  %s11, 512, %s526, [#allocation21], 64, 64, 4
        $region56: #{tpu_custom_call.1} parent=11 // pred_fallthru
          _
        // Predicated region
        $region57: #{tpu_custom_call.1} parent=11 // pred_check
          %p532 = pneg %p312
        $region58: #{tpu_custom_call.1} parent=11 // pred_check_branch
          %534 = sbr.rel (%p532) target = $region60
        $region59: #{tpu_custom_call.1} parent=11 // pred_region
          %s536 = ssub.s32 16, 16
          %537 = vsyncadd [#allocation21], %s536
          %s539 = sshll.u32 [#allocation22], 4
          %s540 = int_to_ptr.vmem [resolvable:$true] %s539
          %542 = dma.hbm_to_vmem [thread:$0]  %s12, 16, %s540, [#allocation21]
        $region60: #{tpu_custom_call.1} parent=11 // pred_fallthru
          _
        // Predicated region
        $region61: #{tpu_custom_call.1} parent=11 // pred_check
          %p543 = pneg %p333
        $region62: #{tpu_custom_call.1} parent=11 // pred_check_branch
          %545 = sbr.rel (%p543) target = $region64
        $region63: #{tpu_custom_call.1} parent=11 // pred_region
          %s547 = ssub.s32 80, 80
          %548 = vsyncadd [#allocation24], %s547
          %s549 = sshll.u32 [#allocation23], 4
          %s550 = int_to_ptr.vmem [resolvable:$true] %s549
          %555 = dma.hbm_to_vmem [thread:$0]  %s13, 80, %s550, [#allocation24], 16, 16, 1
        $region64: #{tpu_custom_call.1} parent=11 // pred_fallthru
          _
        // Predicated region
        $region65: #{tpu_custom_call.1} parent=11 // pred_check
          %p556 = pneg %p354
        $region66: #{tpu_custom_call.1} parent=11 // pred_check_branch
          %558 = sbr.rel (%p556) target = $region68
        $region67: #{tpu_custom_call.1} parent=11 // pred_region
          %s560 = ssub.s32 80, 80
          %561 = vsyncadd [#allocation24], %s560
          %s562 = sshll.u32 [#allocation25], 4
          %s563 = int_to_ptr.vmem [resolvable:$true] %s562
          %568 = dma.hbm_to_vmem [thread:$0]  %s14, 80, %s563, [#allocation24], 16, 16, 1
        $region68: #{tpu_custom_call.1} parent=11 // pred_fallthru
          _
      $region12: #{tpu_custom_call.1} parent=5 // pred_fallthru
        _
      %p569 = scmp.lt.s32.totalorder %s34, 2
      // Predicated region
      $region69: #{tpu_custom_call.1} parent=5 // pred_check
        %p570 = pneg %p569
      $region70: #{tpu_custom_call.1} parent=5 // pred_check_branch
        %572 = sbr.rel (%p570) target = $region72
      $region71: #{tpu_custom_call.1} parent=5 // pred_region
        // Predicated region
        $region73: #{tpu_custom_call.1} parent=71 // pred_check
          %p573 = pneg %p54
        $region74: #{tpu_custom_call.1} parent=71 // pred_check_branch
          %575 = sbr.rel (%p573) target = $region76
        $region75: #{tpu_custom_call.1} parent=71 // pred_region
          %s576 = sand.u32 %s44, 1
          %s577 = scalar_lea.sflag [#allocation3], %s576
          %s578 = sand.u32 %s44, 1
          %s579 = smul.addr %s578, 8
          %s580 = scalar_lea.vmem [#allocation2], %s579
          %s582 = ssub.s32 128, 128
          %583 = vsyncadd %s577, %s582
          %s584 = smul.addr %s34, 128
          %s585 = scalar_lea.hbm %s0, %s584
          %s587 = sshll.u32 %s580, 4
          %s588 = int_to_ptr.vmem [resolvable:$true] %s587
          %590 = dma.hbm_to_vmem [thread:$0]  %s585, 128, %s588, %s577
        $region76: #{tpu_custom_call.1} parent=71 // pred_fallthru
          _
      $region72: #{tpu_custom_call.1} parent=5 // pred_fallthru
        _
      %p591 = scmp.le.s32.totalorder 1, %s34
      %p592 = scmp.lt.s32.totalorder %s34, 3
      %p593 = pnand %p591, %p592
      %p594 = pneg %p593
      // Predicated region
      $region77: #{tpu_custom_call.1} parent=5 // pred_check
        _
      $region78: #{tpu_custom_call.1} parent=5 // pred_check_branch
        %596 = sbr.rel (%p593) target = $region80
      $region79: #{tpu_custom_call.1} parent=5 // pred_region
        %s597 = ssub.s32 %s34, 1
        %s598 = sand.u32 %s47, 1
        %s599 = scalar_lea.sflag [#allocation3], %s598
        %s600 = sand.u32 %s47, 1
        %s601 = smul.addr %s600, 8
        %s602 = scalar_lea.vmem [#allocation2], %s601
        // Predicated region
        $region81: #{tpu_custom_call.1} parent=79 // pred_check
          %p603 = pneg %p60
        $region82: #{tpu_custom_call.1} parent=79 // pred_check_branch
          %605 = sbr.rel (%p603) target = $region84
        $region83: #{tpu_custom_call.1} parent=79 // pred_region
          %606 = dma.done %s599, 128
        $region84: #{tpu_custom_call.1} parent=79 // pred_fallthru
          _
        // Predicated region
        $region85: #{tpu_custom_call.1} parent=79 // pred_check
          %p607 = pneg %p81
        $region86: #{tpu_custom_call.1} parent=79 // pred_check_branch
          %609 = sbr.rel (%p607) target = $region88
        $region87: #{tpu_custom_call.1} parent=79 // pred_region
          %610 = dma.done [#allocation6], 768
        $region88: #{tpu_custom_call.1} parent=79 // pred_fallthru
          _
        // Predicated region
        $region89: #{tpu_custom_call.1} parent=79 // pred_check
          %p611 = pneg %p102
        $region90: #{tpu_custom_call.1} parent=79 // pred_check_branch
          %613 = sbr.rel (%p611) target = $region92
        $region91: #{tpu_custom_call.1} parent=79 // pred_region
          %614 = dma.done [#allocation6], 48
        $region92: #{tpu_custom_call.1} parent=79 // pred_fallthru
          _
        // Predicated region
        $region93: #{tpu_custom_call.1} parent=79 // pred_check
          %p615 = pneg %p123
        $region94: #{tpu_custom_call.1} parent=79 // pred_check_branch
          %617 = sbr.rel (%p615) target = $region96
        $region95: #{tpu_custom_call.1} parent=79 // pred_region
          %618 = dma.done [#allocation9], 256
        $region96: #{tpu_custom_call.1} parent=79 // pred_fallthru
          _
        // Predicated region
        $region97: #{tpu_custom_call.1} parent=79 // pred_check
          %p619 = pneg %p144
        $region98: #{tpu_custom_call.1} parent=79 // pred_check_branch
          %621 = sbr.rel (%p619) target = $region100
        $region99: #{tpu_custom_call.1} parent=79 // pred_region
          %622 = dma.done [#allocation9], 16
        $region100: #{tpu_custom_call.1} parent=79 // pred_fallthru
          _
        // Predicated region
        $region101: #{tpu_custom_call.1} parent=79 // pred_check
          %p623 = pneg %p165
        $region102: #{tpu_custom_call.1} parent=79 // pred_check_branch
          %625 = sbr.rel (%p623) target = $region104
        $region103: #{tpu_custom_call.1} parent=79 // pred_region
          %626 = dma.done [#allocation12], 768
        $region104: #{tpu_custom_call.1} parent=79 // pred_fallthru
          _
        // Predicated region
        $region105: #{tpu_custom_call.1} parent=79 // pred_check
          %p627 = pneg %p186
        $region106: #{tpu_custom_call.1} parent=79 // pred_check_branch
          %629 = sbr.rel (%p627) target = $region108
        $region107: #{tpu_custom_call.1} parent=79 // pred_region
          %630 = dma.done [#allocation12], 48
        $region108: #{tpu_custom_call.1} parent=79 // pred_fallthru
          _
        // Predicated region
        $region109: #{tpu_custom_call.1} parent=79 // pred_check
          %p631 = pneg %p207
        $region110: #{tpu_custom_call.1} parent=79 // pred_check_branch
          %633 = sbr.rel (%p631) target = $region112
        $region111: #{tpu_custom_call.1} parent=79 // pred_region
          %634 = dma.done [#allocation15], 256
        $region112: #{tpu_custom_call.1} parent=79 // pred_fallthru
          _
        // Predicated region
        $region113: #{tpu_custom_call.1} parent=79 // pred_check
          %p635 = pneg %p228
        $region114: #{tpu_custom_call.1} parent=79 // pred_check_branch
          %637 = sbr.rel (%p635) target = $region116
        $region115: #{tpu_custom_call.1} parent=79 // pred_region
          %638 = dma.done [#allocation15], 16
        $region116: #{tpu_custom_call.1} parent=79 // pred_fallthru
          _
        // Predicated region
        $region117: #{tpu_custom_call.1} parent=79 // pred_check
          %p639 = pneg %p249
        $region118: #{tpu_custom_call.1} parent=79 // pred_check_branch
          %641 = sbr.rel (%p639) target = $region120
        $region119: #{tpu_custom_call.1} parent=79 // pred_region
          %642 = dma.done [#allocation18], 256
        $region120: #{tpu_custom_call.1} parent=79 // pred_fallthru
          _
        // Predicated region
        $region121: #{tpu_custom_call.1} parent=79 // pred_check
          %p643 = pneg %p270
        $region122: #{tpu_custom_call.1} parent=79 // pred_check_branch
          %645 = sbr.rel (%p643) target = $region124
        $region123: #{tpu_custom_call.1} parent=79 // pred_region
          %646 = dma.done [#allocation18], 16
        $region124: #{tpu_custom_call.1} parent=79 // pred_fallthru
          _
        // Predicated region
        $region125: #{tpu_custom_call.1} parent=79 // pred_check
          %p647 = pneg %p291
        $region126: #{tpu_custom_call.1} parent=79 // pred_check_branch
          %649 = sbr.rel (%p647) target = $region128
        $region127: #{tpu_custom_call.1} parent=79 // pred_region
          %650 = dma.done [#allocation21], 512
        $region128: #{tpu_custom_call.1} parent=79 // pred_fallthru
          _
        // Predicated region
        $region129: #{tpu_custom_call.1} parent=79 // pred_check
          %p651 = pneg %p312
        $region130: #{tpu_custom_call.1} parent=79 // pred_check_branch
          %653 = sbr.rel (%p651) target = $region132
        $region131: #{tpu_custom_call.1} parent=79 // pred_region
          %654 = dma.done [#allocation21], 16
        $region132: #{tpu_custom_call.1} parent=79 // pred_fallthru
          _
        // Predicated region
        $region133: #{tpu_custom_call.1} parent=79 // pred_check
          %p655 = pneg %p333
        $region134: #{tpu_custom_call.1} parent=79 // pred_check_branch
          %657 = sbr.rel (%p655) target = $region136
        $region135: #{tpu_custom_call.1} parent=79 // pred_region
          %658 = dma.done [#allocation24], 80
        $region136: #{tpu_custom_call.1} parent=79 // pred_fallthru
          _
        // Predicated region
        $region137: #{tpu_custom_call.1} parent=79 // pred_check
          %p659 = pneg %p354
        $region138: #{tpu_custom_call.1} parent=79 // pred_check_branch
          %661 = sbr.rel (%p659) target = $region140
        $region139: #{tpu_custom_call.1} parent=79 // pred_region
          %662 = dma.done [#allocation24], 80
        $region140: #{tpu_custom_call.1} parent=79 // pred_fallthru
          _
        %s663 = sand.u32 %s47, 1
        %s664 = scalar_lea.sflag [#allocation3], %s663
        %s665 = sand.u32 %s47, 1
        %s666 = smul.addr %s665, 8
        %s667 = scalar_lea.vmem [#allocation2], %s666
        %p668 = pneg %p60
        %p669 = pneg %p57
        %p670 = pneg %p81
        %p671 = pneg %p78
        %p672 = pneg %p102
        %p673 = pneg %p99
        %p674 = pneg %p123
        %p675 = pneg %p120
        %p676 = pneg %p144
        %p677 = pneg %p141
        %p678 = pneg %p165
        %p679 = pneg %p162
        %p680 = pneg %p186
        %p681 = pneg %p183
        %p682 = pneg %p207
        %p683 = pneg %p204
        %p684 = pneg %p228
        %p685 = pneg %p225
        %p686 = pneg %p249
        %p687 = pneg %p246
        %p688 = pneg %p270
        %p689 = pneg %p267
        %p690 = pneg %p291
        %p691 = pneg %p288
        %p692 = pneg %p312
        %p693 = pneg %p309
        %p694 = pneg %p333
        %p695 = pneg %p330
        %p696 = pneg %p354
        %p697 = pneg %p351
        %p698 = pneg %p380
        %p699 = pneg %p377
        %s700 = sand.u32 %s367, 1
        %s701 = scalar_lea.sflag [#allocation4], %s700
        %s702 = sand.u32 %s367, 1
        %s703 = smul.addr %s702, 8
        %s704 = scalar_lea.vmem [#allocation26], %s703
        %v706 = vld [vmem:[%s602] sm:$0xff]
        %v707 = vpack.c.bf16 %v706, %v706
        %v708 = vld [vmem:[#allocation5] sm:$0xf]
        %v709 = vld [vmem:[#allocation5 + $0x4] sm:$0xf]
        %v710 = vld [vmem:[#allocation5 + $0x8] sm:$0xf]
        %v711 = vld [vmem:[#allocation5 + $0xc] sm:$0xf]
        %v712 = vld [vmem:[#allocation7] sm:$0x1]
        %v714 = vlaneseq
        %v715 = vshrl.u32 %v714, 7
        %v716 = vsub.s32 0, %v715
        %v717 = vrot.slane %v712, %v716
        %v723 = vunpack.c.l.b16 %v708
        %v724 = vunpack.c.l.b16 %v709
        %v725 = vunpack.c.l.b16 %v710
        %v726 = vunpack.c.l.b16 %v711
        %v727 = vpack.c.b16 %v724, %v723
        %v728 = vpack.c.b16 %v726, %v725
        %vm731 = vcmask 261120
        %v733 = vsel %vm731, %v707, 0
        %735 = vmatprep.subr.bf16.mxu0 0
        %736 = vmatpush1.bf16.msra.mxu0 %v727
        %737 = vmatprep.subr.bf16.mxu0 0
        %738 = vmatpush1.bf16.msra.mxu0 %v728
        %739 = vmatprep.subr.bf16.mxu0 0
        %740 = vmatpush1.bf16.msra.mxu0 0
        %741 = vmatprep.subr.bf16.mxu0 0
        %742 = vmatpush1.bf16.msra.mxu0 0
        %743 = vmatprep.subr.bf16.mxu0 0
        %744 = vmatpush1.bf16.msra.mxu0 0
        %745 = vmatprep.subr.bf16.mxu0 0
        %746 = vmatpush1.bf16.msra.mxu0 0
        %747 = vmatprep.subr.bf16.mxu0 0
        %748 = vmatpush1.bf16.msra.mxu0 0
        %749 = vmatprep.subr.bf16.mxu0 0
        %750 = vmatpush1.bf16.msra.mxu0 0
        %751 = vmatprep.subr.bf16.mxu0 0
        %752 = vmatpush1.bf16.msra.mxu0 0
        %753 = vmatprep.subr.bf16.mxu0 0
        %754 = vmatpush1.bf16.msra.mxu0 0
        %755 = vmatprep.subr.bf16.mxu0 0
        %756 = vmatpush1.bf16.msra.mxu0 0
        %757 = vmatprep.subr.bf16.mxu0 0
        %758 = vmatpush1.bf16.msra.mxu0 0
        %759 = vmatprep.subr.bf16.mxu0 0
        %760 = vmatpush1.bf16.msra.mxu0 0
        %761 = vmatprep.subr.bf16.mxu0 0
        %762 = vmatpush1.bf16.msra.mxu0 0
        %763 = vmatprep.subr.bf16.mxu0 0
        %764 = vmatpush1.bf16.msra.mxu0 0
        %765 = vmatprep.subr.bf16.mxu0 0
        %766 = vmatpush1.bf16.msra.mxu0 0
        %767 = vmatprep.mubr.bf16.mxu0 0
        %768 = vmatmul.mubr.bf16.gmra.mrb[0].mxu0 %v733
        %v769 = vpop.f32.mrb[0].mxu0
        %v770 = vadd.f32 %v717, %v769
        %v771 = vpop.f32.mrb[0].mxu0
        %v772 = vpop.f32.mrb[0].mxu0
        %v773 = vpop.f32.mrb[0].mxu0
        %774 = vdwg.mxu0
        %s775 = scalar_lea.vmem [#allocation5], 16
        %v776 = vld [vmem:[%s775] sm:$0xf]
        %v777 = vld [vmem:[%s775 + $0x4] sm:$0xf]
        %v778 = vld [vmem:[%s775 + $0x8] sm:$0xf]
        %v779 = vld [vmem:[%s775 + $0xc] sm:$0xf]
        %s780 = scalar_lea.vmem [#allocation7], 1
        %v781 = vld [vmem:[%s780] sm:$0x1]
        %v783 = vlaneseq
        %v784 = vshrl.u32 %v783, 7
        %v785 = vsub.s32 0, %v784
        %v786 = vrot.slane %v781, %v785
        %v792 = vunpack.c.l.b16 %v776
        %v793 = vunpack.c.l.b16 %v777
        %v794 = vunpack.c.l.b16 %v778
        %v795 = vunpack.c.l.b16 %v779
        %v796 = vpack.c.b16 %v793, %v792
        %v797 = vpack.c.b16 %v795, %v794
        %800 = vmatprep.subr.bf16.mxu0 0
        %801 = vmatpush1.bf16.msra.mxu0 %v796
        %802 = vmatprep.subr.bf16.mxu0 0
        %803 = vmatpush1.bf16.msra.mxu0 %v797
        %804 = vmatprep.subr.bf16.mxu0 0
        %805 = vmatpush1.bf16.msra.mxu0 0
        %806 = vmatprep.subr.bf16.mxu0 0
        %807 = vmatpush1.bf16.msra.mxu0 0
        %808 = vmatprep.subr.bf16.mxu0 0
        %809 = vmatpush1.bf16.msra.mxu0 0
        %810 = vmatprep.subr.bf16.mxu0 0
        %811 = vmatpush1.bf16.msra.mxu0 0
        %812 = vmatprep.subr.bf16.mxu0 0
        %813 = vmatpush1.bf16.msra.mxu0 0
        %814 = vmatprep.subr.bf16.mxu0 0
        %815 = vmatpush1.bf16.msra.mxu0 0
        %816 = vmatprep.subr.bf16.mxu0 0
        %817 = vmatpush1.bf16.msra.mxu0 0
        %818 = vmatprep.subr.bf16.mxu0 0
        %819 = vmatpush1.bf16.msra.mxu0 0
        %820 = vmatprep.subr.bf16.mxu0 0
        %821 = vmatpush1.bf16.msra.mxu0 0
        %822 = vmatprep.subr.bf16.mxu0 0
        %823 = vmatpush1.bf16.msra.mxu0 0
        %824 = vmatprep.subr.bf16.mxu0 0
        %825 = vmatpush1.bf16.msra.mxu0 0
        %826 = vmatprep.subr.bf16.mxu0 0
        %827 = vmatpush1.bf16.msra.mxu0 0
        %828 = vmatprep.subr.bf16.mxu0 0
        %829 = vmatpush1.bf16.msra.mxu0 0
        %830 = vmatprep.subr.bf16.mxu0 0
        %831 = vmatpush1.bf16.msra.mxu0 0
        %832 = vmatprep.mubr.bf16.mxu0 0
        %833 = vmatmul.mubr.bf16.gmra.mrb[0].mxu0 %v733
        %v834 = vpop.f32.mrb[0].mxu0
        %v835 = vadd.f32 %v786, %v834
        %v836 = vpop.f32.mrb[0].mxu0
        %v837 = vpop.f32.mrb[0].mxu0
        %v838 = vpop.f32.mrb[0].mxu0
        %839 = vdwg.mxu0
        %s840 = scalar_lea.vmem [#allocation5], 32
        %v841 = vld [vmem:[%s840] sm:$0xf]
        %v842 = vld [vmem:[%s840 + $0x4] sm:$0xf]
        %v843 = vld [vmem:[%s840 + $0x8] sm:$0xf]
        %v844 = vld [vmem:[%s840 + $0xc] sm:$0xf]
        %s845 = scalar_lea.vmem [#allocation7], 2
        %v846 = vld [vmem:[%s845] sm:$0x1]
        %v848 = vlaneseq
        %v849 = vshrl.u32 %v848, 7
        %v850 = vsub.s32 0, %v849
        %v851 = vrot.slane %v846, %v850
        %v857 = vunpack.c.l.b16 %v841
        %v858 = vunpack.c.l.b16 %v842
        %v859 = vunpack.c.l.b16 %v843
        %v860 = vunpack.c.l.b16 %v844
        %v861 = vpack.c.b16 %v858, %v857
        %v862 = vpack.c.b16 %v860, %v859
        %865 = vmatprep.subr.bf16.mxu0 0
        %866 = vmatpush1.bf16.msra.mxu0 %v861
        %867 = vmatprep.subr.bf16.mxu0 0
        %868 = vmatpush1.bf16.msra.mxu0 %v862
        %869 = vmatprep.subr.bf16.mxu0 0
        %870 = vmatpush1.bf16.msra.mxu0 0
        %871 = vmatprep.subr.bf16.mxu0 0
        %872 = vmatpush1.bf16.msra.mxu0 0
        %873 = vmatprep.subr.bf16.mxu0 0
        %874 = vmatpush1.bf16.msra.mxu0 0
        %875 = vmatprep.subr.bf16.mxu0 0
        %876 = vmatpush1.bf16.msra.mxu0 0
        %877 = vmatprep.subr.bf16.mxu0 0
        %878 = vmatpush1.bf16.msra.mxu0 0
        %879 = vmatprep.subr.bf16.mxu0 0
        %880 = vmatpush1.bf16.msra.mxu0 0
        %881 = vmatprep.subr.bf16.mxu0 0
        %882 = vmatpush1.bf16.msra.mxu0 0
        %883 = vmatprep.subr.bf16.mxu0 0
        %884 = vmatpush1.bf16.msra.mxu0 0
        %885 = vmatprep.subr.bf16.mxu0 0
        %886 = vmatpush1.bf16.msra.mxu0 0
        %887 = vmatprep.subr.bf16.mxu0 0
        %888 = vmatpush1.bf16.msra.mxu0 0
        %889 = vmatprep.subr.bf16.mxu0 0
        %890 = vmatpush1.bf16.msra.mxu0 0
        %891 = vmatprep.subr.bf16.mxu0 0
        %892 = vmatpush1.bf16.msra.mxu0 0
        %893 = vmatprep.subr.bf16.mxu0 0
        %894 = vmatpush1.bf16.msra.mxu0 0
        %895 = vmatprep.subr.bf16.mxu0 0
        %896 = vmatpush1.bf16.msra.mxu0 0
        %897 = vmatprep.mubr.bf16.mxu0 0
        %898 = vmatmul.mubr.bf16.gmra.mrb[0].mxu0 %v733
        %v899 = vpop.f32.mrb[0].mxu0
        %v900 = vadd.f32 %v851, %v899
        %v901 = vpop.f32.mrb[0].mxu0
        %v902 = vpop.f32.mrb[0].mxu0
        %v903 = vpop.f32.mrb[0].mxu0
        %904 = vdwg.mxu0
        %v905 = vpack.c.bf16 %v770, %v770
        %v906 = vpack.c.bf16 %v835, %v835
        %v907 = vpack.c.bf16 %v900, %v900
        %vm908 = vcmask 64512
        %v910 = vsel %vm908, %v905, 0
        %v913 = vsel %vm908, %v906, 0
        %915 = vmatprep.subr.bf16.mxu0 0
        %916 = vmatpush1.bf16.xpose.msra.mxu0 %v913
        %917 = vmatprep.subr.bf16.mxu0 0
        %918 = vmatpush1.bf16.xpose.msra.mxu0 0
        %919 = vmatprep.subr.bf16.mxu0 0
        %920 = vmatpush1.bf16.xpose.msra.mxu0 0
        %921 = vmatprep.subr.bf16.mxu0 0
        %922 = vmatpush1.bf16.xpose.msra.mxu0 0
        %923 = vmatprep.subr.bf16.mxu0 0
        %924 = vmatpush1.bf16.xpose.msra.mxu0 0
        %925 = vmatprep.subr.bf16.mxu0 0
        %926 = vmatpush1.bf16.xpose.msra.mxu0 0
        %927 = vmatprep.subr.bf16.mxu0 0
        %928 = vmatpush1.bf16.xpose.msra.mxu0 0
        %929 = vmatprep.subr.bf16.mxu0 0
        %930 = vmatpush1.bf16.xpose.msra.mxu0 0
        %931 = vmatprep.subr.bf16.mxu0 0
        %932 = vmatpush1.bf16.xpose.msra.mxu0 0
        %933 = vmatprep.subr.bf16.mxu0 0
        %934 = vmatpush1.bf16.xpose.msra.mxu0 0
        %935 = vmatprep.subr.bf16.mxu0 0
        %936 = vmatpush1.bf16.xpose.msra.mxu0 0
        %937 = vmatprep.subr.bf16.mxu0 0
        %938 = vmatpush1.bf16.xpose.msra.mxu0 0
        %939 = vmatprep.subr.bf16.mxu0 0
        %940 = vmatpush1.bf16.xpose.msra.mxu0 0
        %941 = vmatprep.subr.bf16.mxu0 0
        %942 = vmatpush1.bf16.xpose.msra.mxu0 0
        %943 = vmatprep.subr.bf16.mxu0 0
        %944 = vmatpush1.bf16.xpose.msra.mxu0 0
        %945 = vmatprep.subr.bf16.mxu0 0
        %946 = vmatpush1.bf16.xpose.msra.mxu0 0
        %947 = vmatprep.mubr.bf16.mxu0 0
        %948 = vmatmul.mubr.bf16.gmra.mrb[0].mxu0 %v910
        %v949 = vpop.f32.mrb[0].mxu0
        %v950 = vadd.f32 0.0, %v949
        %v951 = vpop.f32.mrb[0].mxu0
        %v952 = vpop.f32.mrb[0].mxu0
        %v953 = vpop.f32.mrb[0].mxu0
        %954 = vdwg.mxu0
        %v955 = vsel %vm908, %v950, -inf
        %956 = vmax.xlane.f32.xlu0 %v955
        %v957 = vpop.xlane.xlu0 %956
        %v958 = vsub.f32 %v950, %v957
        %v959 = vmul.f32 %v958, 1.442695
        %v960 = vpow.pop %v959
        %v961 = vsel %vm908, %v960, 0.0
        %962 = vadd.xlane.f32.xlu0 %v961
        %v963 = vpop.xlane.xlu0 %962
        %v964 = vrcp.pop %v963
        %v965 = vpack.c.bf16 %v960, %v960
        %v967 = vsel %vm908, %v965, 0
        %vm969 = vcmask 1043456
        %v971 = vsel %vm969, %v907, 0
        %973 = vmatprep.subr.bf16.mxu0 0
        %974 = vmatpush1.bf16.msra.mxu0 %v971
        %975 = vmatprep.subr.bf16.mxu0 0
        %976 = vmatpush1.bf16.msra.mxu0 0
        %977 = vmatprep.subr.bf16.mxu0 0
        %978 = vmatpush1.bf16.msra.mxu0 0
        %979 = vmatprep.subr.bf16.mxu0 0
        %980 = vmatpush1.bf16.msra.mxu0 0
        %981 = vmatprep.subr.bf16.mxu0 0
        %982 = vmatpush1.bf16.msra.mxu0 0
        %983 = vmatprep.subr.bf16.mxu0 0
        %984 = vmatpush1.bf16.msra.mxu0 0
        %985 = vmatprep.subr.bf16.mxu0 0
        %986 = vmatpush1.bf16.msra.mxu0 0
        %987 = vmatprep.subr.bf16.mxu0 0
        %988 = vmatpush1.bf16.msra.mxu0 0
        %989 = vmatprep.subr.bf16.mxu0 0
        %990 = vmatpush1.bf16.msra.mxu0 0
        %991 = vmatprep.subr.bf16.mxu0 0
        %992 = vmatpush1.bf16.msra.mxu0 0
        %993 = vmatprep.subr.bf16.mxu0 0
        %994 = vmatpush1.bf16.msra.mxu0 0
        %995 = vmatprep.subr.bf16.mxu0 0
        %996 = vmatpush1.bf16.msra.mxu0 0
        %997 = vmatprep.subr.bf16.mxu0 0
        %998 = vmatpush1.bf16.msra.mxu0 0
        %999 = vmatprep.subr.bf16.mxu0 0
        %1000 = vmatpush1.bf16.msra.mxu0 0
        %1001 = vmatprep.subr.bf16.mxu0 0
        %1002 = vmatpush1.bf16.msra.mxu0 0
        %1003 = vmatprep.subr.bf16.mxu0 0
        %1004 = vmatpush1.bf16.msra.mxu0 0
        %1005 = vmatprep.mubr.bf16.mxu0 0
        %1006 = vmatmul.mubr.bf16.gmra.mrb[0].mxu0 %v967
        %v1007 = vpop.f32.mrb[0].mxu0
        %v1008 = vadd.f32 0.0, %v1007
        %v1009 = vpop.f32.mrb[0].mxu0
        %v1010 = vpop.f32.mrb[0].mxu0
        %v1011 = vpop.f32.mrb[0].mxu0
        %1012 = vdwg.mxu0
        %v1013 = vmul.f32 %v1008, %v964
        %v1014 = vpack.c.bf16 %v1013, %v1013
        %v1015 = vld [vmem:[#allocation8] sm:$0xf]
        %1017 = vrot.lane.b32.xlu0 %v905, 120
        %v1018 = vpop.permute.xlu0 %1017
        %1020 = vrot.lane.b32.xlu0 %v906, 120
        %v1021 = vpop.permute.xlu0 %1020
        %v1023 = vsel %vm908, %v1018, 0
        %v1026 = vsel %vm908, %v1021, 0
        %1028 = vmatprep.subr.bf16.mxu0 0
        %1029 = vmatpush1.bf16.xpose.msra.mxu0 %v1026
        %1030 = vmatprep.subr.bf16.mxu0 0
        %1031 = vmatpush1.bf16.xpose.msra.mxu0 0
        %1032 = vmatprep.subr.bf16.mxu0 0
        %1033 = vmatpush1.bf16.xpose.msra.mxu0 0
        %1034 = vmatprep.subr.bf16.mxu0 0
        %1035 = vmatpush1.bf16.xpose.msra.mxu0 0
        %1036 = vmatprep.subr.bf16.mxu0 0
        %1037 = vmatpush1.bf16.xpose.msra.mxu0 0
        %1038 = vmatprep.subr.bf16.mxu0 0
        %1039 = vmatpush1.bf16.xpose.msra.mxu0 0
        %1040 = vmatprep.subr.bf16.mxu0 0
        %1041 = vmatpush1.bf16.xpose.msra.mxu0 0
        %1042 = vmatprep.subr.bf16.mxu0 0
        %1043 = vmatpush1.bf16.xpose.msra.mxu0 0
        %1044 = vmatprep.subr.bf16.mxu0 0
        %1045 = vmatpush1.bf16.xpose.msra.mxu0 0
        %1046 = vmatprep.subr.bf16.mxu0 0
        %1047 = vmatpush1.bf16.xpose.msra.mxu0 0
        %1048 = vmatprep.subr.bf16.mxu0 0
        %1049 = vmatpush1.bf16.xpose.msra.mxu0 0
        %1050 = vmatprep.subr.bf16.mxu0 0
        %1051 = vmatpush1.bf16.xpose.msra.mxu0 0
        %1052 = vmatprep.subr.bf16.mxu0 0
        %1053 = vmatpush1.bf16.xpose.msra.mxu0 0
        %1054 = vmatprep.subr.bf16.mxu0 0
        %1055 = vmatpush1.bf16.xpose.msra.mxu0 0
        %1056 = vmatprep.subr.bf16.mxu0 0
        %1057 = vmatpush1.bf16.xpose.msra.mxu0 0
        %1058 = vmatprep.subr.bf16.mxu0 0
        %1059 = vmatpush1.bf16.xpose.msra.mxu0 0
        %1060 = vmatprep.mubr.bf16.mxu0 0
        %1061 = vmatmul.mubr.bf16.gmra.mrb[0].mxu0 %v1023
        %v1062 = vpop.f32.mrb[0].mxu0
        %v1063 = vadd.f32 0.0, %v1062
        %v1064 = vpop.f32.mrb[0].mxu0
        %v1065 = vpop.f32.mrb[0].mxu0
        %v1066 = vpop.f32.mrb[0].mxu0
        %1067 = vdwg.mxu0
        %v1068 = vsel %vm908, %v1063, -inf
        %1069 = vmax.xlane.f32.xlu0 %v1068
        %v1070 = vpop.xlane.xlu0 %1069
        %v1071 = vsub.f32 %v1063, %v1070
        %v1072 = vmul.f32 %v1071, 1.442695
        %v1073 = vpow.pop %v1072
        %v1074 = vsel %vm908, %v1073, 0.0
        %1075 = vadd.xlane.f32.xlu0 %v1074
        %v1076 = vpop.xlane.xlu0 %1075
        %v1077 = vrcp.pop %v1076
        %v1078 = vpack.c.bf16 %v1073, %v1073
        %1080 = vrot.lane.b32.xlu0 %v907, 120
        %v1081 = vpop.permute.xlu0 %1080
        %v1083 = vsel %vm908, %v1078, 0
        %v1086 = vsel %vm969, %v1081, 0
        %1088 = vmatprep.subr.bf16.mxu0 0
        %1089 = vmatpush1.bf16.msra.mxu0 %v1086
        %1090 = vmatprep.subr.bf16.mxu0 0
        %1091 = vmatpush1.bf16.msra.mxu0 0
        %1092 = vmatprep.subr.bf16.mxu0 0
        %1093 = vmatpush1.bf16.msra.mxu0 0
        %1094 = vmatprep.subr.bf16.mxu0 0
        %1095 = vmatpush1.bf16.msra.mxu0 0
        %1096 = vmatprep.subr.bf16.mxu0 0
        %1097 = vmatpush1.bf16.msra.mxu0 0
        %1098 = vmatprep.subr.bf16.mxu0 0
        %1099 = vmatpush1.bf16.msra.mxu0 0
        %1100 = vmatprep.subr.bf16.mxu0 0
        %1101 = vmatpush1.bf16.msra.mxu0 0
        %1102 = vmatprep.subr.bf16.mxu0 0
        %1103 = vmatpush1.bf16.msra.mxu0 0
        %1104 = vmatprep.subr.bf16.mxu0 0
        %1105 = vmatpush1.bf16.msra.mxu0 0
        %1106 = vmatprep.subr.bf16.mxu0 0
        %1107 = vmatpush1.bf16.msra.mxu0 0
        %1108 = vmatprep.subr.bf16.mxu0 0
        %1109 = vmatpush1.bf16.msra.mxu0 0
        %1110 = vmatprep.subr.bf16.mxu0 0
        %1111 = vmatpush1.bf16.msra.mxu0 0
        %1112 = vmatprep.subr.bf16.mxu0 0
        %1113 = vmatpush1.bf16.msra.mxu0 0
        %1114 = vmatprep.subr.bf16.mxu0 0
        %1115 = vmatpush1.bf16.msra.mxu0 0
        %1116 = vmatprep.subr.bf16.mxu0 0
        %1117 = vmatpush1.bf16.msra.mxu0 0
        %1118 = vmatprep.subr.bf16.mxu0 0
        %1119 = vmatpush1.bf16.msra.mxu0 0
        %1120 = vmatprep.mubr.bf16.mxu0 0
        %1121 = vmatmul.mubr.bf16.gmra.mrb[0].mxu0 %v1083
        %v1122 = vpop.f32.mrb[0].mxu0
        %v1123 = vadd.f32 0.0, %v1122
        %v1124 = vpop.f32.mrb[0].mxu0
        %v1125 = vpop.f32.mrb[0].mxu0
        %v1126 = vpop.f32.mrb[0].mxu0
        %1127 = vdwg.mxu0
        %v1128 = vmul.f32 %v1123, %v1077
        %v1129 = vpack.c.bf16 %v1128, %v1128
        %s1130 = scalar_lea.vmem [#allocation8], 4
        %v1131 = vld [vmem:[%s1130] sm:$0xf]
        %v1133 = vsel %vm908, %v1129, 0
        %v1136 = vsel %vm969, %v1131, 0
        %1138 = vmatprep.subr.bf16.mxu0 0
        %1139 = vmatpush1.bf16.msra.mxu0 %v1136
        %1140 = vmatprep.subr.bf16.mxu0 0
        %1141 = vmatpush1.bf16.msra.mxu0 0
        %1142 = vmatprep.subr.bf16.mxu0 0
        %1143 = vmatpush1.bf16.msra.mxu0 0
        %1144 = vmatprep.subr.bf16.mxu0 0
        %1145 = vmatpush1.bf16.msra.mxu0 0
        %1146 = vmatprep.subr.bf16.mxu0 0
        %1147 = vmatpush1.bf16.msra.mxu0 0
        %1148 = vmatprep.subr.bf16.mxu0 0
        %1149 = vmatpush1.bf16.msra.mxu0 0
        %1150 = vmatprep.subr.bf16.mxu0 0
        %1151 = vmatpush1.bf16.msra.mxu0 0
        %1152 = vmatprep.subr.bf16.mxu0 0
        %1153 = vmatpush1.bf16.msra.mxu0 0
        %1154 = vmatprep.subr.bf16.mxu0 0
        %1155 = vmatpush1.bf16.msra.mxu0 0
        %1156 = vmatprep.subr.bf16.mxu0 0
        %1157 = vmatpush1.bf16.msra.mxu0 0
        %1158 = vmatprep.subr.bf16.mxu0 0
        %1159 = vmatpush1.bf16.msra.mxu0 0
        %1160 = vmatprep.subr.bf16.mxu0 0
        %1161 = vmatpush1.bf16.msra.mxu0 0
        %1162 = vmatprep.subr.bf16.mxu0 0
        %1163 = vmatpush1.bf16.msra.mxu0 0
        %1164 = vmatprep.subr.bf16.mxu0 0
        %1165 = vmatpush1.bf16.msra.mxu0 0
        %1166 = vmatprep.subr.bf16.mxu0 0
        %1167 = vmatpush1.bf16.msra.mxu0 0
        %1168 = vmatprep.subr.bf16.mxu0 0
        %1169 = vmatpush1.bf16.msra.mxu0 0
        %1170 = vmatprep.mubr.bf16.mxu0 0
        %1171 = vmatmul.mubr.bf16.gmra.mrb[0].mxu0 %v1133
        %v1172 = vpop.f32.mrb[0].mxu0
        %v1173 = vadd.f32 0.0, %v1172
        %v1174 = vpop.f32.mrb[0].mxu0
        %v1175 = vpop.f32.mrb[0].mxu0
        %v1176 = vpop.f32.mrb[0].mxu0
        %1177 = vdwg.mxu0
        %v1179 = vsel %vm908, %v1014, 0
        %v1182 = vsel %vm969, %v1015, 0
        %1184 = vmatprep.subr.bf16.mxu0 0
        %1185 = vmatpush1.bf16.msra.mxu0 %v1182
        %1186 = vmatprep.subr.bf16.mxu0 0
        %1187 = vmatpush1.bf16.msra.mxu0 0
        %1188 = vmatprep.subr.bf16.mxu0 0
        %1189 = vmatpush1.bf16.msra.mxu0 0
        %1190 = vmatprep.subr.bf16.mxu0 0
        %1191 = vmatpush1.bf16.msra.mxu0 0
        %1192 = vmatprep.subr.bf16.mxu0 0
        %1193 = vmatpush1.bf16.msra.mxu0 0
        %1194 = vmatprep.subr.bf16.mxu0 0
        %1195 = vmatpush1.bf16.msra.mxu0 0
        %1196 = vmatprep.subr.bf16.mxu0 0
        %1197 = vmatpush1.bf16.msra.mxu0 0
        %1198 = vmatprep.subr.bf16.mxu0 0
        %1199 = vmatpush1.bf16.msra.mxu0 0
        %1200 = vmatprep.subr.bf16.mxu0 0
        %1201 = vmatpush1.bf16.msra.mxu0 0
        %1202 = vmatprep.subr.bf16.mxu0 0
        %1203 = vmatpush1.bf16.msra.mxu0 0
        %1204 = vmatprep.subr.bf16.mxu0 0
        %1205 = vmatpush1.bf16.msra.mxu0 0
        %1206 = vmatprep.subr.bf16.mxu0 0
        %1207 = vmatpush1.bf16.msra.mxu0 0
        %1208 = vmatprep.subr.bf16.mxu0 0
        %1209 = vmatpush1.bf16.msra.mxu0 0
        %1210 = vmatprep.subr.bf16.mxu0 0
        %1211 = vmatpush1.bf16.msra.mxu0 0
        %1212 = vmatprep.subr.bf16.mxu0 0
        %1213 = vmatpush1.bf16.msra.mxu0 0
        %1214 = vmatprep.subr.bf16.mxu0 0
        %1215 = vmatpush1.bf16.msra.mxu0 0
        %1216 = vmatprep.mubr.bf16.mxu0 0
        %1217 = vmatmul.mubr.bf16.gmra.mrb[0].mxu0 %v1179
        %v1218 = vpop.f32.mrb[0].mxu0
        %v1219 = vadd.f32 %v1173, %v1218
        %v1220 = vpop.f32.mrb[0].mxu0
        %v1221 = vpop.f32.mrb[0].mxu0
        %v1222 = vpop.f32.mrb[0].mxu0
        %1223 = vdwg.mxu0
        %1224 = vrot.lane.b32.xlu0 %v905, 112
        %v1225 = vpop.permute.xlu0 %1224
        %1226 = vrot.lane.b32.xlu0 %v906, 112
        %v1227 = vpop.permute.xlu0 %1226
        %v1229 = vsel %vm908, %v1225, 0
        %v1232 = vsel %vm908, %v1227, 0
        %1234 = vmatprep.subr.bf16.mxu0 0
        %1235 = vmatpush1.bf16.xpose.msra.mxu0 %v1232
        %1236 = vmatprep.subr.bf16.mxu0 0
        %1237 = vmatpush1.bf16.xpose.msra.mxu0 0
        %1238 = vmatprep.subr.bf16.mxu0 0
        %1239 = vmatpush1.bf16.xpose.msra.mxu0 0
        %1240 = vmatprep.subr.bf16.mxu0 0
        %1241 = vmatpush1.bf16.xpose.msra.mxu0 0
        %1242 = vmatprep.subr.bf16.mxu0 0
        %1243 = vmatpush1.bf16.xpose.msra.mxu0 0
        %1244 = vmatprep.subr.bf16.mxu0 0
        %1245 = vmatpush1.bf16.xpose.msra.mxu0 0
        %1246 = vmatprep.subr.bf16.mxu0 0
        %1247 = vmatpush1.bf16.xpose.msra.mxu0 0
        %1248 = vmatprep.subr.bf16.mxu0 0
        %1249 = vmatpush1.bf16.xpose.msra.mxu0 0
        %1250 = vmatprep.subr.bf16.mxu0 0
        %1251 = vmatpush1.bf16.xpose.msra.mxu0 0
        %1252 = vmatprep.subr.bf16.mxu0 0
        %1253 = vmatpush1.bf16.xpose.msra.mxu0 0
        %1254 = vmatprep.subr.bf16.mxu0 0
        %1255 = vmatpush1.bf16.xpose.msra.mxu0 0
        %1256 = vmatprep.subr.bf16.mxu0 0
        %1257 = vmatpush1.bf16.xpose.msra.mxu0 0
        %1258 = vmatprep.subr.bf16.mxu0 0
        %1259 = vmatpush1.bf16.xpose.msra.mxu0 0
        %1260 = vmatprep.subr.bf16.mxu0 0
        %1261 = vmatpush1.bf16.xpose.msra.mxu0 0
        %1262 = vmatprep.subr.bf16.mxu0 0
        %1263 = vmatpush1.bf16.xpose.msra.mxu0 0
        %1264 = vmatprep.subr.bf16.mxu0 0
        %1265 = vmatpush1.bf16.xpose.msra.mxu0 0
        %1266 = vmatprep.mubr.bf16.mxu0 0
        %1267 = vmatmul.mubr.bf16.gmra.mrb[0].mxu0 %v1229
        %v1268 = vpop.f32.mrb[0].mxu0
        %v1269 = vadd.f32 0.0, %v1268
        %v1270 = vpop.f32.mrb[0].mxu0
        %v1271 = vpop.f32.mrb[0].mxu0
        %v1272 = vpop.f32.mrb[0].mxu0
        %1273 = vdwg.mxu0
        %v1274 = vsel %vm908, %v1269, -inf
        %1275 = vmax.xlane.f32.xlu0 %v1274
        %v1276 = vpop.xlane.xlu0 %1275
        %v1277 = vsub.f32 %v1269, %v1276
        %v1278 = vmul.f32 %v1277, 1.442695
        %v1279 = vpow.pop %v1278
        %v1280 = vsel %vm908, %v1279, 0.0
        %1281 = vadd.xlane.f32.xlu0 %v1280
        %v1282 = vpop.xlane.xlu0 %1281
        %v1283 = vrcp.pop %v1282
        %v1284 = vpack.c.bf16 %v1279, %v1279
        %1285 = vrot.lane.b32.xlu0 %v907, 112
        %v1286 = vpop.permute.xlu0 %1285
        %v1288 = vsel %vm908, %v1284, 0
        %v1291 = vsel %vm969, %v1286, 0
        %1293 = vmatprep.subr.bf16.mxu0 0
        %1294 = vmatpush1.bf16.msra.mxu0 %v1291
        %1295 = vmatprep.subr.bf16.mxu0 0
        %1296 = vmatpush1.bf16.msra.mxu0 0
        %1297 = vmatprep.subr.bf16.mxu0 0
        %1298 = vmatpush1.bf16.msra.mxu0 0
        %1299 = vmatprep.subr.bf16.mxu0 0
        %1300 = vmatpush1.bf16.msra.mxu0 0
        %1301 = vmatprep.subr.bf16.mxu0 0
        %1302 = vmatpush1.bf16.msra.mxu0 0
        %1303 = vmatprep.subr.bf16.mxu0 0
        %1304 = vmatpush1.bf16.msra.mxu0 0
        %1305 = vmatprep.subr.bf16.mxu0 0
        %1306 = vmatpush1.bf16.msra.mxu0 0
        %1307 = vmatprep.subr.bf16.mxu0 0
        %1308 = vmatpush1.bf16.msra.mxu0 0
        %1309 = vmatprep.subr.bf16.mxu0 0
        %1310 = vmatpush1.bf16.msra.mxu0 0
        %1311 = vmatprep.subr.bf16.mxu0 0
        %1312 = vmatpush1.bf16.msra.mxu0 0
        %1313 = vmatprep.subr.bf16.mxu0 0
        %1314 = vmatpush1.bf16.msra.mxu0 0
        %1315 = vmatprep.subr.bf16.mxu0 0
        %1316 = vmatpush1.bf16.msra.mxu0 0
        %1317 = vmatprep.subr.bf16.mxu0 0
        %1318 = vmatpush1.bf16.msra.mxu0 0
        %1319 = vmatprep.subr.bf16.mxu0 0
        %1320 = vmatpush1.bf16.msra.mxu0 0
        %1321 = vmatprep.subr.bf16.mxu0 0
        %1322 = vmatpush1.bf16.msra.mxu0 0
        %1323 = vmatprep.subr.bf16.mxu0 0
        %1324 = vmatpush1.bf16.msra.mxu0 0
        %1325 = vmatprep.mubr.bf16.mxu0 0
        %1326 = vmatmul.mubr.bf16.gmra.mrb[0].mxu0 %v1288
        %v1327 = vpop.f32.mrb[0].mxu0
        %v1328 = vadd.f32 0.0, %v1327
        %v1329 = vpop.f32.mrb[0].mxu0
        %v1330 = vpop.f32.mrb[0].mxu0
        %v1331 = vpop.f32.mrb[0].mxu0
        %1332 = vdwg.mxu0
        %v1333 = vmul.f32 %v1328, %v1283
        %v1334 = vpack.c.bf16 %v1333, %v1333
        %s1335 = scalar_lea.vmem [#allocation8], 8
        %v1336 = vld [vmem:[%s1335] sm:$0xf]
        %v1338 = vsel %vm908, %v1334, 0
        %v1341 = vsel %vm969, %v1336, 0
        %1343 = vmatprep.subr.bf16.mxu0 0
        %1344 = vmatpush1.bf16.msra.mxu0 %v1341
        %1345 = vmatprep.subr.bf16.mxu0 0
        %1346 = vmatpush1.bf16.msra.mxu0 0
        %1347 = vmatprep.subr.bf16.mxu0 0
        %1348 = vmatpush1.bf16.msra.mxu0 0
        %1349 = vmatprep.subr.bf16.mxu0 0
        %1350 = vmatpush1.bf16.msra.mxu0 0
        %1351 = vmatprep.subr.bf16.mxu0 0
        %1352 = vmatpush1.bf16.msra.mxu0 0
        %1353 = vmatprep.subr.bf16.mxu0 0
        %1354 = vmatpush1.bf16.msra.mxu0 0
        %1355 = vmatprep.subr.bf16.mxu0 0
        %1356 = vmatpush1.bf16.msra.mxu0 0
        %1357 = vmatprep.subr.bf16.mxu0 0
        %1358 = vmatpush1.bf16.msra.mxu0 0
        %1359 = vmatprep.subr.bf16.mxu0 0
        %1360 = vmatpush1.bf16.msra.mxu0 0
        %1361 = vmatprep.subr.bf16.mxu0 0
        %1362 = vmatpush1.bf16.msra.mxu0 0
        %1363 = vmatprep.subr.bf16.mxu0 0
        %1364 = vmatpush1.bf16.msra.mxu0 0
        %1365 = vmatprep.subr.bf16.mxu0 0
        %1366 = vmatpush1.bf16.msra.mxu0 0
        %1367 = vmatprep.subr.bf16.mxu0 0
        %1368 = vmatpush1.bf16.msra.mxu0 0
        %1369 = vmatprep.subr.bf16.mxu0 0
        %1370 = vmatpush1.bf16.msra.mxu0 0
        %1371 = vmatprep.subr.bf16.mxu0 0
        %1372 = vmatpush1.bf16.msra.mxu0 0
        %1373 = vmatprep.subr.bf16.mxu0 0
        %1374 = vmatpush1.bf16.msra.mxu0 0
        %1375 = vmatprep.mubr.bf16.mxu0 0
        %1376 = vmatmul.mubr.bf16.gmra.mrb[0].mxu0 %v1338
        %v1377 = vpop.f32.mrb[0].mxu0
        %v1378 = vadd.f32 0.0, %v1377
        %v1379 = vpop.f32.mrb[0].mxu0
        %v1380 = vpop.f32.mrb[0].mxu0
        %v1381 = vpop.f32.mrb[0].mxu0
        %1382 = vdwg.mxu0
        %v1383 = vadd.f32 %v1219, %v1378
        %1384 = vrot.lane.b32.xlu0 %v905, 104
        %v1385 = vpop.permute.xlu0 %1384
        %1386 = vrot.lane.b32.xlu0 %v906, 104
        %v1387 = vpop.permute.xlu0 %1386
        %v1389 = vsel %vm908, %v1385, 0
        %v1392 = vsel %vm908, %v1387, 0
        %1394 = vmatprep.subr.bf16.mxu0 0
        %1395 = vmatpush1.bf16.xpose.msra.mxu0 %v1392
        %1396 = vmatprep.subr.bf16.mxu0 0
        %1397 = vmatpush1.bf16.xpose.msra.mxu0 0
        %1398 = vmatprep.subr.bf16.mxu0 0
        %1399 = vmatpush1.bf16.xpose.msra.mxu0 0
        %1400 = vmatprep.subr.bf16.mxu0 0
        %1401 = vmatpush1.bf16.xpose.msra.mxu0 0
        %1402 = vmatprep.subr.bf16.mxu0 0
        %1403 = vmatpush1.bf16.xpose.msra.mxu0 0
        %1404 = vmatprep.subr.bf16.mxu0 0
        %1405 = vmatpush1.bf16.xpose.msra.mxu0 0
        %1406 = vmatprep.subr.bf16.mxu0 0
        %1407 = vmatpush1.bf16.xpose.msra.mxu0 0
        %1408 = vmatprep.subr.bf16.mxu0 0
        %1409 = vmatpush1.bf16.xpose.msra.mxu0 0
        %1410 = vmatprep.subr.bf16.mxu0 0
        %1411 = vmatpush1.bf16.xpose.msra.mxu0 0
        %1412 = vmatprep.subr.bf16.mxu0 0
        %1413 = vmatpush1.bf16.xpose.msra.mxu0 0
        %1414 = vmatprep.subr.bf16.mxu0 0
        %1415 = vmatpush1.bf16.xpose.msra.mxu0 0
        %1416 = vmatprep.subr.bf16.mxu0 0
        %1417 = vmatpush1.bf16.xpose.msra.mxu0 0
        %1418 = vmatprep.subr.bf16.mxu0 0
        %1419 = vmatpush1.bf16.xpose.msra.mxu0 0
        %1420 = vmatprep.subr.bf16.mxu0 0
        %1421 = vmatpush1.bf16.xpose.msra.mxu0 0
        %1422 = vmatprep.subr.bf16.mxu0 0
        %1423 = vmatpush1.bf16.xpose.msra.mxu0 0
        %1424 = vmatprep.subr.bf16.mxu0 0
        %1425 = vmatpush1.bf16.xpose.msra.mxu0 0
        %1426 = vmatprep.mubr.bf16.mxu0 0
        %1427 = vmatmul.mubr.bf16.gmra.mrb[0].mxu0 %v1389
        %v1428 = vpop.f32.mrb[0].mxu0
        %v1429 = vadd.f32 0.0, %v1428
        %v1430 = vpop.f32.mrb[0].mxu0
        %v1431 = vpop.f32.mrb[0].mxu0
        %v1432 = vpop.f32.mrb[0].mxu0
        %1433 = vdwg.mxu0
        %v1434 = vsel %vm908, %v1429, -inf
        %1435 = vmax.xlane.f32.xlu0 %v1434
        %v1436 = vpop.xlane.xlu0 %1435
        %v1437 = vsub.f32 %v1429, %v1436
        %v1438 = vmul.f32 %v1437, 1.442695
        %v1439 = vpow.pop %v1438
        %v1440 = vsel %vm908, %v1439, 0.0
        %1441 = vadd.xlane.f32.xlu0 %v1440
        %v1442 = vpop.xlane.xlu0 %1441
        %v1443 = vrcp.pop %v1442
        %v1444 = vpack.c.bf16 %v1439, %v1439
        %1445 = vrot.lane.b32.xlu0 %v907, 104
        %v1446 = vpop.permute.xlu0 %1445
        %v1448 = vsel %vm908, %v1444, 0
        %v1451 = vsel %vm969, %v1446, 0
        %1453 = vmatprep.subr.bf16.mxu0 0
        %1454 = vmatpush1.bf16.msra.mxu0 %v1451
        %1455 = vmatprep.subr.bf16.mxu0 0
        %1456 = vmatpush1.bf16.msra.mxu0 0
        %1457 = vmatprep.subr.bf16.mxu0 0
        %1458 = vmatpush1.bf16.msra.mxu0 0
        %1459 = vmatprep.subr.bf16.mxu0 0
        %1460 = vmatpush1.bf16.msra.mxu0 0
        %1461 = vmatprep.subr.bf16.mxu0 0
        %1462 = vmatpush1.bf16.msra.mxu0 0
        %1463 = vmatprep.subr.bf16.mxu0 0
        %1464 = vmatpush1.bf16.msra.mxu0 0
        %1465 = vmatprep.subr.bf16.mxu0 0
        %1466 = vmatpush1.bf16.msra.mxu0 0
        %1467 = vmatprep.subr.bf16.mxu0 0
        %1468 = vmatpush1.bf16.msra.mxu0 0
        %1469 = vmatprep.subr.bf16.mxu0 0
        %1470 = vmatpush1.bf16.msra.mxu0 0
        %1471 = vmatprep.subr.bf16.mxu0 0
        %1472 = vmatpush1.bf16.msra.mxu0 0
        %1473 = vmatprep.subr.bf16.mxu0 0
        %1474 = vmatpush1.bf16.msra.mxu0 0
        %1475 = vmatprep.subr.bf16.mxu0 0
        %1476 = vmatpush1.bf16.msra.mxu0 0
        %1477 = vmatprep.subr.bf16.mxu0 0
        %1478 = vmatpush1.bf16.msra.mxu0 0
        %1479 = vmatprep.subr.bf16.mxu0 0
        %1480 = vmatpush1.bf16.msra.mxu0 0
        %1481 = vmatprep.subr.bf16.mxu0 0
        %1482 = vmatpush1.bf16.msra.mxu0 0
        %1483 = vmatprep.subr.bf16.mxu0 0
        %1484 = vmatpush1.bf16.msra.mxu0 0
        %1485 = vmatprep.mubr.bf16.mxu0 0
        %1486 = vmatmul.mubr.bf16.gmra.mrb[0].mxu0 %v1448
        %v1487 = vpop.f32.mrb[0].mxu0
        %v1488 = vadd.f32 0.0, %v1487
        %v1489 = vpop.f32.mrb[0].mxu0
        %v1490 = vpop.f32.mrb[0].mxu0
        %v1491 = vpop.f32.mrb[0].mxu0
        %1492 = vdwg.mxu0
        %v1493 = vmul.f32 %v1488, %v1443
        %v1494 = vpack.c.bf16 %v1493, %v1493
        %s1495 = scalar_lea.vmem [#allocation8], 12
        %v1496 = vld [vmem:[%s1495] sm:$0xf]
        %v1498 = vsel %vm908, %v1494, 0
        %v1501 = vsel %vm969, %v1496, 0
        %1503 = vmatprep.subr.bf16.mxu0 0
        %1504 = vmatpush1.bf16.msra.mxu0 %v1501
        %1505 = vmatprep.subr.bf16.mxu0 0
        %1506 = vmatpush1.bf16.msra.mxu0 0
        %1507 = vmatprep.subr.bf16.mxu0 0
        %1508 = vmatpush1.bf16.msra.mxu0 0
        %1509 = vmatprep.subr.bf16.mxu0 0
        %1510 = vmatpush1.bf16.msra.mxu0 0
        %1511 = vmatprep.subr.bf16.mxu0 0
        %1512 = vmatpush1.bf16.msra.mxu0 0
        %1513 = vmatprep.subr.bf16.mxu0 0
        %1514 = vmatpush1.bf16.msra.mxu0 0
        %1515 = vmatprep.subr.bf16.mxu0 0
        %1516 = vmatpush1.bf16.msra.mxu0 0
        %1517 = vmatprep.subr.bf16.mxu0 0
        %1518 = vmatpush1.bf16.msra.mxu0 0
        %1519 = vmatprep.subr.bf16.mxu0 0
        %1520 = vmatpush1.bf16.msra.mxu0 0
        %1521 = vmatprep.subr.bf16.mxu0 0
        %1522 = vmatpush1.bf16.msra.mxu0 0
        %1523 = vmatprep.subr.bf16.mxu0 0
        %1524 = vmatpush1.bf16.msra.mxu0 0
        %1525 = vmatprep.subr.bf16.mxu0 0
        %1526 = vmatpush1.bf16.msra.mxu0 0
        %1527 = vmatprep.subr.bf16.mxu0 0
        %1528 = vmatpush1.bf16.msra.mxu0 0
        %1529 = vmatprep.subr.bf16.mxu0 0
        %1530 = vmatpush1.bf16.msra.mxu0 0
        %1531 = vmatprep.subr.bf16.mxu0 0
        %1532 = vmatpush1.bf16.msra.mxu0 0
        %1533 = vmatprep.subr.bf16.mxu0 0
        %1534 = vmatpush1.bf16.msra.mxu0 0
        %1535 = vmatprep.mubr.bf16.mxu0 0
        %1536 = vmatmul.mubr.bf16.gmra.mrb[0].mxu0 %v1498
        %v1537 = vpop.f32.mrb[0].mxu0
        %v1538 = vadd.f32 0.0, %v1537
        %v1539 = vpop.f32.mrb[0].mxu0
        %v1540 = vpop.f32.mrb[0].mxu0
        %v1541 = vpop.f32.mrb[0].mxu0
        %1542 = vdwg.mxu0
        %v1543 = vadd.f32 %v1383, %v1538
        %v1544 = vld [vmem:[#allocation10] sm:$0x1]
        %v1546 = vlaneseq
        %v1547 = vshrl.u32 %v1546, 7
        %v1548 = vsub.s32 0, %v1547
        %v1549 = vrot.slane %v1544, %v1548
        %v1551 = vadd.f32 %v1543, %v1549
        %v1552 = vadd.f32 %v706, %v1551
        %v1553 = vld [vmem:[#allocation23] sm:$0x1]
        %v1554 = vld [vmem:[#allocation25] sm:$0x1]
        %v1555 = vsel %vm731, %v1552, 0.0
        %1556 = vadd.xlane.f32.xlu0 %v1555
        %v1557 = vpop.xlane.xlu0 %1556
        %v1558 = vrcp.pop 32.0
        %v1559 = vmul.f32 %v1557, %v1558
        %v1560 = vsub.f32 %v1552, %v1559
        %v1561 = vmul.f32 %v1560, %v1560
        %v1562 = vsel %vm731, %v1561, 0.0
        %1563 = vadd.xlane.f32.xlu0 %v1562
        %v1564 = vpop.xlane.xlu0 %1563
        %v1565 = vmul.f32 %v1564, %v1558
        %v1566 = vadd.f32 %v1565, 1e-05
        %v1567 = vrsqrt.pop %v1566
        %v1568 = vmul.f32 %v1560, %v1567
        %v1570 = vlaneseq
        %v1571 = vshrl.u32 %v1570, 7
        %v1572 = vsub.s32 0, %v1571
        %v1573 = vrot.slane %v1553, %v1572
        %v1575 = vmul.f32 %v1568, %v1573
        %v1577 = vlaneseq
        %v1578 = vshrl.u32 %v1577, 7
        %v1579 = vsub.s32 0, %v1578
        %v1580 = vrot.slane %v1554, %v1579
        %v1582 = vadd.f32 %v1575, %v1580
        %s1583 = scalar_lea.vmem [#allocation23], 1
        %v1584 = vld [vmem:[%s1583] sm:$0x1]
        %s1585 = scalar_lea.vmem [#allocation25], 1
        %v1586 = vld [vmem:[%s1585] sm:$0x1]
        %v1587 = vsel %vm731, %v1582, 0.0
        %1588 = vadd.xlane.f32.xlu0 %v1587
        %v1589 = vpop.xlane.xlu0 %1588
        %v1590 = vmul.f32 %v1589, %v1558
        %v1591 = vsub.f32 %v1582, %v1590
        %v1592 = vmul.f32 %v1591, %v1591
        %v1593 = vsel %vm731, %v1592, 0.0
        %1594 = vadd.xlane.f32.xlu0 %v1593
        %v1595 = vpop.xlane.xlu0 %1594
        %v1596 = vmul.f32 %v1595, %v1558
        %v1597 = vadd.f32 %v1596, 1e-05
        %v1598 = vrsqrt.pop %v1597
        %v1599 = vmul.f32 %v1591, %v1598
        %v1601 = vlaneseq
        %v1602 = vshrl.u32 %v1601, 7
        %v1603 = vsub.s32 0, %v1602
        %v1604 = vrot.slane %v1584, %v1603
        %v1606 = vmul.f32 %v1599, %v1604
        %v1608 = vlaneseq
        %v1609 = vshrl.u32 %v1608, 7
        %v1610 = vsub.s32 0, %v1609
        %v1611 = vrot.slane %v1586, %v1610
        %v1613 = vadd.f32 %v1606, %v1611
        %v1614 = vpack.c.bf16 %v1613, %v1613
        %v1615 = vld [vmem:[#allocation11] sm:$0xf]
        %v1616 = vld [vmem:[#allocation11 + $0x4] sm:$0xf]
        %v1617 = vld [vmem:[#allocation11 + $0x8] sm:$0xf]
        %v1618 = vld [vmem:[#allocation11 + $0xc] sm:$0xf]
        %v1619 = vld [vmem:[#allocation13] sm:$0x1]
        %v1621 = vlaneseq
        %v1622 = vshrl.u32 %v1621, 7
        %v1623 = vsub.s32 0, %v1622
        %v1624 = vrot.slane %v1619, %v1623
        %v1630 = vunpack.c.l.b16 %v1615
        %v1631 = vunpack.c.l.b16 %v1616
        %v1632 = vunpack.c.l.b16 %v1617
        %v1633 = vunpack.c.l.b16 %v1618
        %v1634 = vpack.c.b16 %v1631, %v1630
        %v1635 = vpack.c.b16 %v1633, %v1632
        %v1639 = vsel %vm731, %v1614, 0
        %1641 = vmatprep.subr.bf16.mxu0 0
        %1642 = vmatpush1.bf16.msra.mxu0 %v1634
        %1643 = vmatprep.subr.bf16.mxu0 0
        %1644 = vmatpush1.bf16.msra.mxu0 %v1635
        %1645 = vmatprep.subr.bf16.mxu0 0
        %1646 = vmatpush1.bf16.msra.mxu0 0
        %1647 = vmatprep.subr.bf16.mxu0 0
        %1648 = vmatpush1.bf16.msra.mxu0 0
        %1649 = vmatprep.subr.bf16.mxu0 0
        %1650 = vmatpush1.bf16.msra.mxu0 0
        %1651 = vmatprep.subr.bf16.mxu0 0
        %1652 = vmatpush1.bf16.msra.mxu0 0
        %1653 = vmatprep.subr.bf16.mxu0 0
        %1654 = vmatpush1.bf16.msra.mxu0 0
        %1655 = vmatprep.subr.bf16.mxu0 0
        %1656 = vmatpush1.bf16.msra.mxu0 0
        %1657 = vmatprep.subr.bf16.mxu0 0
        %1658 = vmatpush1.bf16.msra.mxu0 0
        %1659 = vmatprep.subr.bf16.mxu0 0
        %1660 = vmatpush1.bf16.msra.mxu0 0
        %1661 = vmatprep.subr.bf16.mxu0 0
        %1662 = vmatpush1.bf16.msra.mxu0 0
        %1663 = vmatprep.subr.bf16.mxu0 0
        %1664 = vmatpush1.bf16.msra.mxu0 0
        %1665 = vmatprep.subr.bf16.mxu0 0
        %1666 = vmatpush1.bf16.msra.mxu0 0
        %1667 = vmatprep.subr.bf16.mxu0 0
        %1668 = vmatpush1.bf16.msra.mxu0 0
        %1669 = vmatprep.subr.bf16.mxu0 0
        %1670 = vmatpush1.bf16.msra.mxu0 0
        %1671 = vmatprep.subr.bf16.mxu0 0
        %1672 = vmatpush1.bf16.msra.mxu0 0
        %1673 = vmatprep.mubr.bf16.mxu0 0
        %1674 = vmatmul.mubr.bf16.gmra.mrb[0].mxu0 %v1639
        %v1675 = vpop.f32.mrb[0].mxu0
        %v1676 = vadd.f32 %v1624, %v1675
        %v1677 = vpop.f32.mrb[0].mxu0
        %v1678 = vpop.f32.mrb[0].mxu0
        %v1679 = vpop.f32.mrb[0].mxu0
        %1680 = vdwg.mxu0
        %s1681 = scalar_lea.vmem [#allocation11], 16
        %v1682 = vld [vmem:[%s1681] sm:$0xf]
        %v1683 = vld [vmem:[%s1681 + $0x4] sm:$0xf]
        %v1684 = vld [vmem:[%s1681 + $0x8] sm:$0xf]
        %v1685 = vld [vmem:[%s1681 + $0xc] sm:$0xf]
        %s1686 = scalar_lea.vmem [#allocation13], 1
        %v1687 = vld [vmem:[%s1686] sm:$0x1]
        %v1689 = vlaneseq
        %v1690 = vshrl.u32 %v1689, 7
        %v1691 = vsub.s32 0, %v1690
        %v1692 = vrot.slane %v1687, %v1691
        %v1698 = vunpack.c.l.b16 %v1682
        %v1699 = vunpack.c.l.b16 %v1683
        %v1700 = vunpack.c.l.b16 %v1684
        %v1701 = vunpack.c.l.b16 %v1685
        %v1702 = vpack.c.b16 %v1699, %v1698
        %v1703 = vpack.c.b16 %v1701, %v1700
        %1706 = vmatprep.subr.bf16.mxu0 0
        %1707 = vmatpush1.bf16.msra.mxu0 %v1702
        %1708 = vmatprep.subr.bf16.mxu0 0
        %1709 = vmatpush1.bf16.msra.mxu0 %v1703
        %1710 = vmatprep.subr.bf16.mxu0 0
        %1711 = vmatpush1.bf16.msra.mxu0 0
        %1712 = vmatprep.subr.bf16.mxu0 0
        %1713 = vmatpush1.bf16.msra.mxu0 0
        %1714 = vmatprep.subr.bf16.mxu0 0
        %1715 = vmatpush1.bf16.msra.mxu0 0
        %1716 = vmatprep.subr.bf16.mxu0 0
        %1717 = vmatpush1.bf16.msra.mxu0 0
        %1718 = vmatprep.subr.bf16.mxu0 0
        %1719 = vmatpush1.bf16.msra.mxu0 0
        %1720 = vmatprep.subr.bf16.mxu0 0
        %1721 = vmatpush1.bf16.msra.mxu0 0
        %1722 = vmatprep.subr.bf16.mxu0 0
        %1723 = vmatpush1.bf16.msra.mxu0 0
        %1724 = vmatprep.subr.bf16.mxu0 0
        %1725 = vmatpush1.bf16.msra.mxu0 0
        %1726 = vmatprep.subr.bf16.mxu0 0
        %1727 = vmatpush1.bf16.msra.mxu0 0
        %1728 = vmatprep.subr.bf16.mxu0 0
        %1729 = vmatpush1.bf16.msra.mxu0 0
        %1730 = vmatprep.subr.bf16.mxu0 0
        %1731 = vmatpush1.bf16.msra.mxu0 0
        %1732 = vmatprep.subr.bf16.mxu0 0
        %1733 = vmatpush1.bf16.msra.mxu0 0
        %1734 = vmatprep.subr.bf16.mxu0 0
        %1735 = vmatpush1.bf16.msra.mxu0 0
        %1736 = vmatprep.subr.bf16.mxu0 0
        %1737 = vmatpush1.bf16.msra.mxu0 0
        %1738 = vmatprep.mubr.bf16.mxu0 0
        %1739 = vmatmul.mubr.bf16.gmra.mrb[0].mxu0 %v1639
        %v1740 = vpop.f32.mrb[0].mxu0
        %v1741 = vadd.f32 %v1692, %v1740
        %v1742 = vpop.f32.mrb[0].mxu0
        %v1743 = vpop.f32.mrb[0].mxu0
        %v1744 = vpop.f32.mrb[0].mxu0
        %1745 = vdwg.mxu0
        %s1746 = scalar_lea.vmem [#allocation11], 32
        %v1747 = vld [vmem:[%s1746] sm:$0xf]
        %v1748 = vld [vmem:[%s1746 + $0x4] sm:$0xf]
        %v1749 = vld [vmem:[%s1746 + $0x8] sm:$0xf]
        %v1750 = vld [vmem:[%s1746 + $0xc] sm:$0xf]
        %s1751 = scalar_lea.vmem [#allocation13], 2
        %v1752 = vld [vmem:[%s1751] sm:$0x1]
        %v1754 = vlaneseq
        %v1755 = vshrl.u32 %v1754, 7
        %v1756 = vsub.s32 0, %v1755
        %v1757 = vrot.slane %v1752, %v1756
        %v1763 = vunpack.c.l.b16 %v1747
        %v1764 = vunpack.c.l.b16 %v1748
        %v1765 = vunpack.c.l.b16 %v1749
        %v1766 = vunpack.c.l.b16 %v1750
        %v1767 = vpack.c.b16 %v1764, %v1763
        %v1768 = vpack.c.b16 %v1766, %v1765
        %1771 = vmatprep.subr.bf16.mxu0 0
        %1772 = vmatpush1.bf16.msra.mxu0 %v1767
        %1773 = vmatprep.subr.bf16.mxu0 0
        %1774 = vmatpush1.bf16.msra.mxu0 %v1768
        %1775 = vmatprep.subr.bf16.mxu0 0
        %1776 = vmatpush1.bf16.msra.mxu0 0
        %1777 = vmatprep.subr.bf16.mxu0 0
        %1778 = vmatpush1.bf16.msra.mxu0 0
        %1779 = vmatprep.subr.bf16.mxu0 0
        %1780 = vmatpush1.bf16.msra.mxu0 0
        %1781 = vmatprep.subr.bf16.mxu0 0
        %1782 = vmatpush1.bf16.msra.mxu0 0
        %1783 = vmatprep.subr.bf16.mxu0 0
        %1784 = vmatpush1.bf16.msra.mxu0 0
        %1785 = vmatprep.subr.bf16.mxu0 0
        %1786 = vmatpush1.bf16.msra.mxu0 0
        %1787 = vmatprep.subr.bf16.mxu0 0
        %1788 = vmatpush1.bf16.msra.mxu0 0
        %1789 = vmatprep.subr.bf16.mxu0 0
        %1790 = vmatpush1.bf16.msra.mxu0 0
        %1791 = vmatprep.subr.bf16.mxu0 0
        %1792 = vmatpush1.bf16.msra.mxu0 0
        %1793 = vmatprep.subr.bf16.mxu0 0
        %1794 = vmatpush1.bf16.msra.mxu0 0
        %1795 = vmatprep.subr.bf16.mxu0 0
        %1796 = vmatpush1.bf16.msra.mxu0 0
        %1797 = vmatprep.subr.bf16.mxu0 0
        %1798 = vmatpush1.bf16.msra.mxu0 0
        %1799 = vmatprep.subr.bf16.mxu0 0
        %1800 = vmatpush1.bf16.msra.mxu0 0
        %1801 = vmatprep.subr.bf16.mxu0 0
        %1802 = vmatpush1.bf16.msra.mxu0 0
        %1803 = vmatprep.mubr.bf16.mxu0 0
        %1804 = vmatmul.mubr.bf16.gmra.mrb[0].mxu0 %v1639
        %v1805 = vpop.f32.mrb[0].mxu0
        %v1806 = vadd.f32 %v1757, %v1805
        %v1807 = vpop.f32.mrb[0].mxu0
        %v1808 = vpop.f32.mrb[0].mxu0
        %v1809 = vpop.f32.mrb[0].mxu0
        %1810 = vdwg.mxu0
        %v1811 = vpack.c.bf16 %v1676, %v1676
        %v1812 = vpack.c.bf16 %v1741, %v1741
        %v1813 = vpack.c.bf16 %v1806, %v1806
        %v1815 = vsel %vm908, %v1811, 0
        %v1818 = vsel %vm908, %v1812, 0
        %1820 = vmatprep.subr.bf16.mxu0 0
        %1821 = vmatpush1.bf16.xpose.msra.mxu0 %v1818
        %1822 = vmatprep.subr.bf16.mxu0 0
        %1823 = vmatpush1.bf16.xpose.msra.mxu0 0
        %1824 = vmatprep.subr.bf16.mxu0 0
        %1825 = vmatpush1.bf16.xpose.msra.mxu0 0
        %1826 = vmatprep.subr.bf16.mxu0 0
        %1827 = vmatpush1.bf16.xpose.msra.mxu0 0
        %1828 = vmatprep.subr.bf16.mxu0 0
        %1829 = vmatpush1.bf16.xpose.msra.mxu0 0
        %1830 = vmatprep.subr.bf16.mxu0 0
        %1831 = vmatpush1.bf16.xpose.msra.mxu0 0
        %1832 = vmatprep.subr.bf16.mxu0 0
        %1833 = vmatpush1.bf16.xpose.msra.mxu0 0
        %1834 = vmatprep.subr.bf16.mxu0 0
        %1835 = vmatpush1.bf16.xpose.msra.mxu0 0
        %1836 = vmatprep.subr.bf16.mxu0 0
        %1837 = vmatpush1.bf16.xpose.msra.mxu0 0
        %1838 = vmatprep.subr.bf16.mxu0 0
        %1839 = vmatpush1.bf16.xpose.msra.mxu0 0
        %1840 = vmatprep.subr.bf16.mxu0 0
        %1841 = vmatpush1.bf16.xpose.msra.mxu0 0
        %1842 = vmatprep.subr.bf16.mxu0 0
        %1843 = vmatpush1.bf16.xpose.msra.mxu0 0
        %1844 = vmatprep.subr.bf16.mxu0 0
        %1845 = vmatpush1.bf16.xpose.msra.mxu0 0
        %1846 = vmatprep.subr.bf16.mxu0 0
        %1847 = vmatpush1.bf16.xpose.msra.mxu0 0
        %1848 = vmatprep.subr.bf16.mxu0 0
        %1849 = vmatpush1.bf16.xpose.msra.mxu0 0
        %1850 = vmatprep.subr.bf16.mxu0 0
        %1851 = vmatpush1.bf16.xpose.msra.mxu0 0
        %1852 = vmatprep.mubr.bf16.mxu0 0
        %1853 = vmatmul.mubr.bf16.gmra.mrb[0].mxu0 %v1815
        %v1854 = vpop.f32.mrb[0].mxu0
        %v1855 = vadd.f32 0.0, %v1854
        %v1856 = vpop.f32.mrb[0].mxu0
        %v1857 = vpop.f32.mrb[0].mxu0
        %v1858 = vpop.f32.mrb[0].mxu0
        %1859 = vdwg.mxu0
        %v1860 = vsel %vm908, %v1855, -inf
        %1861 = vmax.xlane.f32.xlu0 %v1860
        %v1862 = vpop.xlane.xlu0 %1861
        %v1863 = vsub.f32 %v1855, %v1862
        %v1864 = vmul.f32 %v1863, 1.442695
        %v1865 = vpow.pop %v1864
        %v1866 = vsel %vm908, %v1865, 0.0
        %1867 = vadd.xlane.f32.xlu0 %v1866
        %v1868 = vpop.xlane.xlu0 %1867
        %v1869 = vrcp.pop %v1868
        %v1870 = vpack.c.bf16 %v1865, %v1865
        %v1872 = vsel %vm908, %v1870, 0
        %v1875 = vsel %vm969, %v1813, 0
        %1877 = vmatprep.subr.bf16.mxu0 0
        %1878 = vmatpush1.bf16.msra.mxu0 %v1875
        %1879 = vmatprep.subr.bf16.mxu0 0
        %1880 = vmatpush1.bf16.msra.mxu0 0
        %1881 = vmatprep.subr.bf16.mxu0 0
        %1882 = vmatpush1.bf16.msra.mxu0 0
        %1883 = vmatprep.subr.bf16.mxu0 0
        %1884 = vmatpush1.bf16.msra.mxu0 0
        %1885 = vmatprep.subr.bf16.mxu0 0
        %1886 = vmatpush1.bf16.msra.mxu0 0
        %1887 = vmatprep.subr.bf16.mxu0 0
        %1888 = vmatpush1.bf16.msra.mxu0 0
        %1889 = vmatprep.subr.bf16.mxu0 0
        %1890 = vmatpush1.bf16.msra.mxu0 0
        %1891 = vmatprep.subr.bf16.mxu0 0
        %1892 = vmatpush1.bf16.msra.mxu0 0
        %1893 = vmatprep.subr.bf16.mxu0 0
        %1894 = vmatpush1.bf16.msra.mxu0 0
        %1895 = vmatprep.subr.bf16.mxu0 0
        %1896 = vmatpush1.bf16.msra.mxu0 0
        %1897 = vmatprep.subr.bf16.mxu0 0
        %1898 = vmatpush1.bf16.msra.mxu0 0
        %1899 = vmatprep.subr.bf16.mxu0 0
        %1900 = vmatpush1.bf16.msra.mxu0 0
        %1901 = vmatprep.subr.bf16.mxu0 0
        %1902 = vmatpush1.bf16.msra.mxu0 0
        %1903 = vmatprep.subr.bf16.mxu0 0
        %1904 = vmatpush1.bf16.msra.mxu0 0
        %1905 = vmatprep.subr.bf16.mxu0 0
        %1906 = vmatpush1.bf16.msra.mxu0 0
        %1907 = vmatprep.subr.bf16.mxu0 0
        %1908 = vmatpush1.bf16.msra.mxu0 0
        %1909 = vmatprep.mubr.bf16.mxu0 0
        %1910 = vmatmul.mubr.bf16.gmra.mrb[0].mxu0 %v1872
        %v1911 = vpop.f32.mrb[0].mxu0
        %v1912 = vadd.f32 0.0, %v1911
        %v1913 = vpop.f32.mrb[0].mxu0
        %v1914 = vpop.f32.mrb[0].mxu0
        %v1915 = vpop.f32.mrb[0].mxu0
        %1916 = vdwg.mxu0
        %v1917 = vmul.f32 %v1912, %v1869
        %v1918 = vpack.c.bf16 %v1917, %v1917
        %v1919 = vld [vmem:[#allocation14] sm:$0xf]
        %1921 = vrot.lane.b32.xlu0 %v1811, 120
        %v1922 = vpop.permute.xlu0 %1921
        %1924 = vrot.lane.b32.xlu0 %v1812, 120
        %v1925 = vpop.permute.xlu0 %1924
        %v1927 = vsel %vm908, %v1922, 0
        %v1930 = vsel %vm908, %v1925, 0
        %1932 = vmatprep.subr.bf16.mxu0 0
        %1933 = vmatpush1.bf16.xpose.msra.mxu0 %v1930
        %1934 = vmatprep.subr.bf16.mxu0 0
        %1935 = vmatpush1.bf16.xpose.msra.mxu0 0
        %1936 = vmatprep.subr.bf16.mxu0 0
        %1937 = vmatpush1.bf16.xpose.msra.mxu0 0
        %1938 = vmatprep.subr.bf16.mxu0 0
        %1939 = vmatpush1.bf16.xpose.msra.mxu0 0
        %1940 = vmatprep.subr.bf16.mxu0 0
        %1941 = vmatpush1.bf16.xpose.msra.mxu0 0
        %1942 = vmatprep.subr.bf16.mxu0 0
        %1943 = vmatpush1.bf16.xpose.msra.mxu0 0
        %1944 = vmatprep.subr.bf16.mxu0 0
        %1945 = vmatpush1.bf16.xpose.msra.mxu0 0
        %1946 = vmatprep.subr.bf16.mxu0 0
        %1947 = vmatpush1.bf16.xpose.msra.mxu0 0
        %1948 = vmatprep.subr.bf16.mxu0 0
        %1949 = vmatpush1.bf16.xpose.msra.mxu0 0
        %1950 = vmatprep.subr.bf16.mxu0 0
        %1951 = vmatpush1.bf16.xpose.msra.mxu0 0
        %1952 = vmatprep.subr.bf16.mxu0 0
        %1953 = vmatpush1.bf16.xpose.msra.mxu0 0
        %1954 = vmatprep.subr.bf16.mxu0 0
        %1955 = vmatpush1.bf16.xpose.msra.mxu0 0
        %1956 = vmatprep.subr.bf16.mxu0 0
        %1957 = vmatpush1.bf16.xpose.msra.mxu0 0
        %1958 = vmatprep.subr.bf16.mxu0 0
        %1959 = vmatpush1.bf16.xpose.msra.mxu0 0
        %1960 = vmatprep.subr.bf16.mxu0 0
        %1961 = vmatpush1.bf16.xpose.msra.mxu0 0
        %1962 = vmatprep.subr.bf16.mxu0 0
        %1963 = vmatpush1.bf16.xpose.msra.mxu0 0
        %1964 = vmatprep.mubr.bf16.mxu0 0
        %1965 = vmatmul.mubr.bf16.gmra.mrb[0].mxu0 %v1927
        %v1966 = vpop.f32.mrb[0].mxu0
        %v1967 = vadd.f32 0.0, %v1966
        %v1968 = vpop.f32.mrb[0].mxu0
        %v1969 = vpop.f32.mrb[0].mxu0
        %v1970 = vpop.f32.mrb[0].mxu0
        %1971 = vdwg.mxu0
        %v1972 = vsel %vm908, %v1967, -inf
        %1973 = vmax.xlane.f32.xlu0 %v1972
        %v1974 = vpop.xlane.xlu0 %1973
        %v1975 = vsub.f32 %v1967, %v1974
        %v1976 = vmul.f32 %v1975, 1.442695
        %v1977 = vpow.pop %v1976
        %v1978 = vsel %vm908, %v1977, 0.0
        %1979 = vadd.xlane.f32.xlu0 %v1978
        %v1980 = vpop.xlane.xlu0 %1979
        %v1981 = vrcp.pop %v1980
        %v1982 = vpack.c.bf16 %v1977, %v1977
        %1984 = vrot.lane.b32.xlu0 %v1813, 120
        %v1985 = vpop.permute.xlu0 %1984
        %v1987 = vsel %vm908, %v1982, 0
        %v1990 = vsel %vm969, %v1985, 0
        %1992 = vmatprep.subr.bf16.mxu0 0
        %1993 = vmatpush1.bf16.msra.mxu0 %v1990
        %1994 = vmatprep.subr.bf16.mxu0 0
        %1995 = vmatpush1.bf16.msra.mxu0 0
        %1996 = vmatprep.subr.bf16.mxu0 0
        %1997 = vmatpush1.bf16.msra.mxu0 0
        %1998 = vmatprep.subr.bf16.mxu0 0
        %1999 = vmatpush1.bf16.msra.mxu0 0
        %2000 = vmatprep.subr.bf16.mxu0 0
        %2001 = vmatpush1.bf16.msra.mxu0 0
        %2002 = vmatprep.subr.bf16.mxu0 0
        %2003 = vmatpush1.bf16.msra.mxu0 0
        %2004 = vmatprep.subr.bf16.mxu0 0
        %2005 = vmatpush1.bf16.msra.mxu0 0
        %2006 = vmatprep.subr.bf16.mxu0 0
        %2007 = vmatpush1.bf16.msra.mxu0 0
        %2008 = vmatprep.subr.bf16.mxu0 0
        %2009 = vmatpush1.bf16.msra.mxu0 0
        %2010 = vmatprep.subr.bf16.mxu0 0
        %2011 = vmatpush1.bf16.msra.mxu0 0
        %2012 = vmatprep.subr.bf16.mxu0 0
        %2013 = vmatpush1.bf16.msra.mxu0 0
        %2014 = vmatprep.subr.bf16.mxu0 0
        %2015 = vmatpush1.bf16.msra.mxu0 0
        %2016 = vmatprep.subr.bf16.mxu0 0
        %2017 = vmatpush1.bf16.msra.mxu0 0
        %2018 = vmatprep.subr.bf16.mxu0 0
        %2019 = vmatpush1.bf16.msra.mxu0 0
        %2020 = vmatprep.subr.bf16.mxu0 0
        %2021 = vmatpush1.bf16.msra.mxu0 0
        %2022 = vmatprep.subr.bf16.mxu0 0
        %2023 = vmatpush1.bf16.msra.mxu0 0
        %2024 = vmatprep.mubr.bf16.mxu0 0
        %2025 = vmatmul.mubr.bf16.gmra.mrb[0].mxu0 %v1987
        %v2026 = vpop.f32.mrb[0].mxu0
        %v2027 = vadd.f32 0.0, %v2026
        %v2028 = vpop.f32.mrb[0].mxu0
        %v2029 = vpop.f32.mrb[0].mxu0
        %v2030 = vpop.f32.mrb[0].mxu0
        %2031 = vdwg.mxu0
        %v2032 = vmul.f32 %v2027, %v1981
        %v2033 = vpack.c.bf16 %v2032, %v2032
        %s2034 = scalar_lea.vmem [#allocation14], 4
        %v2035 = vld [vmem:[%s2034] sm:$0xf]
        %v2037 = vsel %vm908, %v2033, 0
        %v2040 = vsel %vm969, %v2035, 0
        %2042 = vmatprep.subr.bf16.mxu0 0
        %2043 = vmatpush1.bf16.msra.mxu0 %v2040
        %2044 = vmatprep.subr.bf16.mxu0 0
        %2045 = vmatpush1.bf16.msra.mxu0 0
        %2046 = vmatprep.subr.bf16.mxu0 0
        %2047 = vmatpush1.bf16.msra.mxu0 0
        %2048 = vmatprep.subr.bf16.mxu0 0
        %2049 = vmatpush1.bf16.msra.mxu0 0
        %2050 = vmatprep.subr.bf16.mxu0 0
        %2051 = vmatpush1.bf16.msra.mxu0 0
        %2052 = vmatprep.subr.bf16.mxu0 0
        %2053 = vmatpush1.bf16.msra.mxu0 0
        %2054 = vmatprep.subr.bf16.mxu0 0
        %2055 = vmatpush1.bf16.msra.mxu0 0
        %2056 = vmatprep.subr.bf16.mxu0 0
        %2057 = vmatpush1.bf16.msra.mxu0 0
        %2058 = vmatprep.subr.bf16.mxu0 0
        %2059 = vmatpush1.bf16.msra.mxu0 0
        %2060 = vmatprep.subr.bf16.mxu0 0
        %2061 = vmatpush1.bf16.msra.mxu0 0
        %2062 = vmatprep.subr.bf16.mxu0 0
        %2063 = vmatpush1.bf16.msra.mxu0 0
        %2064 = vmatprep.subr.bf16.mxu0 0
        %2065 = vmatpush1.bf16.msra.mxu0 0
        %2066 = vmatprep.subr.bf16.mxu0 0
        %2067 = vmatpush1.bf16.msra.mxu0 0
        %2068 = vmatprep.subr.bf16.mxu0 0
        %2069 = vmatpush1.bf16.msra.mxu0 0
        %2070 = vmatprep.subr.bf16.mxu0 0
        %2071 = vmatpush1.bf16.msra.mxu0 0
        %2072 = vmatprep.subr.bf16.mxu0 0
        %2073 = vmatpush1.bf16.msra.mxu0 0
        %2074 = vmatprep.mubr.bf16.mxu0 0
        %2075 = vmatmul.mubr.bf16.gmra.mrb[0].mxu0 %v2037
        %v2076 = vpop.f32.mrb[0].mxu0
        %v2077 = vadd.f32 0.0, %v2076
        %v2078 = vpop.f32.mrb[0].mxu0
        %v2079 = vpop.f32.mrb[0].mxu0
        %v2080 = vpop.f32.mrb[0].mxu0
        %2081 = vdwg.mxu0
        %v2083 = vsel %vm908, %v1918, 0
        %v2086 = vsel %vm969, %v1919, 0
        %2088 = vmatprep.subr.bf16.mxu0 0
        %2089 = vmatpush1.bf16.msra.mxu0 %v2086
        %2090 = vmatprep.subr.bf16.mxu0 0
        %2091 = vmatpush1.bf16.msra.mxu0 0
        %2092 = vmatprep.subr.bf16.mxu0 0
        %2093 = vmatpush1.bf16.msra.mxu0 0
        %2094 = vmatprep.subr.bf16.mxu0 0
        %2095 = vmatpush1.bf16.msra.mxu0 0
        %2096 = vmatprep.subr.bf16.mxu0 0
        %2097 = vmatpush1.bf16.msra.mxu0 0
        %2098 = vmatprep.subr.bf16.mxu0 0
        %2099 = vmatpush1.bf16.msra.mxu0 0
        %2100 = vmatprep.subr.bf16.mxu0 0
        %2101 = vmatpush1.bf16.msra.mxu0 0
        %2102 = vmatprep.subr.bf16.mxu0 0
        %2103 = vmatpush1.bf16.msra.mxu0 0
        %2104 = vmatprep.subr.bf16.mxu0 0
        %2105 = vmatpush1.bf16.msra.mxu0 0
        %2106 = vmatprep.subr.bf16.mxu0 0
        %2107 = vmatpush1.bf16.msra.mxu0 0
        %2108 = vmatprep.subr.bf16.mxu0 0
        %2109 = vmatpush1.bf16.msra.mxu0 0
        %2110 = vmatprep.subr.bf16.mxu0 0
        %2111 = vmatpush1.bf16.msra.mxu0 0
        %2112 = vmatprep.subr.bf16.mxu0 0
        %2113 = vmatpush1.bf16.msra.mxu0 0
        %2114 = vmatprep.subr.bf16.mxu0 0
        %2115 = vmatpush1.bf16.msra.mxu0 0
        %2116 = vmatprep.subr.bf16.mxu0 0
        %2117 = vmatpush1.bf16.msra.mxu0 0
        %2118 = vmatprep.subr.bf16.mxu0 0
        %2119 = vmatpush1.bf16.msra.mxu0 0
        %2120 = vmatprep.mubr.bf16.mxu0 0
        %2121 = vmatmul.mubr.bf16.gmra.mrb[0].mxu0 %v2083
        %v2122 = vpop.f32.mrb[0].mxu0
        %v2123 = vadd.f32 %v2077, %v2122
        %v2124 = vpop.f32.mrb[0].mxu0
        %v2125 = vpop.f32.mrb[0].mxu0
        %v2126 = vpop.f32.mrb[0].mxu0
        %2127 = vdwg.mxu0
        %2128 = vrot.lane.b32.xlu0 %v1811, 112
        %v2129 = vpop.permute.xlu0 %2128
        %2130 = vrot.lane.b32.xlu0 %v1812, 112
        %v2131 = vpop.permute.xlu0 %2130
        %v2133 = vsel %vm908, %v2129, 0
        %v2136 = vsel %vm908, %v2131, 0
        %2138 = vmatprep.subr.bf16.mxu0 0
        %2139 = vmatpush1.bf16.xpose.msra.mxu0 %v2136
        %2140 = vmatprep.subr.bf16.mxu0 0
        %2141 = vmatpush1.bf16.xpose.msra.mxu0 0
        %2142 = vmatprep.subr.bf16.mxu0 0
        %2143 = vmatpush1.bf16.xpose.msra.mxu0 0
        %2144 = vmatprep.subr.bf16.mxu0 0
        %2145 = vmatpush1.bf16.xpose.msra.mxu0 0
        %2146 = vmatprep.subr.bf16.mxu0 0
        %2147 = vmatpush1.bf16.xpose.msra.mxu0 0
        %2148 = vmatprep.subr.bf16.mxu0 0
        %2149 = vmatpush1.bf16.xpose.msra.mxu0 0
        %2150 = vmatprep.subr.bf16.mxu0 0
        %2151 = vmatpush1.bf16.xpose.msra.mxu0 0
        %2152 = vmatprep.subr.bf16.mxu0 0
        %2153 = vmatpush1.bf16.xpose.msra.mxu0 0
        %2154 = vmatprep.subr.bf16.mxu0 0
        %2155 = vmatpush1.bf16.xpose.msra.mxu0 0
        %2156 = vmatprep.subr.bf16.mxu0 0
        %2157 = vmatpush1.bf16.xpose.msra.mxu0 0
        %2158 = vmatprep.subr.bf16.mxu0 0
        %2159 = vmatpush1.bf16.xpose.msra.mxu0 0
        %2160 = vmatprep.subr.bf16.mxu0 0
        %2161 = vmatpush1.bf16.xpose.msra.mxu0 0
        %2162 = vmatprep.subr.bf16.mxu0 0
        %2163 = vmatpush1.bf16.xpose.msra.mxu0 0
        %2164 = vmatprep.subr.bf16.mxu0 0
        %2165 = vmatpush1.bf16.xpose.msra.mxu0 0
        %2166 = vmatprep.subr.bf16.mxu0 0
        %2167 = vmatpush1.bf16.xpose.msra.mxu0 0
        %2168 = vmatprep.subr.bf16.mxu0 0
        %2169 = vmatpush1.bf16.xpose.msra.mxu0 0
        %2170 = vmatprep.mubr.bf16.mxu0 0
        %2171 = vmatmul.mubr.bf16.gmra.mrb[0].mxu0 %v2133
        %v2172 = vpop.f32.mrb[0].mxu0
        %v2173 = vadd.f32 0.0, %v2172
        %v2174 = vpop.f32.mrb[0].mxu0
        %v2175 = vpop.f32.mrb[0].mxu0
        %v2176 = vpop.f32.mrb[0].mxu0
        %2177 = vdwg.mxu0
        %v2178 = vsel %vm908, %v2173, -inf
        %2179 = vmax.xlane.f32.xlu0 %v2178
        %v2180 = vpop.xlane.xlu0 %2179
        %v2181 = vsub.f32 %v2173, %v2180
        %v2182 = vmul.f32 %v2181, 1.442695
        %v2183 = vpow.pop %v2182
        %v2184 = vsel %vm908, %v2183, 0.0
        %2185 = vadd.xlane.f32.xlu0 %v2184
        %v2186 = vpop.xlane.xlu0 %2185
        %v2187 = vrcp.pop %v2186
        %v2188 = vpack.c.bf16 %v2183, %v2183
        %2189 = vrot.lane.b32.xlu0 %v1813, 112
        %v2190 = vpop.permute.xlu0 %2189
        %v2192 = vsel %vm908, %v2188, 0
        %v2195 = vsel %vm969, %v2190, 0
        %2197 = vmatprep.subr.bf16.mxu0 0
        %2198 = vmatpush1.bf16.msra.mxu0 %v2195
        %2199 = vmatprep.subr.bf16.mxu0 0
        %2200 = vmatpush1.bf16.msra.mxu0 0
        %2201 = vmatprep.subr.bf16.mxu0 0
        %2202 = vmatpush1.bf16.msra.mxu0 0
        %2203 = vmatprep.subr.bf16.mxu0 0
        %2204 = vmatpush1.bf16.msra.mxu0 0
        %2205 = vmatprep.subr.bf16.mxu0 0
        %2206 = vmatpush1.bf16.msra.mxu0 0
        %2207 = vmatprep.subr.bf16.mxu0 0
        %2208 = vmatpush1.bf16.msra.mxu0 0
        %2209 = vmatprep.subr.bf16.mxu0 0
        %2210 = vmatpush1.bf16.msra.mxu0 0
        %2211 = vmatprep.subr.bf16.mxu0 0
        %2212 = vmatpush1.bf16.msra.mxu0 0
        %2213 = vmatprep.subr.bf16.mxu0 0
        %2214 = vmatpush1.bf16.msra.mxu0 0
        %2215 = vmatprep.subr.bf16.mxu0 0
        %2216 = vmatpush1.bf16.msra.mxu0 0
        %2217 = vmatprep.subr.bf16.mxu0 0
        %2218 = vmatpush1.bf16.msra.mxu0 0
        %2219 = vmatprep.subr.bf16.mxu0 0
        %2220 = vmatpush1.bf16.msra.mxu0 0
        %2221 = vmatprep.subr.bf16.mxu0 0
        %2222 = vmatpush1.bf16.msra.mxu0 0
        %2223 = vmatprep.subr.bf16.mxu0 0
        %2224 = vmatpush1.bf16.msra.mxu0 0
        %2225 = vmatprep.subr.bf16.mxu0 0
        %2226 = vmatpush1.bf16.msra.mxu0 0
        %2227 = vmatprep.subr.bf16.mxu0 0
        %2228 = vmatpush1.bf16.msra.mxu0 0
        %2229 = vmatprep.mubr.bf16.mxu0 0
        %2230 = vmatmul.mubr.bf16.gmra.mrb[0].mxu0 %v2192
        %v2231 = vpop.f32.mrb[0].mxu0
        %v2232 = vadd.f32 0.0, %v2231
        %v2233 = vpop.f32.mrb[0].mxu0
        %v2234 = vpop.f32.mrb[0].mxu0
        %v2235 = vpop.f32.mrb[0].mxu0
        %2236 = vdwg.mxu0
        %v2237 = vmul.f32 %v2232, %v2187
        %v2238 = vpack.c.bf16 %v2237, %v2237
        %s2239 = scalar_lea.vmem [#allocation14], 8
        %v2240 = vld [vmem:[%s2239] sm:$0xf]
        %v2242 = vsel %vm908, %v2238, 0
        %v2245 = vsel %vm969, %v2240, 0
        %2247 = vmatprep.subr.bf16.mxu0 0
        %2248 = vmatpush1.bf16.msra.mxu0 %v2245
        %2249 = vmatprep.subr.bf16.mxu0 0
        %2250 = vmatpush1.bf16.msra.mxu0 0
        %2251 = vmatprep.subr.bf16.mxu0 0
        %2252 = vmatpush1.bf16.msra.mxu0 0
        %2253 = vmatprep.subr.bf16.mxu0 0
        %2254 = vmatpush1.bf16.msra.mxu0 0
        %2255 = vmatprep.subr.bf16.mxu0 0
        %2256 = vmatpush1.bf16.msra.mxu0 0
        %2257 = vmatprep.subr.bf16.mxu0 0
        %2258 = vmatpush1.bf16.msra.mxu0 0
        %2259 = vmatprep.subr.bf16.mxu0 0
        %2260 = vmatpush1.bf16.msra.mxu0 0
        %2261 = vmatprep.subr.bf16.mxu0 0
        %2262 = vmatpush1.bf16.msra.mxu0 0
        %2263 = vmatprep.subr.bf16.mxu0 0
        %2264 = vmatpush1.bf16.msra.mxu0 0
        %2265 = vmatprep.subr.bf16.mxu0 0
        %2266 = vmatpush1.bf16.msra.mxu0 0
        %2267 = vmatprep.subr.bf16.mxu0 0
        %2268 = vmatpush1.bf16.msra.mxu0 0
        %2269 = vmatprep.subr.bf16.mxu0 0
        %2270 = vmatpush1.bf16.msra.mxu0 0
        %2271 = vmatprep.subr.bf16.mxu0 0
        %2272 = vmatpush1.bf16.msra.mxu0 0
        %2273 = vmatprep.subr.bf16.mxu0 0
        %2274 = vmatpush1.bf16.msra.mxu0 0
        %2275 = vmatprep.subr.bf16.mxu0 0
        %2276 = vmatpush1.bf16.msra.mxu0 0
        %2277 = vmatprep.subr.bf16.mxu0 0
        %2278 = vmatpush1.bf16.msra.mxu0 0
        %2279 = vmatprep.mubr.bf16.mxu0 0
        %2280 = vmatmul.mubr.bf16.gmra.mrb[0].mxu0 %v2242
        %v2281 = vpop.f32.mrb[0].mxu0
        %v2282 = vadd.f32 0.0, %v2281
        %v2283 = vpop.f32.mrb[0].mxu0
        %v2284 = vpop.f32.mrb[0].mxu0
        %v2285 = vpop.f32.mrb[0].mxu0
        %2286 = vdwg.mxu0
        %v2287 = vadd.f32 %v2123, %v2282
        %2288 = vrot.lane.b32.xlu0 %v1811, 104
        %v2289 = vpop.permute.xlu0 %2288
        %2290 = vrot.lane.b32.xlu0 %v1812, 104
        %v2291 = vpop.permute.xlu0 %2290
        %v2293 = vsel %vm908, %v2289, 0
        %v2296 = vsel %vm908, %v2291, 0
        %2298 = vmatprep.subr.bf16.mxu0 0
        %2299 = vmatpush1.bf16.xpose.msra.mxu0 %v2296
        %2300 = vmatprep.subr.bf16.mxu0 0
        %2301 = vmatpush1.bf16.xpose.msra.mxu0 0
        %2302 = vmatprep.subr.bf16.mxu0 0
        %2303 = vmatpush1.bf16.xpose.msra.mxu0 0
        %2304 = vmatprep.subr.bf16.mxu0 0
        %2305 = vmatpush1.bf16.xpose.msra.mxu0 0
        %2306 = vmatprep.subr.bf16.mxu0 0
        %2307 = vmatpush1.bf16.xpose.msra.mxu0 0
        %2308 = vmatprep.subr.bf16.mxu0 0
        %2309 = vmatpush1.bf16.xpose.msra.mxu0 0
        %2310 = vmatprep.subr.bf16.mxu0 0
        %2311 = vmatpush1.bf16.xpose.msra.mxu0 0
        %2312 = vmatprep.subr.bf16.mxu0 0
        %2313 = vmatpush1.bf16.xpose.msra.mxu0 0
        %2314 = vmatprep.subr.bf16.mxu0 0
        %2315 = vmatpush1.bf16.xpose.msra.mxu0 0
        %2316 = vmatprep.subr.bf16.mxu0 0
        %2317 = vmatpush1.bf16.xpose.msra.mxu0 0
        %2318 = vmatprep.subr.bf16.mxu0 0
        %2319 = vmatpush1.bf16.xpose.msra.mxu0 0
        %2320 = vmatprep.subr.bf16.mxu0 0
        %2321 = vmatpush1.bf16.xpose.msra.mxu0 0
        %2322 = vmatprep.subr.bf16.mxu0 0
        %2323 = vmatpush1.bf16.xpose.msra.mxu0 0
        %2324 = vmatprep.subr.bf16.mxu0 0
        %2325 = vmatpush1.bf16.xpose.msra.mxu0 0
        %2326 = vmatprep.subr.bf16.mxu0 0
        %2327 = vmatpush1.bf16.xpose.msra.mxu0 0
        %2328 = vmatprep.subr.bf16.mxu0 0
        %2329 = vmatpush1.bf16.xpose.msra.mxu0 0
        %2330 = vmatprep.mubr.bf16.mxu0 0
        %2331 = vmatmul.mubr.bf16.gmra.mrb[0].mxu0 %v2293
        %v2332 = vpop.f32.mrb[0].mxu0
        %v2333 = vadd.f32 0.0, %v2332
        %v2334 = vpop.f32.mrb[0].mxu0
        %v2335 = vpop.f32.mrb[0].mxu0
        %v2336 = vpop.f32.mrb[0].mxu0
        %2337 = vdwg.mxu0
        %v2338 = vsel %vm908, %v2333, -inf
        %2339 = vmax.xlane.f32.xlu0 %v2338
        %v2340 = vpop.xlane.xlu0 %2339
        %v2341 = vsub.f32 %v2333, %v2340
        %v2342 = vmul.f32 %v2341, 1.442695
        %v2343 = vpow.pop %v2342
        %v2344 = vsel %vm908, %v2343, 0.0
        %2345 = vadd.xlane.f32.xlu0 %v2344
        %v2346 = vpop.xlane.xlu0 %2345
        %v2347 = vrcp.pop %v2346
        %v2348 = vpack.c.bf16 %v2343, %v2343
        %2349 = vrot.lane.b32.xlu0 %v1813, 104
        %v2350 = vpop.permute.xlu0 %2349
        %v2352 = vsel %vm908, %v2348, 0
        %v2355 = vsel %vm969, %v2350, 0
        %2357 = vmatprep.subr.bf16.mxu0 0
        %2358 = vmatpush1.bf16.msra.mxu0 %v2355
        %2359 = vmatprep.subr.bf16.mxu0 0
        %2360 = vmatpush1.bf16.msra.mxu0 0
        %2361 = vmatprep.subr.bf16.mxu0 0
        %2362 = vmatpush1.bf16.msra.mxu0 0
        %2363 = vmatprep.subr.bf16.mxu0 0
        %2364 = vmatpush1.bf16.msra.mxu0 0
        %2365 = vmatprep.subr.bf16.mxu0 0
        %2366 = vmatpush1.bf16.msra.mxu0 0
        %2367 = vmatprep.subr.bf16.mxu0 0
        %2368 = vmatpush1.bf16.msra.mxu0 0
        %2369 = vmatprep.subr.bf16.mxu0 0
        %2370 = vmatpush1.bf16.msra.mxu0 0
        %2371 = vmatprep.subr.bf16.mxu0 0
        %2372 = vmatpush1.bf16.msra.mxu0 0
        %2373 = vmatprep.subr.bf16.mxu0 0
        %2374 = vmatpush1.bf16.msra.mxu0 0
        %2375 = vmatprep.subr.bf16.mxu0 0
        %2376 = vmatpush1.bf16.msra.mxu0 0
        %2377 = vmatprep.subr.bf16.mxu0 0
        %2378 = vmatpush1.bf16.msra.mxu0 0
        %2379 = vmatprep.subr.bf16.mxu0 0
        %2380 = vmatpush1.bf16.msra.mxu0 0
        %2381 = vmatprep.subr.bf16.mxu0 0
        %2382 = vmatpush1.bf16.msra.mxu0 0
        %2383 = vmatprep.subr.bf16.mxu0 0
        %2384 = vmatpush1.bf16.msra.mxu0 0
        %2385 = vmatprep.subr.bf16.mxu0 0
        %2386 = vmatpush1.bf16.msra.mxu0 0
        %2387 = vmatprep.subr.bf16.mxu0 0
        %2388 = vmatpush1.bf16.msra.mxu0 0
        %2389 = vmatprep.mubr.bf16.mxu0 0
        %2390 = vmatmul.mubr.bf16.gmra.mrb[0].mxu0 %v2352
        %v2391 = vpop.f32.mrb[0].mxu0
        %v2392 = vadd.f32 0.0, %v2391
        %v2393 = vpop.f32.mrb[0].mxu0
        %v2394 = vpop.f32.mrb[0].mxu0
        %v2395 = vpop.f32.mrb[0].mxu0
        %2396 = vdwg.mxu0
        %v2397 = vmul.f32 %v2392, %v2347
        %v2398 = vpack.c.bf16 %v2397, %v2397
        %s2399 = scalar_lea.vmem [#allocation14], 12
        %v2400 = vld [vmem:[%s2399] sm:$0xf]
        %v2402 = vsel %vm908, %v2398, 0
        %v2405 = vsel %vm969, %v2400, 0
        %2407 = vmatprep.subr.bf16.mxu0 0
        %2408 = vmatpush1.bf16.msra.mxu0 %v2405
        %2409 = vmatprep.subr.bf16.mxu0 0
        %2410 = vmatpush1.bf16.msra.mxu0 0
        %2411 = vmatprep.subr.bf16.mxu0 0
        %2412 = vmatpush1.bf16.msra.mxu0 0
        %2413 = vmatprep.subr.bf16.mxu0 0
        %2414 = vmatpush1.bf16.msra.mxu0 0
        %2415 = vmatprep.subr.bf16.mxu0 0
        %2416 = vmatpush1.bf16.msra.mxu0 0
        %2417 = vmatprep.subr.bf16.mxu0 0
        %2418 = vmatpush1.bf16.msra.mxu0 0
        %2419 = vmatprep.subr.bf16.mxu0 0
        %2420 = vmatpush1.bf16.msra.mxu0 0
        %2421 = vmatprep.subr.bf16.mxu0 0
        %2422 = vmatpush1.bf16.msra.mxu0 0
        %2423 = vmatprep.subr.bf16.mxu0 0
        %2424 = vmatpush1.bf16.msra.mxu0 0
        %2425 = vmatprep.subr.bf16.mxu0 0
        %2426 = vmatpush1.bf16.msra.mxu0 0
        %2427 = vmatprep.subr.bf16.mxu0 0
        %2428 = vmatpush1.bf16.msra.mxu0 0
        %2429 = vmatprep.subr.bf16.mxu0 0
        %2430 = vmatpush1.bf16.msra.mxu0 0
        %2431 = vmatprep.subr.bf16.mxu0 0
        %2432 = vmatpush1.bf16.msra.mxu0 0
        %2433 = vmatprep.subr.bf16.mxu0 0
        %2434 = vmatpush1.bf16.msra.mxu0 0
        %2435 = vmatprep.subr.bf16.mxu0 0
        %2436 = vmatpush1.bf16.msra.mxu0 0
        %2437 = vmatprep.subr.bf16.mxu0 0
        %2438 = vmatpush1.bf16.msra.mxu0 0
        %2439 = vmatprep.mubr.bf16.mxu0 0
        %2440 = vmatmul.mubr.bf16.gmra.mrb[0].mxu0 %v2402
        %v2441 = vpop.f32.mrb[0].mxu0
        %v2442 = vadd.f32 0.0, %v2441
        %v2443 = vpop.f32.mrb[0].mxu0
        %v2444 = vpop.f32.mrb[0].mxu0
        %v2445 = vpop.f32.mrb[0].mxu0
        %2446 = vdwg.mxu0
        %v2447 = vadd.f32 %v2287, %v2442
        %v2448 = vld [vmem:[#allocation16] sm:$0x1]
        %v2450 = vlaneseq
        %v2451 = vshrl.u32 %v2450, 7
        %v2452 = vsub.s32 0, %v2451
        %v2453 = vrot.slane %v2448, %v2452
        %v2455 = vadd.f32 %v2447, %v2453
        %v2456 = vadd.f32 %v1613, %v2455
        %s2457 = scalar_lea.vmem [#allocation23], 2
        %v2458 = vld [vmem:[%s2457] sm:$0x1]
        %s2459 = scalar_lea.vmem [#allocation25], 2
        %v2460 = vld [vmem:[%s2459] sm:$0x1]
        %v2461 = vsel %vm731, %v2456, 0.0
        %2462 = vadd.xlane.f32.xlu0 %v2461
        %v2463 = vpop.xlane.xlu0 %2462
        %v2464 = vmul.f32 %v2463, %v1558
        %v2465 = vsub.f32 %v2456, %v2464
        %v2466 = vmul.f32 %v2465, %v2465
        %v2467 = vsel %vm731, %v2466, 0.0
        %2468 = vadd.xlane.f32.xlu0 %v2467
        %v2469 = vpop.xlane.xlu0 %2468
        %v2470 = vmul.f32 %v2469, %v1558
        %v2471 = vadd.f32 %v2470, 1e-05
        %v2472 = vrsqrt.pop %v2471
        %v2473 = vmul.f32 %v2465, %v2472
        %v2475 = vlaneseq
        %v2476 = vshrl.u32 %v2475, 7
        %v2477 = vsub.s32 0, %v2476
        %v2478 = vrot.slane %v2458, %v2477
        %v2480 = vmul.f32 %v2473, %v2478
        %v2482 = vlaneseq
        %v2483 = vshrl.u32 %v2482, 7
        %v2484 = vsub.s32 0, %v2483
        %v2485 = vrot.slane %v2460, %v2484
        %v2487 = vadd.f32 %v2480, %v2485
        %v2488 = vadd.f32 %v1582, %v2487
        %s2489 = scalar_lea.vmem [#allocation23], 3
        %v2490 = vld [vmem:[%s2489] sm:$0x1]
        %s2491 = scalar_lea.vmem [#allocation25], 3
        %v2492 = vld [vmem:[%s2491] sm:$0x1]
        %v2493 = vsel %vm731, %v2488, 0.0
        %2494 = vadd.xlane.f32.xlu0 %v2493
        %v2495 = vpop.xlane.xlu0 %2494
        %v2496 = vmul.f32 %v2495, %v1558
        %v2497 = vsub.f32 %v2488, %v2496
        %v2498 = vmul.f32 %v2497, %v2497
        %v2499 = vsel %vm731, %v2498, 0.0
        %2500 = vadd.xlane.f32.xlu0 %v2499
        %v2501 = vpop.xlane.xlu0 %2500
        %v2502 = vmul.f32 %v2501, %v1558
        %v2503 = vadd.f32 %v2502, 1e-05
        %v2504 = vrsqrt.pop %v2503
        %v2505 = vmul.f32 %v2497, %v2504
        %v2507 = vlaneseq
        %v2508 = vshrl.u32 %v2507, 7
        %v2509 = vsub.s32 0, %v2508
        %v2510 = vrot.slane %v2490, %v2509
        %v2512 = vmul.f32 %v2505, %v2510
        %v2514 = vlaneseq
        %v2515 = vshrl.u32 %v2514, 7
        %v2516 = vsub.s32 0, %v2515
        %v2517 = vrot.slane %v2492, %v2516
        %v2519 = vadd.f32 %v2512, %v2517
        %v2520 = vpack.c.bf16 %v2519, %v2519
        %v2521 = vld [vmem:[#allocation17] sm:$0xf]
        %v2522 = vld [vmem:[#allocation17 + $0x4] sm:$0xf]
        %v2523 = vld [vmem:[#allocation17 + $0x8] sm:$0xf]
        %v2524 = vld [vmem:[#allocation17 + $0xc] sm:$0xf]
        %v2525 = vld [vmem:[#allocation19] sm:$0x1]
        %v2527 = vlaneseq
        %v2528 = vshrl.u32 %v2527, 7
        %v2529 = vsub.s32 0, %v2528
        %v2530 = vrot.slane %v2525, %v2529
        %v2536 = vunpack.c.l.b16 %v2521
        %v2537 = vunpack.c.l.b16 %v2522
        %v2538 = vunpack.c.l.b16 %v2523
        %v2539 = vunpack.c.l.b16 %v2524
        %v2540 = vpack.c.b16 %v2537, %v2536
        %v2541 = vpack.c.b16 %v2539, %v2538
        %v2545 = vsel %vm731, %v2520, 0
        %2547 = vmatprep.subr.bf16.mxu0 0
        %2548 = vmatpush1.bf16.msra.mxu0 %v2540
        %2549 = vmatprep.subr.bf16.mxu0 0
        %2550 = vmatpush1.bf16.msra.mxu0 %v2541
        %2551 = vmatprep.subr.bf16.mxu0 0
        %2552 = vmatpush1.bf16.msra.mxu0 0
        %2553 = vmatprep.subr.bf16.mxu0 0
        %2554 = vmatpush1.bf16.msra.mxu0 0
        %2555 = vmatprep.subr.bf16.mxu0 0
        %2556 = vmatpush1.bf16.msra.mxu0 0
        %2557 = vmatprep.subr.bf16.mxu0 0
        %2558 = vmatpush1.bf16.msra.mxu0 0
        %2559 = vmatprep.subr.bf16.mxu0 0
        %2560 = vmatpush1.bf16.msra.mxu0 0
        %2561 = vmatprep.subr.bf16.mxu0 0
        %2562 = vmatpush1.bf16.msra.mxu0 0
        %2563 = vmatprep.subr.bf16.mxu0 0
        %2564 = vmatpush1.bf16.msra.mxu0 0
        %2565 = vmatprep.subr.bf16.mxu0 0
        %2566 = vmatpush1.bf16.msra.mxu0 0
        %2567 = vmatprep.subr.bf16.mxu0 0
        %2568 = vmatpush1.bf16.msra.mxu0 0
        %2569 = vmatprep.subr.bf16.mxu0 0
        %2570 = vmatpush1.bf16.msra.mxu0 0
        %2571 = vmatprep.subr.bf16.mxu0 0
        %2572 = vmatpush1.bf16.msra.mxu0 0
        %2573 = vmatprep.subr.bf16.mxu0 0
        %2574 = vmatpush1.bf16.msra.mxu0 0
        %2575 = vmatprep.subr.bf16.mxu0 0
        %2576 = vmatpush1.bf16.msra.mxu0 0
        %2577 = vmatprep.subr.bf16.mxu0 0
        %2578 = vmatpush1.bf16.msra.mxu0 0
        %2579 = vmatprep.mubr.bf16.mxu0 0
        %2580 = vmatmul.mubr.bf16.gmra.mrb[0].mxu0 %v2545
        %v2581 = vpop.f32.mrb[0].mxu0
        %v2582 = vadd.f32 %v2530, %v2581
        %v2583 = vpop.f32.mrb[0].mxu0
        %v2584 = vpop.f32.mrb[0].mxu0
        %v2585 = vpop.f32.mrb[0].mxu0
        %2586 = vdwg.mxu0
        %v2587 = vmax.f32 %v2582, 0.0
        %v2588 = vpack.c.bf16 %v2587, %v2587
        %v2589 = vld [vmem:[#allocation20] sm:$0xf]
        %v2590 = vld [vmem:[#allocation20 + $0x4] sm:$0xf]
        %v2591 = vld [vmem:[#allocation20 + $0x8] sm:$0xf]
        %v2592 = vld [vmem:[#allocation20 + $0xc] sm:$0xf]
        %v2593 = vld [vmem:[#allocation20 + $0x10] sm:$0xf]
        %v2594 = vld [vmem:[#allocation20 + $0x14] sm:$0xf]
        %v2595 = vld [vmem:[#allocation20 + $0x18] sm:$0xf]
        %v2596 = vld [vmem:[#allocation20 + $0x1c] sm:$0xf]
        %v2597 = vld [vmem:[#allocation22] sm:$0x1]
        %v2599 = vlaneseq
        %v2600 = vshrl.u32 %v2599, 7
        %v2601 = vsub.s32 0, %v2600
        %v2602 = vrot.slane %v2597, %v2601
        %v2612 = vunpack.c.l.b16 %v2589
        %v2613 = vunpack.c.l.b16 %v2590
        %v2614 = vunpack.c.l.b16 %v2591
        %v2615 = vunpack.c.l.b16 %v2592
        %v2616 = vunpack.c.l.b16 %v2593
        %v2617 = vunpack.c.l.b16 %v2594
        %v2618 = vunpack.c.l.b16 %v2595
        %v2619 = vunpack.c.l.b16 %v2596
        %v2620 = vpack.c.b16 %v2613, %v2612
        %v2621 = vpack.c.b16 %v2615, %v2614
        %v2622 = vpack.c.b16 %v2617, %v2616
        %v2623 = vpack.c.b16 %v2619, %v2618
        %vm2628 = vcmask 523264
        %v2630 = vsel %vm2628, %v2588, 0
        %2632 = vmatprep.subr.bf16.mxu0 0
        %2633 = vmatpush1.bf16.msra.mxu0 %v2620
        %2634 = vmatprep.subr.bf16.mxu0 0
        %2635 = vmatpush1.bf16.msra.mxu0 %v2621
        %2636 = vmatprep.subr.bf16.mxu0 0
        %2637 = vmatpush1.bf16.msra.mxu0 %v2622
        %2638 = vmatprep.subr.bf16.mxu0 0
        %2639 = vmatpush1.bf16.msra.mxu0 %v2623
        %2640 = vmatprep.subr.bf16.mxu0 0
        %2641 = vmatpush1.bf16.msra.mxu0 0
        %2642 = vmatprep.subr.bf16.mxu0 0
        %2643 = vmatpush1.bf16.msra.mxu0 0
        %2644 = vmatprep.subr.bf16.mxu0 0
        %2645 = vmatpush1.bf16.msra.mxu0 0
        %2646 = vmatprep.subr.bf16.mxu0 0
        %2647 = vmatpush1.bf16.msra.mxu0 0
        %2648 = vmatprep.subr.bf16.mxu0 0
        %2649 = vmatpush1.bf16.msra.mxu0 0
        %2650 = vmatprep.subr.bf16.mxu0 0
        %2651 = vmatpush1.bf16.msra.mxu0 0
        %2652 = vmatprep.subr.bf16.mxu0 0
        %2653 = vmatpush1.bf16.msra.mxu0 0
        %2654 = vmatprep.subr.bf16.mxu0 0
        %2655 = vmatpush1.bf16.msra.mxu0 0
        %2656 = vmatprep.subr.bf16.mxu0 0
        %2657 = vmatpush1.bf16.msra.mxu0 0
        %2658 = vmatprep.subr.bf16.mxu0 0
        %2659 = vmatpush1.bf16.msra.mxu0 0
        %2660 = vmatprep.subr.bf16.mxu0 0
        %2661 = vmatpush1.bf16.msra.mxu0 0
        %2662 = vmatprep.subr.bf16.mxu0 0
        %2663 = vmatpush1.bf16.msra.mxu0 0
        %2664 = vmatprep.mubr.bf16.mxu0 0
        %2665 = vmatmul.mubr.bf16.gmra.mrb[0].mxu0 %v2630
        %v2666 = vpop.f32.mrb[0].mxu0
        %v2667 = vadd.f32 %v2602, %v2666
        %v2668 = vpop.f32.mrb[0].mxu0
        %v2669 = vpop.f32.mrb[0].mxu0
        %v2670 = vpop.f32.mrb[0].mxu0
        %2671 = vdwg.mxu0
        %v2672 = vadd.f32 %v2519, %v2667
        %s2673 = scalar_lea.vmem [#allocation23], 4
        %v2674 = vld [vmem:[%s2673] sm:$0x1]
        %s2675 = scalar_lea.vmem [#allocation25], 4
        %v2676 = vld [vmem:[%s2675] sm:$0x1]
        %v2677 = vsel %vm731, %v2672, 0.0
        %2678 = vadd.xlane.f32.xlu0 %v2677
        %v2679 = vpop.xlane.xlu0 %2678
        %v2680 = vmul.f32 %v2679, %v1558
        %v2681 = vsub.f32 %v2672, %v2680
        %v2682 = vmul.f32 %v2681, %v2681
        %v2683 = vsel %vm731, %v2682, 0.0
        %2684 = vadd.xlane.f32.xlu0 %v2683
        %v2685 = vpop.xlane.xlu0 %2684
        %v2686 = vmul.f32 %v2685, %v1558
        %v2687 = vadd.f32 %v2686, 1e-05
        %v2688 = vrsqrt.pop %v2687
        %v2689 = vmul.f32 %v2681, %v2688
        %v2691 = vlaneseq
        %v2692 = vshrl.u32 %v2691, 7
        %v2693 = vsub.s32 0, %v2692
        %v2694 = vrot.slane %v2674, %v2693
        %v2696 = vmul.f32 %v2689, %v2694
        %v2698 = vlaneseq
        %v2699 = vshrl.u32 %v2698, 7
        %v2700 = vsub.s32 0, %v2699
        %v2701 = vrot.slane %v2676, %v2700
        %v2703 = vadd.f32 %v2696, %v2701
        %v2704 = vadd.f32 %v2488, %v2703
        %2705 = vst.msk [vmem:[%s704] sm:$0xff] %vm731, %v2704
        %s2706 = sand.u32 %s367, 1
        %s2707 = scalar_lea.sflag [#allocation4], %s2706
        %s2708 = sand.u32 %s367, 1
        %s2709 = smul.addr %s2708, 8
        %s2710 = scalar_lea.vmem [#allocation26], %s2709
        // Predicated region
        $region141: #{tpu_custom_call.1} parent=79 // pred_check
          %p2711 = pneg %p377
        $region142: #{tpu_custom_call.1} parent=79 // pred_check_branch
          %2713 = sbr.rel (%p2711) target = $region144
        $region143: #{tpu_custom_call.1} parent=79 // pred_region
          %s2715 = ssub.s32 128, 128
          %2716 = vsyncadd %s2707, %s2715
          %s2717 = smul.addr %s39, 128
          %s2718 = scalar_lea.hbm %s15, %s2717
          %s2720 = sshll.u32 %s2710, 4
          %s2721 = int_to_ptr.vmem [resolvable:$true] %s2720
          %2723 = dma.vmem_to_hbm [thread:$0]  %s2721, 128, %s2718, %s2707
        $region144: #{tpu_custom_call.1} parent=79 // pred_fallthru
          _
      $region80: #{tpu_custom_call.1} parent=5 // pred_fallthru
        _
      %p2724 = scmp.le.s32.totalorder 2, %s34
      // Predicated region
      $region145: #{tpu_custom_call.1} parent=5 // pred_check
        %p2725 = pneg %p2724
      $region146: #{tpu_custom_call.1} parent=5 // pred_check_branch
        %2727 = sbr.rel (%p2725) target = $region148
      $region147: #{tpu_custom_call.1} parent=5 // pred_region
        %s2728 = ssub.s32 %s34, 2
        // Predicated region
        $region149: #{tpu_custom_call.1} parent=147 // pred_check
          %p2729 = pneg %p383
        $region150: #{tpu_custom_call.1} parent=147 // pred_check_branch
          %2731 = sbr.rel (%p2729) target = $region152
        $region151: #{tpu_custom_call.1} parent=147 // pred_region
          %s2732 = sand.u32 %s368, 1
          %s2733 = scalar_lea.sflag [#allocation4], %s2732
          %s2734 = sand.u32 %s368, 1
          %s2735 = smul.addr %s2734, 8
          %s2736 = scalar_lea.vmem [#allocation26], %s2735
          %2737 = dma.done %s2733, 128
        $region152: #{tpu_custom_call.1} parent=147 // pred_fallthru
          _
      $region148: #{tpu_custom_call.1} parent=5 // pred_fallthru
        _
    $region6: #{tpu_custom_call.1} parent=1 // loop_footer
      %s38 = sadd.s32 1, %s34
    $region7: #{tpu_custom_call.1} parent=1 // loop_footer_branch
      %33 = sbr.rel target = $region3
    $region8: #{tpu_custom_call.1} parent=1 // loop_exit
      _
    %2738 = vsyncpa [#allocation3], 1
    %s2739 = scalar_lea.sflag [#allocation3], 1
    %2740 = vsyncpa %s2739, 1
    %2741 = vsyncpa [#allocation6], 1
    %2742 = vsyncpa [#allocation9], 1
    %2743 = vsyncpa [#allocation12], 1
    %2744 = vsyncpa [#allocation15], 1
    %2745 = vsyncpa [#allocation18], 1
    %2746 = vsyncpa [#allocation21], 1
    %2747 = vsyncpa [#allocation24], 1
    %2748 = vsyncpa [#allocation4], 1
    %s2749 = scalar_lea.sflag [#allocation4], 1
    %2750 = vsyncpa %s2749, 1

</llo_original>
